<compile_context>
chip_gen: v6e
topology: v6e:2x2x1
jax: 0.10.0
libtpu: 0.0.40
codegen_flags: <defaults>
</compile_context>

<pallas_src>
import functools

import jax
import jax.numpy as jnp
from jax.experimental import pallas as pl
from jax.experimental.pallas import tpu as pltpu

ACT = jnp.tanh  # activation = 'tanh'


# ----------------------------- kernel ---------------------------------------

def prob_deeponet_kernel(
    u_ref,                      # (BM, 16)   f32 branch input tile
    y_ref,                      # (BM, 8)    f32 trunk  input tile
    W1u_ref, W1y_ref, b1_ref,   # (16,64) f32, (8,64) f32, (1,64) f32
    W2_ref, b2_ref,             # (64,64)  cdt, (1,64)  f32
    Wh1_ref, bh1_ref,           # (64,128) cdt, (1,128) f32
    Wh2_ref, bh2_ref,           # (128,128)cdt, (1,128) f32
    selT_ref,                   # (2,64)   cdt  segment-sum selector (transposed)
    bias2_ref,                  # (2,1)    f32  [bias_mu; bias_std]
    out_ref,                    # (2, BM)  f32  lane-dense [mu row; log_std row]
):
    cdt = W2_ref.dtype          # compute/storage dtype of the wide weights

    u = u_ref[...]
    y = y_ref[...]

    # Fused branch|trunk backbone layer 1 (f32, tiny K): lanes [0:32]=b, [32:64]=t.
    z1 = (jnp.dot(u, W1u_ref[...], preferred_element_type=jnp.float32)
          + jnp.dot(y, W1y_ref[...], preferred_element_type=jnp.float32)
          + b1_ref[...])
    h1 = ACT(z1)                                           # f32 tanh (v5e-safe)

    # Backbone layer 2 (block-diagonal), then shared head activation.
    h2 = jnp.dot(h1.astype(cdt), W2_ref[...],
                 preferred_element_type=jnp.float32) + b2_ref[...]
    a = ACT(h2)

    # Fused heads: lanes [0:32]=b_mu, [32:64]=b_std, [64:96]=t_mu, [96:128]=t_std.
    g1 = ACT(jnp.dot(a.astype(cdt), Wh1_ref[...],
                     preferred_element_type=jnp.float32) + bh1_ref[...])
    g2 = jnp.dot(g1.astype(cdt), Wh2_ref[...],
                 preferred_element_type=jnp.float32) + bh2_ref[...]

    # einsum('bi,bi->b') for mu and log_std: multiply branch half by trunk half,
    # then segment-sum via a (2,64) x (BM,64)^T matmul -> lane-dense (2, BM).
    prod = g2[:, 0:64] * g2[:, 64:128]   # [0:32]=b_mu*t_mu, [32:64]=b_std*t_std
    out = jax.lax.dot_general(
        selT_ref[...], prod.astype(cdt),
        dimension_numbers=(((1,), (1,)), ((), ())),
        preferred_element_type=jnp.float32)
    out_ref[...] = out + bias2_ref[...]   # add bias_mu / bias_std, one dense store


# ----------------------------- weight packing (hoisted, runs once) -----------

def pack_params(params, bias_mu, bias_std, dtype=jnp.bfloat16):
    """Fuse per-layer (W, b) params into block-diagonal wide matrices.

    Wide weights (layer2 / heads / selector) are cast to `dtype` (bf16 default);
    the tiny first-layer weights and all biases stay f32.
    """
    (bW1, bb1, bW2, bb2,
     tW1, tb1, tW2, tb2,
     bmW1, bmb1, bmW2, bmb2,
     bsW1, bsb1, bsW2, bsb2,
     tmW1, tmb1, tmW2, tmb2,
     tsW1, tsb1, tsW2, tsb2) = params

    in_b = bW1.shape[0]          # 16
    in_t = tW1.shape[0]          # 8
    H = bW1.shape[1]             # 32

    # layer 1: branch input feeds lanes [0:H], trunk input feeds lanes [H:2H].
    W1u = jnp.zeros((in_b, 2 * H), jnp.float32).at[:, 0:H].set(bW1)
    W1y = jnp.zeros((in_t, 2 * H), jnp.float32).at[:, H:2 * H].set(tW1)
    b1 = jnp.concatenate([bb1, tb1], axis=-1).astype(jnp.float32)

    # backbone layer 2: block-diagonal.
    W2 = jnp.zeros((2 * H, 2 * H), jnp.float32)
    W2 = W2.at[0:H, 0:H].set(bW2).at[H:2 * H, H:2 * H].set(tW2)
    b2 = jnp.concatenate([bb2, tb2], axis=-1).astype(jnp.float32)

    # head layer 1: branch rows feed [bm|bs] cols, trunk rows feed [tm|ts] cols.
    Wh1 = jnp.zeros((2 * H, 4 * H), jnp.float32)
    Wh1 = Wh1.at[0:H, 0:H].set(bmW1).at[0:H, H:2 * H].set(bsW1)
    Wh1 = Wh1.at[H:2 * H, 2 * H:3 * H].set(tmW1).at[H:2 * H, 3 * H:4 * H].set(tsW1)
    bh1 = jnp.concatenate([bmb1, bsb1, tmb1, tsb1], axis=-1).astype(jnp.float32)

    # head layer 2: block-diagonal over the four heads.
    Wh2 = jnp.zeros((4 * H, 4 * H), jnp.float32)
    Wh2 = Wh2.at[0:H, 0:H].set(bmW2).at[H:2 * H, H:2 * H].set(bsW2)
    Wh2 = Wh2.at[2 * H:3 * H, 2 * H:3 * H].set(tmW2).at[3 * H:4 * H, 3 * H:4 * H].set(tsW2)
    bh2 = jnp.concatenate([bmb2, bsb2, tmb2, tsb2], axis=-1).astype(jnp.float32)

    # transposed selector: row 0 sums mu-product lanes [0:H], row 1 std lanes [H:2H].
    selT = jnp.zeros((2, 2 * H), jnp.float32)
    selT = selT.at[0, 0:H].set(1.0).at[1, H:2 * H].set(1.0)

    bias2 = jnp.concatenate([bias_mu, bias_std]).reshape(2, 1).astype(jnp.float32)

    return (W1u, W1y, b1,
            W2.astype(dtype), b2,
            Wh1.astype(dtype), bh1,
            Wh2.astype(dtype), bh2,
            selT.astype(dtype), bias2)


# ----------------------------- wrapper ---------------------------------------

@functools.partial(jax.jit, static_argnames=("block_m",))
def prob_deeponet_forward(u, y, packed, block_m=512):
    (W1u, W1y, b1, W2, b2, Wh1, bh1, Wh2, bh2, selT, bias2) = packed
    B = u.shape[0]
    in_b, in_t = u.shape[1], y.shape[1]

    n_blocks = pl.cdiv(B, block_m)
    B_pad = n_blocks * block_m
    if B_pad != B:
        u = jnp.pad(u, ((0, B_pad - B), (0, 0)))
        y = jnp.pad(y, ((0, B_pad - B), (0, 0)))

    # Advisory cost hint for XLA scheduling around the custom call.
    w_bytes = sum(int(w.size) * jnp.dtype(w.dtype).itemsize for w in packed)
    flops_row = 2 * (in_b * 64 + in_t * 64 + 64 * 64 + 64 * 128 + 128 * 128 + 64 * 2) + 64
    cost = pl.CostEstimate(
        flops=int(B_pad * flops_row),
        transcendentals=int(B_pad * (64 + 64 + 128)),
        bytes_accessed=int(B_pad * ((in_b + in_t) * 4 + 2 * 4) + w_bytes),
    )

    resident = lambda i: (0, 0)   # weights stay VMEM-resident across grid steps
    out = pl.pallas_call(
        prob_deeponet_kernel,
        out_shape=jax.ShapeDtypeStruct((2, B_pad), jnp.float32),
        grid=(n_blocks,),
        in_specs=[
            pl.BlockSpec((block_m, in_b), lambda i: (i, 0)),
            pl.BlockSpec((block_m, in_t), lambda i: (i, 0)),
            pl.BlockSpec(W1u.shape, resident),
            pl.BlockSpec(W1y.shape, resident),
            pl.BlockSpec(b1.shape, resident),
            pl.BlockSpec(W2.shape, resident),
            pl.BlockSpec(b2.shape, resident),
            pl.BlockSpec(Wh1.shape, resident),
            pl.BlockSpec(bh1.shape, resident),
            pl.BlockSpec(Wh2.shape, resident),
            pl.BlockSpec(bh2.shape, resident),
            pl.BlockSpec(selT.shape, resident),
            pl.BlockSpec(bias2.shape, resident),
        ],
        out_specs=pl.BlockSpec((2, block_m), lambda i: (0, i)),   # lane-dense output
        compiler_params=pltpu.CompilerParams(
            dimension_semantics=("parallel",),   # dual-TC sharding on v7x
        ),
        cost_estimate=cost,
    )(u, y, W1u, W1y, b1, W2, b2, Wh1, bh1, Wh2, bh2, selT, bias2)

    mu = out[0, :B].reshape(-1, 1)
    log_std = out[1, :B].reshape(-1, 1)
    return mu, log_std


# ---------------- deterministic parameter construction ----------------------

def xavier_normal(key, fan_in, fan_out):
    std = jnp.sqrt(2.0 / (fan_in + fan_out))
    return jax.random.normal(key, (fan_in, fan_out), dtype=jnp.float32) * std


def make_linear(key, fan_in, fan_out):
    W = xavier_normal(key, fan_in, fan_out)
    b = jnp.zeros((1, fan_out), dtype=jnp.float32)   # PyTorch init zeros the bias
    return W, b


def build_params(key, branch_layer_size, trunk_layer_size):
    H = branch_layer_size[-3]
    p = branch_layer_size[-1]
    keys = jax.random.split(key, 16)
    k = iter(keys)

    params = []
    # branch backbone: layer_size[:-2] = [in, H, H]
    params += make_linear(next(k), branch_layer_size[0], branch_layer_size[1])
    params += make_linear(next(k), branch_layer_size[1], branch_layer_size[2])
    # trunk backbone
    params += make_linear(next(k), trunk_layer_size[0], trunk_layer_size[1])
    params += make_linear(next(k), trunk_layer_size[1], trunk_layer_size[2])
    # branch_mu head
    params += make_linear(next(k), H, branch_layer_size[-2])
    params += make_linear(next(k), branch_layer_size[-2], p)
    # branch_std head
    params += make_linear(next(k), H, branch_layer_size[-2])
    params += make_linear(next(k), branch_layer_size[-2], p)
    # trunk_mu head
    params += make_linear(next(k), trunk_layer_size[-3], trunk_layer_size[-2])
    params += make_linear(next(k), trunk_layer_size[-2], trunk_layer_size[-1])
    # trunk_std head
    params += make_linear(next(k), trunk_layer_size[-3], trunk_layer_size[-2])
    params += make_linear(next(k), trunk_layer_size[-2], trunk_layer_size[-1])
    return params


def reference_forward(u, y, params, bias_mu, bias_std):
    """Plain-JAX reference of the original (unfused) forward pass."""
    (bW1, bb1, bW2, bb2,
     tW1, tb1, tW2, tb2,
     bmW1, bmb1, bmW2, bmb2,
     bsW1, bsb1, bsW2, bsb2,
     tmW1, tmb1, tmW2, tmb2,
     tsW1, tsb1, tsW2, tsb2) = params

    def lin(x, W, b):
        return x @ W + b

    b = lin(ACT(lin(u, bW1, bb1)), bW2, bb2)
    t = lin(ACT(lin(y, tW1, tb1)), tW2, tb2)
    b_mu = lin(ACT(lin(ACT(b), bmW1, bmb1)), bmW2, bmb2)
    b_std = lin(ACT(lin(ACT(b), bsW1, bsb1)), bsW2, bsb2)
    t_mu = lin(ACT(lin(ACT(t), tmW1, tmb1)), tmW2, tmb2)
    t_std = lin(ACT(lin(ACT(t), tsW1, tsb1)), tsW2, tsb2)
    mu = jnp.sum(b_mu * t_mu, axis=-1, keepdims=True) + bias_mu[0]
    log_std = jnp.sum(b_std * t_std, axis=-1, keepdims=True) + bias_std[0]
    return mu, log_std


if __name__ == "__main__":
    branch_layer_size = [16, 32, 32, 32, 32]
    trunk_layer_size = [8, 32, 32, 32, 32]
    B = 1000          # exercises batch padding: B_pad = 1024, 2 grid steps of 512
    BM = 512          # bigger batch tile per review (cap ~2048 on v5e's 16 MiB scoped VMEM)

    key = jax.random.PRNGKey(0)
    k_u, k_y, k_p, k_bm, k_bs = jax.random.split(key, 5)

    u = jax.random.normal(k_u, (B, branch_layer_size[0]), dtype=jnp.float32)
    y = jax.random.normal(k_y, (B, trunk_layer_size[0]), dtype=jnp.float32)

    params = build_params(k_p, branch_layer_size, trunk_layer_size)
    # bias_mu / bias_std ~ torch.rand(1)
    bias_mu = jax.random.uniform(k_bm, (1,), dtype=jnp.float32)
    bias_std = jax.random.uniform(k_bs, (1,), dtype=jnp.float32)

    mu_ref, log_std_ref = reference_forward(u, y, params, bias_mu, bias_std)

    # --- f32 path: tight check of the fused packing / lane-dense dataflow ---
    packed_f32 = pack_params(params, bias_mu, bias_std, dtype=jnp.float32)
    mu, log_std = prob_deeponet_forward(u, y, packed_f32, block_m=BM)
    jax.block_until_ready((mu, log_std))
    assert mu.shape == (B, 1) and log_std.shape == (B, 1)
    assert jnp.allclose(mu, mu_ref, atol=1e-3, rtol=1e-3)
    assert jnp.allclose(log_std, log_std_ref, atol=1e-3, rtol=1e-3)

    # --- bf16 path (performance default on v6e/v7x): looser, norm-based check ---
    packed_bf16 = pack_params(params, bias_mu, bias_std, dtype=jnp.bfloat16)
    mu_b, log_std_b = prob_deeponet_forward(u, y, packed_bf16, block_m=BM)
    jax.block_until_ready((mu_b, log_std_b))
    rel_mu = jnp.linalg.norm(mu_b - mu_ref) / jnp.linalg.norm(mu_ref)
    rel_ls = jnp.linalg.norm(log_std_b - log_std_ref) / jnp.linalg.norm(log_std_ref)
    assert float(rel_mu) < 6e-2 and float(rel_ls) < 6e-2

    # TODO(synk): optional feature-major (batch-on-lanes) dataflow would further
    # raise MXU lane occupancy on v6e/v7x, but the EUP tanh slot is the expected
    # ceiling at these layer widths so it is not implemented here.

    print("KERNEL_OK")
</pallas_src>

<mosaic_0001>
module attributes {stable_mosaic.version = 11 : i64} {
  func.func @prob_deeponet_kernel(%arg0: i32, %arg1: memref<512x16xf32, #tpu.memory_space<vmem>>, %arg2: memref<512x8xf32, #tpu.memory_space<vmem>>, %arg3: memref<16x64xf32, #tpu.memory_space<vmem>>, %arg4: memref<8x64xf32, #tpu.memory_space<vmem>>, %arg5: memref<1x64xf32, #tpu.memory_space<vmem>>, %arg6: memref<64x64xf32, #tpu.memory_space<vmem>>, %arg7: memref<1x64xf32, #tpu.memory_space<vmem>>, %arg8: memref<64x128xf32, #tpu.memory_space<vmem>>, %arg9: memref<1x128xf32, #tpu.memory_space<vmem>>, %arg10: memref<128x128xf32, #tpu.memory_space<vmem>>, %arg11: memref<1x128xf32, #tpu.memory_space<vmem>>, %arg12: memref<2x64xf32, #tpu.memory_space<vmem>>, %arg13: memref<2x1xf32, #tpu.memory_space<vmem>>, %arg14: memref<2x512xf32, #tpu.memory_space<vmem>>) attributes {dimension_semantics = [#tpu.dimension_semantics<parallel>], iteration_bounds = array<i64: 2>, scalar_prefetch = 0 : i64, scratch_operands = 0 : i64, tpu.core_type = #tpu.core_type<tc>, window_params = [{transform_indices = @transform_0, window_bounds = array<i64: 512, 16>}, {transform_indices = @transform_1, window_bounds = array<i64: 512, 8>}, {pipeline_mode = #tpu.pipeline_mode<synchronous>, transform_indices = @transform_2, window_bounds = array<i64: 16, 64>}, {pipeline_mode = #tpu.pipeline_mode<synchronous>, transform_indices = @transform_3, window_bounds = array<i64: 8, 64>}, {pipeline_mode = #tpu.pipeline_mode<synchronous>, transform_indices = @transform_4, window_bounds = array<i64: 1, 64>}, {pipeline_mode = #tpu.pipeline_mode<synchronous>, transform_indices = @transform_5, window_bounds = array<i64: 64, 64>}, {pipeline_mode = #tpu.pipeline_mode<synchronous>, transform_indices = @transform_6, window_bounds = array<i64: 1, 64>}, {pipeline_mode = #tpu.pipeline_mode<synchronous>, transform_indices = @transform_7, window_bounds = array<i64: 64, 128>}, {pipeline_mode = #tpu.pipeline_mode<synchronous>, transform_indices = @transform_8, window_bounds = array<i64: 1, 128>}, {pipeline_mode = #tpu.pipeline_mode<synchronous>, transform_indices = @transform_9, window_bounds = array<i64: 128, 128>}, {pipeline_mode = #tpu.pipeline_mode<synchronous>, transform_indices = @transform_10, window_bounds = array<i64: 1, 128>}, {pipeline_mode = #tpu.pipeline_mode<synchronous>, transform_indices = @transform_11, window_bounds = array<i64: 2, 64>}, {pipeline_mode = #tpu.pipeline_mode<synchronous>, transform_indices = @transform_12, window_bounds = array<i64: 2, 1>}, {transform_indices = @transform_13, window_bounds = array<i64: 2, 512>}]} {
    %c0 = arith.constant 0 : index
    %c0_0 = arith.constant 0 : index
    %0 = vector.load %arg1[%c0, %c0_0] : memref<512x16xf32, #tpu.memory_space<vmem>>, vector<512x16xf32>
    %c0_1 = arith.constant 0 : index
    %c0_2 = arith.constant 0 : index
    %1 = vector.load %arg2[%c0_1, %c0_2] : memref<512x8xf32, #tpu.memory_space<vmem>>, vector<512x8xf32>
    %c0_3 = arith.constant 0 : index
    %c0_4 = arith.constant 0 : index
    %2 = vector.load %arg3[%c0_3, %c0_4] : memref<16x64xf32, #tpu.memory_space<vmem>>, vector<16x64xf32>
    %cst = arith.constant dense<0.000000e+00> : vector<512x64xf32>
    %3 = tpu.matmul %0, %2, %cst {dimension_numbers = #tpu.dot_dimension_numbers<[1], [0], [0], [1], [0, 0, 1, 1], [], []>} : vector<512x16xf32>, vector<16x64xf32>, vector<512x64xf32> -> vector<512x64xf32>
    %c0_5 = arith.constant 0 : index
    %c0_6 = arith.constant 0 : index
    %4 = vector.load %arg4[%c0_5, %c0_6] : memref<8x64xf32, #tpu.memory_space<vmem>>, vector<8x64xf32>
    %cst_7 = arith.constant dense<0.000000e+00> : vector<512x64xf32>
    %5 = tpu.matmul %1, %4, %cst_7 {dimension_numbers = #tpu.dot_dimension_numbers<[1], [0], [0], [1], [0, 0, 1, 1], [], []>} : vector<512x8xf32>, vector<8x64xf32>, vector<512x64xf32> -> vector<512x64xf32>
    %6 = arith.addf %3, %5 : vector<512x64xf32>
    %c0_8 = arith.constant 0 : index
    %c0_9 = arith.constant 0 : index
    %7 = vector.load %arg5[%c0_8, %c0_9] : memref<1x64xf32, #tpu.memory_space<vmem>>, vector<1x64xf32>
    %8 = vector.broadcast %7 : vector<1x64xf32> to vector<512x64xf32>
    %9 = arith.addf %6, %8 : vector<512x64xf32>
    %10 = math.tanh %9 : vector<512x64xf32>
    %c0_10 = arith.constant 0 : index
    %c0_11 = arith.constant 0 : index
    %11 = vector.load %arg6[%c0_10, %c0_11] : memref<64x64xf32, #tpu.memory_space<vmem>>, vector<64x64xf32>
    %cst_12 = arith.constant dense<0.000000e+00> : vector<512x64xf32>
    %12 = tpu.matmul %10, %11, %cst_12 {dimension_numbers = #tpu.dot_dimension_numbers<[1], [0], [0], [1], [0, 0, 1, 1], [], []>} : vector<512x64xf32>, vector<64x64xf32>, vector<512x64xf32> -> vector<512x64xf32>
    %c0_13 = arith.constant 0 : index
    %c0_14 = arith.constant 0 : index
    %13 = vector.load %arg7[%c0_13, %c0_14] : memref<1x64xf32, #tpu.memory_space<vmem>>, vector<1x64xf32>
    %14 = vector.broadcast %13 : vector<1x64xf32> to vector<512x64xf32>
    %15 = arith.addf %12, %14 : vector<512x64xf32>
    %16 = math.tanh %15 : vector<512x64xf32>
    %c0_15 = arith.constant 0 : index
    %c0_16 = arith.constant 0 : index
    %17 = vector.load %arg8[%c0_15, %c0_16] : memref<64x128xf32, #tpu.memory_space<vmem>>, vector<64x128xf32>
    %cst_17 = arith.constant dense<0.000000e+00> : vector<512x128xf32>
    %18 = tpu.matmul %16, %17, %cst_17 {dimension_numbers = #tpu.dot_dimension_numbers<[1], [0], [0], [1], [0, 0, 1, 1], [], []>} : vector<512x64xf32>, vector<64x128xf32>, vector<512x128xf32> -> vector<512x128xf32>
    %c0_18 = arith.constant 0 : index
    %c0_19 = arith.constant 0 : index
    %19 = vector.load %arg9[%c0_18, %c0_19] : memref<1x128xf32, #tpu.memory_space<vmem>>, vector<1x128xf32>
    %20 = vector.broadcast %19 : vector<1x128xf32> to vector<512x128xf32>
    %21 = arith.addf %18, %20 : vector<512x128xf32>
    %22 = math.tanh %21 : vector<512x128xf32>
    %c0_20 = arith.constant 0 : index
    %c0_21 = arith.constant 0 : index
    %23 = vector.load %arg10[%c0_20, %c0_21] : memref<128x128xf32, #tpu.memory_space<vmem>>, vector<128x128xf32>
    %cst_22 = arith.constant dense<0.000000e+00> : vector<512x128xf32>
    %24 = tpu.matmul %22, %23, %cst_22 {dimension_numbers = #tpu.dot_dimension_numbers<[1], [0], [0], [1], [0, 0, 1, 1], [], []>} : vector<512x128xf32>, vector<128x128xf32>, vector<512x128xf32> -> vector<512x128xf32>
    %c0_23 = arith.constant 0 : index
    %c0_24 = arith.constant 0 : index
    %25 = vector.load %arg11[%c0_23, %c0_24] : memref<1x128xf32, #tpu.memory_space<vmem>>, vector<1x128xf32>
    %26 = vector.broadcast %25 : vector<1x128xf32> to vector<512x128xf32>
    %27 = arith.addf %24, %26 : vector<512x128xf32>
    %28 = vector.extract_strided_slice %27 {offsets = [0, 0], sizes = [512, 64], strides = [1, 1]} : vector<512x128xf32> to vector<512x64xf32>
    %29 = vector.extract_strided_slice %27 {offsets = [0, 64], sizes = [512, 64], strides = [1, 1]} : vector<512x128xf32> to vector<512x64xf32>
    %30 = arith.mulf %28, %29 : vector<512x64xf32>
    %c0_25 = arith.constant 0 : index
    %c0_26 = arith.constant 0 : index
    %31 = vector.load %arg12[%c0_25, %c0_26] : memref<2x64xf32, #tpu.memory_space<vmem>>, vector<2x64xf32>
    %cst_27 = arith.constant dense<0.000000e+00> : vector<2x512xf32>
    %32 = tpu.matmul %31, %30, %cst_27 {dimension_numbers = #tpu.dot_dimension_numbers<[1], [1], [0], [0], [0, 0, 1, 0], [], []>} : vector<2x64xf32>, vector<512x64xf32>, vector<2x512xf32> -> vector<2x512xf32>
    %c0_28 = arith.constant 0 : index
    %c0_29 = arith.constant 0 : index
    %33 = vector.load %arg13[%c0_28, %c0_29] : memref<2x1xf32, #tpu.memory_space<vmem>>, vector<2x1xf32>
    %34 = vector.broadcast %33 : vector<2x1xf32> to vector<2x512xf32>
    %35 = arith.addf %32, %34 : vector<2x512xf32>
    %c0_30 = arith.constant 0 : index
    %c0_31 = arith.constant 0 : index
    %36 = vector.load %arg14[%c0_30, %c0_31] : memref<2x512xf32, #tpu.memory_space<vmem>>, vector<2x512xf32>
    tpu.vector_store %arg14[%c0_30, %c0_31], %35 {strides = array<i32>} : memref<2x512xf32, #tpu.memory_space<vmem>>, vector<2x512xf32>,
    return
  }
  func.func @transform_0(%arg0: i32) -> (i32, i32) {
    %c0_i32 = arith.constant 0 : i32
    %c0_i32_0 = arith.constant 0 : i32
    return %arg0, %c0_i32 : i32, i32
  }
  func.func @transform_1(%arg0: i32) -> (i32, i32) {
    %c0_i32 = arith.constant 0 : i32
    %c0_i32_0 = arith.constant 0 : i32
    return %arg0, %c0_i32 : i32, i32
  }
  func.func @transform_2(%arg0: i32) -> (i32, i32) {
    %c0_i32 = arith.constant 0 : i32
    %c0_i32_0 = arith.constant 0 : i32
    %c0_i32_1 = arith.constant 0 : i32
    return %c0_i32, %c0_i32_0 : i32, i32
  }
  func.func @transform_3(%arg0: i32) -> (i32, i32) {
    %c0_i32 = arith.constant 0 : i32
    %c0_i32_0 = arith.constant 0 : i32
    %c0_i32_1 = arith.constant 0 : i32
    return %c0_i32, %c0_i32_0 : i32, i32
  }
  func.func @transform_4(%arg0: i32) -> (i32, i32) {
    %c0_i32 = arith.constant 0 : i32
    %c0_i32_0 = arith.constant 0 : i32
    %c0_i32_1 = arith.constant 0 : i32
    return %c0_i32, %c0_i32_0 : i32, i32
  }
  func.func @transform_5(%arg0: i32) -> (i32, i32) {
    %c0_i32 = arith.constant 0 : i32
    %c0_i32_0 = arith.constant 0 : i32
    %c0_i32_1 = arith.constant 0 : i32
    return %c0_i32, %c0_i32_0 : i32, i32
  }
  func.func @transform_6(%arg0: i32) -> (i32, i32) {
    %c0_i32 = arith.constant 0 : i32
    %c0_i32_0 = arith.constant 0 : i32
    %c0_i32_1 = arith.constant 0 : i32
    return %c0_i32, %c0_i32_0 : i32, i32
  }
  func.func @transform_7(%arg0: i32) -> (i32, i32) {
    %c0_i32 = arith.constant 0 : i32
    %c0_i32_0 = arith.constant 0 : i32
    %c0_i32_1 = arith.constant 0 : i32
    return %c0_i32, %c0_i32_0 : i32, i32
  }
  func.func @transform_8(%arg0: i32) -> (i32, i32) {
    %c0_i32 = arith.constant 0 : i32
    %c0_i32_0 = arith.constant 0 : i32
    %c0_i32_1 = arith.constant 0 : i32
    return %c0_i32, %c0_i32_0 : i32, i32
  }
  func.func @transform_9(%arg0: i32) -> (i32, i32) {
    %c0_i32 = arith.constant 0 : i32
    %c0_i32_0 = arith.constant 0 : i32
    %c0_i32_1 = arith.constant 0 : i32
    return %c0_i32, %c0_i32_0 : i32, i32
  }
  func.func @transform_10(%arg0: i32) -> (i32, i32) {
    %c0_i32 = arith.constant 0 : i32
    %c0_i32_0 = arith.constant 0 : i32
    %c0_i32_1 = arith.constant 0 : i32
    return %c0_i32, %c0_i32_0 : i32, i32
  }
  func.func @transform_11(%arg0: i32) -> (i32, i32) {
    %c0_i32 = arith.constant 0 : i32
    %c0_i32_0 = arith.constant 0 : i32
    %c0_i32_1 = arith.constant 0 : i32
    return %c0_i32, %c0_i32_0 : i32, i32
  }
  func.func @transform_12(%arg0: i32) -> (i32, i32) {
    %c0_i32 = arith.constant 0 : i32
    %c0_i32_0 = arith.constant 0 : i32
    %c0_i32_1 = arith.constant 0 : i32
    return %c0_i32, %c0_i32_0 : i32, i32
  }
  func.func @transform_13(%arg0: i32) -> (i32, i32) {
    %c0_i32 = arith.constant 0 : i32
    %c0_i32_0 = arith.constant 0 : i32
    return %c0_i32, %arg0 : i32, i32
  }
}

</mosaic_0001>

<llo_original>
// kernel: prob_deeponet_forward.1
$region0: #{prob_deeponet_forward.1}
  #allocation0 [shape = 'u32[]', space=smem, size = 0x4, offset = 0x4, fixed_abs, tag = 'smem constant byte address 0x4 - core index']
  #allocation1 [shape = 'u32[144,128]{1,0:T(1,128)}', space=vmem, size = 0x12000, scoped, tag = 'internal scratch']
  %s0 = inlined_call_operand.vmem [shape: f32[1024,16], index: 0, kind: input, shape index: {}]
  %s1 = inlined_call_operand.vmem [shape: f32[1024,8], index: 1, kind: input, shape index: {}]
  %s2 = inlined_call_operand.vmem [shape: f32[16,64], index: 2, kind: input, shape index: {}]
  %s3 = inlined_call_operand.vmem [shape: f32[8,64], index: 3, kind: input, shape index: {}]
  %s4 = inlined_call_operand.vmem [shape: f32[1,64], index: 4, kind: input, shape index: {}]
  %s5 = inlined_call_operand.vmem [shape: f32[64,64], index: 5, kind: input, shape index: {}]
  %s6 = inlined_call_operand.vmem [shape: f32[1,64], index: 6, kind: input, shape index: {}]
  %s7 = inlined_call_operand.vmem [shape: f32[64,128], index: 7, kind: input, shape index: {}]
  %s8 = inlined_call_operand.vmem [shape: f32[1,128], index: 8, kind: input, shape index: {}]
  %s9 = inlined_call_operand.vmem [shape: f32[128,128], index: 9, kind: input, shape index: {}]
  %s10 = inlined_call_operand.vmem [shape: f32[1,128], index: 10, kind: input, shape index: {}]
  %s11 = inlined_call_operand.vmem [shape: f32[2,64], index: 11, kind: input, shape index: {}]
  %s12 = inlined_call_operand.vmem [shape: f32[2,1], index: 12, kind: input, shape index: {}]
  %s13 = inlined_call_operand.vmem [shape: f32[2,1024], index: 13, kind: output, shape index: {}]
  %s14 = sld [smem:[#allocation0]]
  $region85: #{prob_deeponet_forward.1} parent=0
    _
  %s16 = ssub.s32 1, %s14
  %s17 = scalar_select 0, %s16, %s14
  loop: start=0, step=1, limit=4
  $region2: #{prob_deeponet_forward.1} parent=0 // loop_pre_header
    _
  $region3: #{prob_deeponet_forward.1} parent=0 // loop_header
    %s19 = sphi 0, %s23
    %p20 = scmp.ge.s32.totalorder %s19, 4
    %s29 = sphi 0, %s31
    %s32 = sphi 0, %s29
    %s33 = sphi 0, %s32
    %s49 = sphi 0, %s33
    %s55 = sphi 0, %s57
    %s58 = sphi 0, %s55
    %s59 = sphi 0, %s58
    %s75 = sphi 0, %s59
    %s79 = sphi 0, %s79
    %s81 = sphi 0, %s79
    %s82 = sphi 0, %s81
    %s96 = sphi 0, %s82
    %s100 = sphi 0, %s100
    %s102 = sphi 0, %s100
    %s103 = sphi 0, %s102
    %s117 = sphi 0, %s103
    %s121 = sphi 0, %s121
    %s123 = sphi 0, %s121
    %s124 = sphi 0, %s123
    %s138 = sphi 0, %s124
    %s142 = sphi 0, %s142
    %s144 = sphi 0, %s142
    %s145 = sphi 0, %s144
    %s159 = sphi 0, %s145
    %s163 = sphi 0, %s163
    %s165 = sphi 0, %s163
    %s166 = sphi 0, %s165
    %s180 = sphi 0, %s166
    %s184 = sphi 0, %s184
    %s186 = sphi 0, %s184
    %s187 = sphi 0, %s186
    %s201 = sphi 0, %s187
    %s205 = sphi 0, %s205
    %s207 = sphi 0, %s205
    %s208 = sphi 0, %s207
    %s222 = sphi 0, %s208
    %s226 = sphi 0, %s226
    %s228 = sphi 0, %s226
    %s229 = sphi 0, %s228
    %s243 = sphi 0, %s229
    %s247 = sphi 0, %s247
    %s249 = sphi 0, %s247
    %s250 = sphi 0, %s249
    %s264 = sphi 0, %s250
    %s268 = sphi 0, %s268
    %s270 = sphi 0, %s268
    %s271 = sphi 0, %s270
    %s285 = sphi 0, %s271
    %s289 = sphi 0, %s289
    %s291 = sphi 0, %s289
    %s292 = sphi 0, %s291
    %s306 = sphi 0, %s292
    %s312 = sphi 0, %s314
    %s315 = sphi 0, %s312
    %s316 = sphi 0, %s315
    %s332 = sphi 0, %s316
  $region4: #{prob_deeponet_forward.1} parent=0 // loop_header_branch
    %22 = sbr.rel (%p20) target = $region8
  $region5: #{prob_deeponet_forward.1} parent=0 // loop_body
    %s24 = ssub.s32 %s19, 1
    %s25 = ssub.s32 %s19, 2
    %s26 = sadd.s32 %s19, 1
    %s27 = ssub.s32 %s19, %s26
    %p28 = scmp.eq.s32.totalorder %s27, 0
    %s30 = sadd.s32 %s29, 1
    %s31 = scalar_select %p28, %s29, %s30
    %p34 = pneg %p28
    %p35 = scmp.eq.s32.totalorder %s19, 1
    %p36 = por %p34, %p35
    %p37 = scmp.ne.s32.totalorder %s29, %s32
    %p38 = scmp.eq.s32.totalorder %s19, 0
    %p39 = por %p37, %p38
    %p40 = scmp.ne.s32.totalorder %s29, %s32
    %p41 = scmp.eq.s32.totalorder %s24, 1
    %p42 = por %p40, %p41
    %p43 = scmp.ne.s32.totalorder %s32, %s33
    %p44 = scmp.eq.s32.totalorder %s24, 0
    %p45 = por %p43, %p44
    %p46 = scmp.ne.s32.totalorder %s32, %s33
    %p47 = scmp.eq.s32.totalorder %s25, 1
    %p48 = por %p46, %p47
    %p50 = scmp.ne.s32.totalorder %s33, %s49
    %p51 = scmp.eq.s32.totalorder %s25, 0
    %p52 = por %p50, %p51
    %s53 = ssub.s32 %s19, %s26
    %p54 = scmp.eq.s32.totalorder %s53, 0
    %s56 = sadd.s32 %s55, 1
    %s57 = scalar_select %p54, %s55, %s56
    %p60 = pneg %p54
    %p61 = scmp.eq.s32.totalorder %s19, 1
    %p62 = por %p60, %p61
    %p63 = scmp.ne.s32.totalorder %s55, %s58
    %p64 = scmp.eq.s32.totalorder %s19, 0
    %p65 = por %p63, %p64
    %p66 = scmp.ne.s32.totalorder %s55, %s58
    %p67 = scmp.eq.s32.totalorder %s24, 1
    %p68 = por %p66, %p67
    %p69 = scmp.ne.s32.totalorder %s58, %s59
    %p70 = scmp.eq.s32.totalorder %s24, 0
    %p71 = por %p69, %p70
    %p72 = scmp.ne.s32.totalorder %s58, %s59
    %p73 = scmp.eq.s32.totalorder %s25, 1
    %p74 = por %p72, %p73
    %p76 = scmp.ne.s32.totalorder %s59, %s75
    %p77 = scmp.eq.s32.totalorder %s25, 0
    %p78 = por %p76, %p77
    %s80 = sadd.s32 %s79, 1
    %p83 = scmp.eq.s32.totalorder %s19, 1
    %p84 = scmp.ne.s32.totalorder %s79, %s81
    %p85 = scmp.eq.s32.totalorder %s19, 0
    %p86 = por %p84, %p85
    %p87 = scmp.ne.s32.totalorder %s79, %s81
    %p88 = scmp.eq.s32.totalorder %s24, 1
    %p89 = por %p87, %p88
    %p90 = scmp.ne.s32.totalorder %s81, %s82
    %p91 = scmp.eq.s32.totalorder %s24, 0
    %p92 = por %p90, %p91
    %p93 = scmp.ne.s32.totalorder %s81, %s82
    %p94 = scmp.eq.s32.totalorder %s25, 1
    %p95 = por %p93, %p94
    %p97 = scmp.ne.s32.totalorder %s82, %s96
    %p98 = scmp.eq.s32.totalorder %s25, 0
    %p99 = por %p97, %p98
    %s101 = sadd.s32 %s100, 1
    %p104 = scmp.eq.s32.totalorder %s19, 1
    %p105 = scmp.ne.s32.totalorder %s100, %s102
    %p106 = scmp.eq.s32.totalorder %s19, 0
    %p107 = por %p105, %p106
    %p108 = scmp.ne.s32.totalorder %s100, %s102
    %p109 = scmp.eq.s32.totalorder %s24, 1
    %p110 = por %p108, %p109
    %p111 = scmp.ne.s32.totalorder %s102, %s103
    %p112 = scmp.eq.s32.totalorder %s24, 0
    %p113 = por %p111, %p112
    %p114 = scmp.ne.s32.totalorder %s102, %s103
    %p115 = scmp.eq.s32.totalorder %s25, 1
    %p116 = por %p114, %p115
    %p118 = scmp.ne.s32.totalorder %s103, %s117
    %p119 = scmp.eq.s32.totalorder %s25, 0
    %p120 = por %p118, %p119
    %s122 = sadd.s32 %s121, 1
    %p125 = scmp.eq.s32.totalorder %s19, 1
    %p126 = scmp.ne.s32.totalorder %s121, %s123
    %p127 = scmp.eq.s32.totalorder %s19, 0
    %p128 = por %p126, %p127
    %p129 = scmp.ne.s32.totalorder %s121, %s123
    %p130 = scmp.eq.s32.totalorder %s24, 1
    %p131 = por %p129, %p130
    %p132 = scmp.ne.s32.totalorder %s123, %s124
    %p133 = scmp.eq.s32.totalorder %s24, 0
    %p134 = por %p132, %p133
    %p135 = scmp.ne.s32.totalorder %s123, %s124
    %p136 = scmp.eq.s32.totalorder %s25, 1
    %p137 = por %p135, %p136
    %p139 = scmp.ne.s32.totalorder %s124, %s138
    %p140 = scmp.eq.s32.totalorder %s25, 0
    %p141 = por %p139, %p140
    %s143 = sadd.s32 %s142, 1
    %p146 = scmp.eq.s32.totalorder %s19, 1
    %p147 = scmp.ne.s32.totalorder %s142, %s144
    %p148 = scmp.eq.s32.totalorder %s19, 0
    %p149 = por %p147, %p148
    %p150 = scmp.ne.s32.totalorder %s142, %s144
    %p151 = scmp.eq.s32.totalorder %s24, 1
    %p152 = por %p150, %p151
    %p153 = scmp.ne.s32.totalorder %s144, %s145
    %p154 = scmp.eq.s32.totalorder %s24, 0
    %p155 = por %p153, %p154
    %p156 = scmp.ne.s32.totalorder %s144, %s145
    %p157 = scmp.eq.s32.totalorder %s25, 1
    %p158 = por %p156, %p157
    %p160 = scmp.ne.s32.totalorder %s145, %s159
    %p161 = scmp.eq.s32.totalorder %s25, 0
    %p162 = por %p160, %p161
    %s164 = sadd.s32 %s163, 1
    %p167 = scmp.eq.s32.totalorder %s19, 1
    %p168 = scmp.ne.s32.totalorder %s163, %s165
    %p169 = scmp.eq.s32.totalorder %s19, 0
    %p170 = por %p168, %p169
    %p171 = scmp.ne.s32.totalorder %s163, %s165
    %p172 = scmp.eq.s32.totalorder %s24, 1
    %p173 = por %p171, %p172
    %p174 = scmp.ne.s32.totalorder %s165, %s166
    %p175 = scmp.eq.s32.totalorder %s24, 0
    %p176 = por %p174, %p175
    %p177 = scmp.ne.s32.totalorder %s165, %s166
    %p178 = scmp.eq.s32.totalorder %s25, 1
    %p179 = por %p177, %p178
    %p181 = scmp.ne.s32.totalorder %s166, %s180
    %p182 = scmp.eq.s32.totalorder %s25, 0
    %p183 = por %p181, %p182
    %s185 = sadd.s32 %s184, 1
    %p188 = scmp.eq.s32.totalorder %s19, 1
    %p189 = scmp.ne.s32.totalorder %s184, %s186
    %p190 = scmp.eq.s32.totalorder %s19, 0
    %p191 = por %p189, %p190
    %p192 = scmp.ne.s32.totalorder %s184, %s186
    %p193 = scmp.eq.s32.totalorder %s24, 1
    %p194 = por %p192, %p193
    %p195 = scmp.ne.s32.totalorder %s186, %s187
    %p196 = scmp.eq.s32.totalorder %s24, 0
    %p197 = por %p195, %p196
    %p198 = scmp.ne.s32.totalorder %s186, %s187
    %p199 = scmp.eq.s32.totalorder %s25, 1
    %p200 = por %p198, %p199
    %p202 = scmp.ne.s32.totalorder %s187, %s201
    %p203 = scmp.eq.s32.totalorder %s25, 0
    %p204 = por %p202, %p203
    %s206 = sadd.s32 %s205, 1
    %p209 = scmp.eq.s32.totalorder %s19, 1
    %p210 = scmp.ne.s32.totalorder %s205, %s207
    %p211 = scmp.eq.s32.totalorder %s19, 0
    %p212 = por %p210, %p211
    %p213 = scmp.ne.s32.totalorder %s205, %s207
    %p214 = scmp.eq.s32.totalorder %s24, 1
    %p215 = por %p213, %p214
    %p216 = scmp.ne.s32.totalorder %s207, %s208
    %p217 = scmp.eq.s32.totalorder %s24, 0
    %p218 = por %p216, %p217
    %p219 = scmp.ne.s32.totalorder %s207, %s208
    %p220 = scmp.eq.s32.totalorder %s25, 1
    %p221 = por %p219, %p220
    %p223 = scmp.ne.s32.totalorder %s208, %s222
    %p224 = scmp.eq.s32.totalorder %s25, 0
    %p225 = por %p223, %p224
    %s227 = sadd.s32 %s226, 1
    %p230 = scmp.eq.s32.totalorder %s19, 1
    %p231 = scmp.ne.s32.totalorder %s226, %s228
    %p232 = scmp.eq.s32.totalorder %s19, 0
    %p233 = por %p231, %p232
    %p234 = scmp.ne.s32.totalorder %s226, %s228
    %p235 = scmp.eq.s32.totalorder %s24, 1
    %p236 = por %p234, %p235
    %p237 = scmp.ne.s32.totalorder %s228, %s229
    %p238 = scmp.eq.s32.totalorder %s24, 0
    %p239 = por %p237, %p238
    %p240 = scmp.ne.s32.totalorder %s228, %s229
    %p241 = scmp.eq.s32.totalorder %s25, 1
    %p242 = por %p240, %p241
    %p244 = scmp.ne.s32.totalorder %s229, %s243
    %p245 = scmp.eq.s32.totalorder %s25, 0
    %p246 = por %p244, %p245
    %s248 = sadd.s32 %s247, 1
    %p251 = scmp.eq.s32.totalorder %s19, 1
    %p252 = scmp.ne.s32.totalorder %s247, %s249
    %p253 = scmp.eq.s32.totalorder %s19, 0
    %p254 = por %p252, %p253
    %p255 = scmp.ne.s32.totalorder %s247, %s249
    %p256 = scmp.eq.s32.totalorder %s24, 1
    %p257 = por %p255, %p256
    %p258 = scmp.ne.s32.totalorder %s249, %s250
    %p259 = scmp.eq.s32.totalorder %s24, 0
    %p260 = por %p258, %p259
    %p261 = scmp.ne.s32.totalorder %s249, %s250
    %p262 = scmp.eq.s32.totalorder %s25, 1
    %p263 = por %p261, %p262
    %p265 = scmp.ne.s32.totalorder %s250, %s264
    %p266 = scmp.eq.s32.totalorder %s25, 0
    %p267 = por %p265, %p266
    %s269 = sadd.s32 %s268, 1
    %p272 = scmp.eq.s32.totalorder %s19, 1
    %p273 = scmp.ne.s32.totalorder %s268, %s270
    %p274 = scmp.eq.s32.totalorder %s19, 0
    %p275 = por %p273, %p274
    %p276 = scmp.ne.s32.totalorder %s268, %s270
    %p277 = scmp.eq.s32.totalorder %s24, 1
    %p278 = por %p276, %p277
    %p279 = scmp.ne.s32.totalorder %s270, %s271
    %p280 = scmp.eq.s32.totalorder %s24, 0
    %p281 = por %p279, %p280
    %p282 = scmp.ne.s32.totalorder %s270, %s271
    %p283 = scmp.eq.s32.totalorder %s25, 1
    %p284 = por %p282, %p283
    %p286 = scmp.ne.s32.totalorder %s271, %s285
    %p287 = scmp.eq.s32.totalorder %s25, 0
    %p288 = por %p286, %p287
    %s290 = sadd.s32 %s289, 1
    %p293 = scmp.eq.s32.totalorder %s19, 1
    %p294 = scmp.ne.s32.totalorder %s289, %s291
    %p295 = scmp.eq.s32.totalorder %s19, 0
    %p296 = por %p294, %p295
    %p297 = scmp.ne.s32.totalorder %s289, %s291
    %p298 = scmp.eq.s32.totalorder %s24, 1
    %p299 = por %p297, %p298
    %p300 = scmp.ne.s32.totalorder %s291, %s292
    %p301 = scmp.eq.s32.totalorder %s24, 0
    %p302 = por %p300, %p301
    %p303 = scmp.ne.s32.totalorder %s291, %s292
    %p304 = scmp.eq.s32.totalorder %s25, 1
    %p305 = por %p303, %p304
    %p307 = scmp.ne.s32.totalorder %s292, %s306
    %p308 = scmp.eq.s32.totalorder %s25, 0
    %p309 = por %p307, %p308
    %s310 = ssub.s32 %s19, %s26
    %p311 = scmp.eq.s32.totalorder %s310, 0
    %s313 = sadd.s32 %s312, 1
    %s314 = scalar_select %p311, %s312, %s313
    %p317 = pneg %p311
    %p318 = scmp.eq.s32.totalorder %s19, 1
    %p319 = por %p317, %p318
    %p320 = scmp.ne.s32.totalorder %s312, %s315
    %p321 = scmp.eq.s32.totalorder %s19, 0
    %p322 = por %p320, %p321
    %p323 = scmp.ne.s32.totalorder %s312, %s315
    %p324 = scmp.eq.s32.totalorder %s24, 1
    %p325 = por %p323, %p324
    %p326 = scmp.ne.s32.totalorder %s315, %s316
    %p327 = scmp.eq.s32.totalorder %s24, 0
    %p328 = por %p326, %p327
    %p329 = scmp.ne.s32.totalorder %s315, %s316
    %p330 = scmp.eq.s32.totalorder %s25, 1
    %p331 = por %p329, %p330
    %p333 = scmp.ne.s32.totalorder %s316, %s332
    %p334 = scmp.eq.s32.totalorder %s25, 0
    %p335 = por %p333, %p334
    %p336 = scmp.le.s32.totalorder 1, %s19
    %p337 = scmp.lt.s32.totalorder %s19, 3
    %p338 = pnand %p336, %p337
    %p339 = pneg %p338
    // Predicated region
    $region9: #{prob_deeponet_forward.1} parent=5 // pred_check
      _
    $region10: #{prob_deeponet_forward.1} parent=5 // pred_check_branch
      %341 = sbr.rel (%p338) target = $region12
    $region11: #{prob_deeponet_forward.1} parent=5 // pred_region
      %s342 = ssub.s32 %s19, 1
      // Predicated region
      $region13: #{prob_deeponet_forward.1} parent=11 // pred_check
        %p343 = pneg %p92
      $region14: #{prob_deeponet_forward.1} parent=11 // pred_check_branch
        %345 = sbr.rel (%p343) target = $region16
      $region15: #{prob_deeponet_forward.1} parent=11 // pred_region
        _
      $region16: #{prob_deeponet_forward.1} parent=11 // pred_fallthru
        _
      // Predicated region
      $region17: #{prob_deeponet_forward.1} parent=11 // pred_check
        %p346 = pneg %p113
      $region18: #{prob_deeponet_forward.1} parent=11 // pred_check_branch
        %348 = sbr.rel (%p346) target = $region20
      $region19: #{prob_deeponet_forward.1} parent=11 // pred_region
        _
      $region20: #{prob_deeponet_forward.1} parent=11 // pred_fallthru
        _
      // Predicated region
      $region21: #{prob_deeponet_forward.1} parent=11 // pred_check
        %p349 = pneg %p134
      $region22: #{prob_deeponet_forward.1} parent=11 // pred_check_branch
        %351 = sbr.rel (%p349) target = $region24
      $region23: #{prob_deeponet_forward.1} parent=11 // pred_region
        _
      $region24: #{prob_deeponet_forward.1} parent=11 // pred_fallthru
        _
      // Predicated region
      $region25: #{prob_deeponet_forward.1} parent=11 // pred_check
        %p352 = pneg %p155
      $region26: #{prob_deeponet_forward.1} parent=11 // pred_check_branch
        %354 = sbr.rel (%p352) target = $region28
      $region27: #{prob_deeponet_forward.1} parent=11 // pred_region
        _
      $region28: #{prob_deeponet_forward.1} parent=11 // pred_fallthru
        _
      // Predicated region
      $region29: #{prob_deeponet_forward.1} parent=11 // pred_check
        %p355 = pneg %p176
      $region30: #{prob_deeponet_forward.1} parent=11 // pred_check_branch
        %357 = sbr.rel (%p355) target = $region32
      $region31: #{prob_deeponet_forward.1} parent=11 // pred_region
        _
      $region32: #{prob_deeponet_forward.1} parent=11 // pred_fallthru
        _
      // Predicated region
      $region33: #{prob_deeponet_forward.1} parent=11 // pred_check
        %p358 = pneg %p197
      $region34: #{prob_deeponet_forward.1} parent=11 // pred_check_branch
        %360 = sbr.rel (%p358) target = $region36
      $region35: #{prob_deeponet_forward.1} parent=11 // pred_region
        _
      $region36: #{prob_deeponet_forward.1} parent=11 // pred_fallthru
        _
      // Predicated region
      $region37: #{prob_deeponet_forward.1} parent=11 // pred_check
        %p361 = pneg %p218
      $region38: #{prob_deeponet_forward.1} parent=11 // pred_check_branch
        %363 = sbr.rel (%p361) target = $region40
      $region39: #{prob_deeponet_forward.1} parent=11 // pred_region
        _
      $region40: #{prob_deeponet_forward.1} parent=11 // pred_fallthru
        _
      // Predicated region
      $region41: #{prob_deeponet_forward.1} parent=11 // pred_check
        %p364 = pneg %p239
      $region42: #{prob_deeponet_forward.1} parent=11 // pred_check_branch
        %366 = sbr.rel (%p364) target = $region44
      $region43: #{prob_deeponet_forward.1} parent=11 // pred_region
        _
      $region44: #{prob_deeponet_forward.1} parent=11 // pred_fallthru
        _
      // Predicated region
      $region45: #{prob_deeponet_forward.1} parent=11 // pred_check
        %p367 = pneg %p260
      $region46: #{prob_deeponet_forward.1} parent=11 // pred_check_branch
        %369 = sbr.rel (%p367) target = $region48
      $region47: #{prob_deeponet_forward.1} parent=11 // pred_region
        _
      $region48: #{prob_deeponet_forward.1} parent=11 // pred_fallthru
        _
      // Predicated region
      $region49: #{prob_deeponet_forward.1} parent=11 // pred_check
        %p370 = pneg %p281
      $region50: #{prob_deeponet_forward.1} parent=11 // pred_check_branch
        %372 = sbr.rel (%p370) target = $region52
      $region51: #{prob_deeponet_forward.1} parent=11 // pred_region
        _
      $region52: #{prob_deeponet_forward.1} parent=11 // pred_fallthru
        _
      // Predicated region
      $region53: #{prob_deeponet_forward.1} parent=11 // pred_check
        %p373 = pneg %p302
      $region54: #{prob_deeponet_forward.1} parent=11 // pred_check_branch
        %375 = sbr.rel (%p373) target = $region56
      $region55: #{prob_deeponet_forward.1} parent=11 // pred_region
        _
      $region56: #{prob_deeponet_forward.1} parent=11 // pred_fallthru
        _
    $region12: #{prob_deeponet_forward.1} parent=5 // pred_fallthru
      _
    %p376 = scmp.lt.s32.totalorder %s19, 2
    // Predicated region
    $region57: #{prob_deeponet_forward.1} parent=5 // pred_check
      %p377 = pneg %p376
    $region58: #{prob_deeponet_forward.1} parent=5 // pred_check_branch
      %379 = sbr.rel (%p377) target = $region60
    $region59: #{prob_deeponet_forward.1} parent=5 // pred_region
      // Predicated region
      $region61: #{prob_deeponet_forward.1} parent=59 // pred_check
        %p380 = pneg %p39
      $region62: #{prob_deeponet_forward.1} parent=59 // pred_check_branch
        %382 = sbr.rel (%p380) target = $region64
      $region63: #{prob_deeponet_forward.1} parent=59 // pred_region
        %s383 = smul.u32 64, %s19
        %p384 = scmp.lt.s32.totalorder %s383, 127
        %s385 = scalar_select %p384, %s383, 127
        %s386 = smul.addr %s385, 8
        %s387 = scalar_lea.vmem %s0, %s386
        %s388 = smul.u32 64, %s19
      $region64: #{prob_deeponet_forward.1} parent=59 // pred_fallthru
        _
      // Predicated region
      $region65: #{prob_deeponet_forward.1} parent=59 // pred_check
        %p389 = pneg %p65
      $region66: #{prob_deeponet_forward.1} parent=59 // pred_check_branch
        %391 = sbr.rel (%p389) target = $region68
      $region67: #{prob_deeponet_forward.1} parent=59 // pred_region
        %s392 = smul.u32 64, %s19
        %p393 = scmp.lt.s32.totalorder %s392, 127
        %s394 = scalar_select %p393, %s392, 127
        %s395 = smul.addr %s394, 8
        %s396 = scalar_lea.vmem %s1, %s395
        %s397 = smul.u32 64, %s19
      $region68: #{prob_deeponet_forward.1} parent=59 // pred_fallthru
        _
    $region60: #{prob_deeponet_forward.1} parent=5 // pred_fallthru
      _
    %p398 = scmp.le.s32.totalorder 1, %s19
    %p399 = scmp.lt.s32.totalorder %s19, 3
    %p400 = pnand %p398, %p399
    %p401 = pneg %p400
    // Predicated region
    $region69: #{prob_deeponet_forward.1} parent=5 // pred_check
      _
    $region70: #{prob_deeponet_forward.1} parent=5 // pred_check_branch
      %403 = sbr.rel (%p400) target = $region72
    $region71: #{prob_deeponet_forward.1} parent=5 // pred_region
      %s404 = ssub.s32 %s19, 1
      %s405 = smul.u32 64, %s24
      %p406 = scmp.lt.s32.totalorder %s405, 127
      %s407 = scalar_select %p406, %s405, 127
      %s408 = smul.addr %s407, 8
      %s409 = scalar_lea.vmem %s0, %s408
      %p410 = pneg %p45
      %p411 = pneg %p42
      %s412 = smul.u32 64, %s24
      %p413 = scmp.lt.s32.totalorder %s412, 127
      %s414 = scalar_select %p413, %s412, 127
      %s415 = smul.addr %s414, 8
      %s416 = scalar_lea.vmem %s1, %s415
      %p417 = pneg %p71
      %p418 = pneg %p68
      %p419 = pneg %p92
      %p420 = pneg %p89
      %p421 = pneg %p113
      %p422 = pneg %p110
      %p423 = pneg %p134
      %p424 = pneg %p131
      %p425 = pneg %p155
      %p426 = pneg %p152
      %p427 = pneg %p176
      %p428 = pneg %p173
      %p429 = pneg %p197
      %p430 = pneg %p194
      %p431 = pneg %p218
      %p432 = pneg %p215
      %p433 = pneg %p239
      %p434 = pneg %p236
      %p435 = pneg %p260
      %p436 = pneg %p257
      %p437 = pneg %p281
      %p438 = pneg %p278
      %p439 = pneg %p302
      %p440 = pneg %p299
      %p441 = pneg %p328
      %p442 = pneg %p325
      %s443 = smul.u32 4, %s24
      %p444 = scmp.lt.s32.totalorder %s443, 7
      %s445 = scalar_select %p444, %s443, 7
      %s446 = smul.addr %s445, 2
      %s447 = scalar_lea.vmem %s13, %s446
      %s448 = smul.u32 64, %s24
      %p449 = scmp.lt.s32.totalorder %s448, 127
      %s450 = scalar_select %p449, %s448, 127
      %s451 = smul.addr %s450, 8
      %s452 = scalar_lea.vmem %s0, %s451
      %s453 = smul.u32 64, %s24
      %s454 = smul.u32 64, %s24
      %p455 = scmp.lt.s32.totalorder %s454, 127
      %s456 = scalar_select %p455, %s454, 127
      %s457 = smul.addr %s456, 8
      %s458 = scalar_lea.vmem %s1, %s457
      %s459 = smul.u32 64, %s24
      %s460 = smul.u32 4, %s24
      %p461 = scmp.lt.s32.totalorder %s460, 7
      %s462 = scalar_select %p461, %s460, 7
      %s463 = smul.addr %s462, 2
      %s464 = scalar_lea.vmem %s13, %s463
      %s465 = smul.u32 4, %s24
      %v466 = vld [vmem:[%s452] sm:$0xff]
      %v467 = vld [vmem:[%s452 + $0x8] sm:$0xff]
      %v468 = vld [vmem:[%s452 + $0x10] sm:$0xff]
      %v469 = vld [vmem:[%s452 + $0x18] sm:$0xff]
      %v470 = vld [vmem:[%s452 + $0x20] sm:$0xff]
      %v471 = vld [vmem:[%s452 + $0x28] sm:$0xff]
      %v472 = vld [vmem:[%s452 + $0x30] sm:$0xff]
      %v473 = vld [vmem:[%s452 + $0x38] sm:$0xff]
      %v474 = vld [vmem:[%s452 + $0x40] sm:$0xff]
      %v475 = vld [vmem:[%s452 + $0x48] sm:$0xff]
      %v476 = vld [vmem:[%s452 + $0x50] sm:$0xff]
      %v477 = vld [vmem:[%s452 + $0x58] sm:$0xff]
      %v478 = vld [vmem:[%s452 + $0x60] sm:$0xff]
      %v479 = vld [vmem:[%s452 + $0x68] sm:$0xff]
      %v480 = vld [vmem:[%s452 + $0x70] sm:$0xff]
      %v481 = vld [vmem:[%s452 + $0x78] sm:$0xff]
      %v482 = vld [vmem:[%s452 + $0x80] sm:$0xff]
      %v483 = vld [vmem:[%s452 + $0x88] sm:$0xff]
      %v484 = vld [vmem:[%s452 + $0x90] sm:$0xff]
      %v485 = vld [vmem:[%s452 + $0x98] sm:$0xff]
      %v486 = vld [vmem:[%s452 + $0xa0] sm:$0xff]
      %v487 = vld [vmem:[%s452 + $0xa8] sm:$0xff]
      %v488 = vld [vmem:[%s452 + $0xb0] sm:$0xff]
      %v489 = vld [vmem:[%s452 + $0xb8] sm:$0xff]
      %v490 = vld [vmem:[%s452 + $0xc0] sm:$0xff]
      %v491 = vld [vmem:[%s452 + $0xc8] sm:$0xff]
      %v492 = vld [vmem:[%s452 + $0xd0] sm:$0xff]
      %v493 = vld [vmem:[%s452 + $0xd8] sm:$0xff]
      %v494 = vld [vmem:[%s452 + $0xe0] sm:$0xff]
      %v495 = vld [vmem:[%s452 + $0xe8] sm:$0xff]
      %v496 = vld [vmem:[%s452 + $0xf0] sm:$0xff]
      %v497 = vld [vmem:[%s452 + $0xf8] sm:$0xff]
      %v498 = vld [vmem:[%s452 + $0x100] sm:$0xff]
      %v499 = vld [vmem:[%s452 + $0x108] sm:$0xff]
      %v500 = vld [vmem:[%s452 + $0x110] sm:$0xff]
      %v501 = vld [vmem:[%s452 + $0x118] sm:$0xff]
      %v502 = vld [vmem:[%s452 + $0x120] sm:$0xff]
      %v503 = vld [vmem:[%s452 + $0x128] sm:$0xff]
      %v504 = vld [vmem:[%s452 + $0x130] sm:$0xff]
      %v505 = vld [vmem:[%s452 + $0x138] sm:$0xff]
      %v506 = vld [vmem:[%s452 + $0x140] sm:$0xff]
      %v507 = vld [vmem:[%s452 + $0x148] sm:$0xff]
      %v508 = vld [vmem:[%s452 + $0x150] sm:$0xff]
      %v509 = vld [vmem:[%s452 + $0x158] sm:$0xff]
      %v510 = vld [vmem:[%s452 + $0x160] sm:$0xff]
      %v511 = vld [vmem:[%s452 + $0x168] sm:$0xff]
      %v512 = vld [vmem:[%s452 + $0x170] sm:$0xff]
      %v513 = vld [vmem:[%s452 + $0x178] sm:$0xff]
      %v514 = vld [vmem:[%s452 + $0x180] sm:$0xff]
      %v515 = vld [vmem:[%s452 + $0x188] sm:$0xff]
      %v516 = vld [vmem:[%s452 + $0x190] sm:$0xff]
      %v517 = vld [vmem:[%s452 + $0x198] sm:$0xff]
      %v518 = vld [vmem:[%s452 + $0x1a0] sm:$0xff]
      %v519 = vld [vmem:[%s452 + $0x1a8] sm:$0xff]
      %v520 = vld [vmem:[%s452 + $0x1b0] sm:$0xff]
      %v521 = vld [vmem:[%s452 + $0x1b8] sm:$0xff]
      %v522 = vld [vmem:[%s452 + $0x1c0] sm:$0xff]
      %v523 = vld [vmem:[%s452 + $0x1c8] sm:$0xff]
      %v524 = vld [vmem:[%s452 + $0x1d0] sm:$0xff]
      %v525 = vld [vmem:[%s452 + $0x1d8] sm:$0xff]
      %v526 = vld [vmem:[%s452 + $0x1e0] sm:$0xff]
      %v527 = vld [vmem:[%s452 + $0x1e8] sm:$0xff]
      %v528 = vld [vmem:[%s452 + $0x1f0] sm:$0xff]
      %v529 = vld [vmem:[%s452 + $0x1f8] sm:$0xff]
      %v530 = vld [vmem:[%s458] sm:$0xff]
      %v531 = vld [vmem:[%s458 + $0x8] sm:$0xff]
      %v532 = vld [vmem:[%s458 + $0x10] sm:$0xff]
      %v533 = vld [vmem:[%s458 + $0x18] sm:$0xff]
      %v534 = vld [vmem:[%s458 + $0x20] sm:$0xff]
      %v535 = vld [vmem:[%s458 + $0x28] sm:$0xff]
      %v536 = vld [vmem:[%s458 + $0x30] sm:$0xff]
      %v537 = vld [vmem:[%s458 + $0x38] sm:$0xff]
      %v538 = vld [vmem:[%s458 + $0x40] sm:$0xff]
      %v539 = vld [vmem:[%s458 + $0x48] sm:$0xff]
      %v540 = vld [vmem:[%s458 + $0x50] sm:$0xff]
      %v541 = vld [vmem:[%s458 + $0x58] sm:$0xff]
      %v542 = vld [vmem:[%s458 + $0x60] sm:$0xff]
      %v543 = vld [vmem:[%s458 + $0x68] sm:$0xff]
      %v544 = vld [vmem:[%s458 + $0x70] sm:$0xff]
      %v545 = vld [vmem:[%s458 + $0x78] sm:$0xff]
      %v546 = vld [vmem:[%s458 + $0x80] sm:$0xff]
      %v547 = vld [vmem:[%s458 + $0x88] sm:$0xff]
      %v548 = vld [vmem:[%s458 + $0x90] sm:$0xff]
      %v549 = vld [vmem:[%s458 + $0x98] sm:$0xff]
      %v550 = vld [vmem:[%s458 + $0xa0] sm:$0xff]
      %v551 = vld [vmem:[%s458 + $0xa8] sm:$0xff]
      %v552 = vld [vmem:[%s458 + $0xb0] sm:$0xff]
      %v553 = vld [vmem:[%s458 + $0xb8] sm:$0xff]
      %v554 = vld [vmem:[%s458 + $0xc0] sm:$0xff]
      %v555 = vld [vmem:[%s458 + $0xc8] sm:$0xff]
      %v556 = vld [vmem:[%s458 + $0xd0] sm:$0xff]
      %v557 = vld [vmem:[%s458 + $0xd8] sm:$0xff]
      %v558 = vld [vmem:[%s458 + $0xe0] sm:$0xff]
      %v559 = vld [vmem:[%s458 + $0xe8] sm:$0xff]
      %v560 = vld [vmem:[%s458 + $0xf0] sm:$0xff]
      %v561 = vld [vmem:[%s458 + $0xf8] sm:$0xff]
      %v562 = vld [vmem:[%s458 + $0x100] sm:$0xff]
      %v563 = vld [vmem:[%s458 + $0x108] sm:$0xff]
      %v564 = vld [vmem:[%s458 + $0x110] sm:$0xff]
      %v565 = vld [vmem:[%s458 + $0x118] sm:$0xff]
      %v566 = vld [vmem:[%s458 + $0x120] sm:$0xff]
      %v567 = vld [vmem:[%s458 + $0x128] sm:$0xff]
      %v568 = vld [vmem:[%s458 + $0x130] sm:$0xff]
      %v569 = vld [vmem:[%s458 + $0x138] sm:$0xff]
      %v570 = vld [vmem:[%s458 + $0x140] sm:$0xff]
      %v571 = vld [vmem:[%s458 + $0x148] sm:$0xff]
      %v572 = vld [vmem:[%s458 + $0x150] sm:$0xff]
      %v573 = vld [vmem:[%s458 + $0x158] sm:$0xff]
      %v574 = vld [vmem:[%s458 + $0x160] sm:$0xff]
      %v575 = vld [vmem:[%s458 + $0x168] sm:$0xff]
      %v576 = vld [vmem:[%s458 + $0x170] sm:$0xff]
      %v577 = vld [vmem:[%s458 + $0x178] sm:$0xff]
      %v578 = vld [vmem:[%s458 + $0x180] sm:$0xff]
      %v579 = vld [vmem:[%s458 + $0x188] sm:$0xff]
      %v580 = vld [vmem:[%s458 + $0x190] sm:$0xff]
      %v581 = vld [vmem:[%s458 + $0x198] sm:$0xff]
      %v582 = vld [vmem:[%s458 + $0x1a0] sm:$0xff]
      %v583 = vld [vmem:[%s458 + $0x1a8] sm:$0xff]
      %v584 = vld [vmem:[%s458 + $0x1b0] sm:$0xff]
      %v585 = vld [vmem:[%s458 + $0x1b8] sm:$0xff]
      %v586 = vld [vmem:[%s458 + $0x1c0] sm:$0xff]
      %v587 = vld [vmem:[%s458 + $0x1c8] sm:$0xff]
      %v588 = vld [vmem:[%s458 + $0x1d0] sm:$0xff]
      %v589 = vld [vmem:[%s458 + $0x1d8] sm:$0xff]
      %v590 = vld [vmem:[%s458 + $0x1e0] sm:$0xff]
      %v591 = vld [vmem:[%s458 + $0x1e8] sm:$0xff]
      %v592 = vld [vmem:[%s458 + $0x1f0] sm:$0xff]
      %v593 = vld [vmem:[%s458 + $0x1f8] sm:$0xff]
      %v594 = vld [vmem:[%s2] sm:$0xff]
      %v595 = vld [vmem:[%s2 + $0x8] sm:$0xff]
      %v596 = vld [vmem:[%s3] sm:$0xff]
      %vm597 = vcmask 64512
      %v599 = vsel %vm597, %v530, 0
      %v602 = vsel %vm597, %v531, 0
      %v605 = vsel %vm597, %v532, 0
      %v608 = vsel %vm597, %v533, 0
      %v611 = vsel %vm597, %v534, 0
      %v614 = vsel %vm597, %v535, 0
      %v617 = vsel %vm597, %v536, 0
      %v620 = vsel %vm597, %v537, 0
      %v623 = vsel %vm597, %v538, 0
      %v626 = vsel %vm597, %v539, 0
      %v629 = vsel %vm597, %v540, 0
      %v632 = vsel %vm597, %v541, 0
      %v635 = vsel %vm597, %v542, 0
      %v638 = vsel %vm597, %v543, 0
      %v641 = vsel %vm597, %v544, 0
      %v644 = vsel %vm597, %v545, 0
      %v647 = vsel %vm597, %v546, 0
      %v650 = vsel %vm597, %v547, 0
      %v653 = vsel %vm597, %v548, 0
      %v656 = vsel %vm597, %v549, 0
      %v659 = vsel %vm597, %v550, 0
      %v662 = vsel %vm597, %v551, 0
      %v665 = vsel %vm597, %v552, 0
      %v668 = vsel %vm597, %v553, 0
      %v671 = vsel %vm597, %v554, 0
      %v674 = vsel %vm597, %v555, 0
      %v677 = vsel %vm597, %v556, 0
      %v680 = vsel %vm597, %v557, 0
      %v683 = vsel %vm597, %v558, 0
      %v686 = vsel %vm597, %v559, 0
      %v689 = vsel %vm597, %v560, 0
      %v692 = vsel %vm597, %v561, 0
      %v695 = vsel %vm597, %v562, 0
      %v698 = vsel %vm597, %v563, 0
      %v701 = vsel %vm597, %v564, 0
      %v704 = vsel %vm597, %v565, 0
      %v707 = vsel %vm597, %v566, 0
      %v710 = vsel %vm597, %v567, 0
      %v713 = vsel %vm597, %v568, 0
      %v716 = vsel %vm597, %v569, 0
      %v719 = vsel %vm597, %v570, 0
      %v722 = vsel %vm597, %v571, 0
      %v725 = vsel %vm597, %v572, 0
      %v728 = vsel %vm597, %v573, 0
      %v731 = vsel %vm597, %v574, 0
      %v734 = vsel %vm597, %v575, 0
      %v737 = vsel %vm597, %v576, 0
      %v740 = vsel %vm597, %v577, 0
      %v743 = vsel %vm597, %v578, 0
      %v746 = vsel %vm597, %v579, 0
      %v749 = vsel %vm597, %v580, 0
      %v752 = vsel %vm597, %v581, 0
      %v755 = vsel %vm597, %v582, 0
      %v758 = vsel %vm597, %v583, 0
      %v761 = vsel %vm597, %v584, 0
      %v764 = vsel %vm597, %v585, 0
      %v767 = vsel %vm597, %v586, 0
      %v770 = vsel %vm597, %v587, 0
      %v773 = vsel %vm597, %v588, 0
      %v776 = vsel %vm597, %v589, 0
      %v779 = vsel %vm597, %v590, 0
      %v782 = vsel %vm597, %v591, 0
      %v785 = vsel %vm597, %v592, 0
      %v788 = vsel %vm597, %v593, 0
      %790 = vmatprep.subr.mxu0 0.0
      %791 = vmatpush1.msra.mxu0 0.0
      %792 = vmatprep.subr.mxu0 0.0
      %793 = vmatpush1.msra.mxu0 0.0
      %794 = vmatprep.subr.mxu0 0.0
      %795 = vmatpush1.msra.mxu0 0.0
      %796 = vmatprep.subr.mxu0 0.0
      %797 = vmatpush1.msra.mxu0 0.0
      %798 = vmatprep.subr.mxu0 0.0
      %799 = vmatpush1.msra.mxu0 0.0
      %800 = vmatprep.subr.mxu0 0.0
      %801 = vmatpush1.msra.mxu0 0.0
      %802 = vmatprep.subr.mxu0 0.0
      %803 = vmatpush1.msra.mxu0 0.0
      %804 = vmatprep.subr.mxu0 0.0
      %805 = vmatpush1.msra.mxu0 0.0
      %806 = vmatprep.subr.mxu0 0.0
      %807 = vmatpush1.msra.mxu0 0.0
      %808 = vmatprep.subr.mxu0 0.0
      %809 = vmatpush1.msra.mxu0 0.0
      %810 = vmatprep.subr.mxu0 0.0
      %811 = vmatpush1.msra.mxu0 0.0
      %812 = vmatprep.subr.mxu0 0.0
      %813 = vmatpush1.msra.mxu0 0.0
      %814 = vmatprep.subr.mxu0 0.0
      %815 = vmatpush1.msra.mxu0 0.0
      %816 = vmatprep.subr.mxu0 0.0
      %817 = vmatpush1.msra.mxu0 0.0
      %818 = vmatprep.subr.mxu0 0.0
      %819 = vmatpush1.msra.mxu0 0.0
      %820 = vmatprep.subr.mxu0 0.0
      %821 = vmatpush1.msra.mxu0 %v596
      %822 = vmatprep.subr.mxu0 0.0
      %823 = vmatpush2.msra.mxu0 0.0
      %824 = vmatprep.subr.mxu0 0.0
      %825 = vmatpush2.msra.mxu0 0.0
      %826 = vmatprep.subr.mxu0 0.0
      %827 = vmatpush2.msra.mxu0 0.0
      %828 = vmatprep.subr.mxu0 0.0
      %829 = vmatpush2.msra.mxu0 0.0
      %830 = vmatprep.subr.mxu0 0.0
      %831 = vmatpush2.msra.mxu0 0.0
      %832 = vmatprep.subr.mxu0 0.0
      %833 = vmatpush2.msra.mxu0 0.0
      %834 = vmatprep.subr.mxu0 0.0
      %835 = vmatpush2.msra.mxu0 0.0
      %836 = vmatprep.subr.mxu0 0.0
      %837 = vmatpush2.msra.mxu0 0.0
      %838 = vmatprep.subr.mxu0 0.0
      %839 = vmatpush2.msra.mxu0 0.0
      %840 = vmatprep.subr.mxu0 0.0
      %841 = vmatpush2.msra.mxu0 0.0
      %842 = vmatprep.subr.mxu0 0.0
      %843 = vmatpush2.msra.mxu0 0.0
      %844 = vmatprep.subr.mxu0 0.0
      %845 = vmatpush2.msra.mxu0 0.0
      %846 = vmatprep.subr.mxu0 0.0
      %847 = vmatpush2.msra.mxu0 0.0
      %848 = vmatprep.subr.mxu0 0.0
      %849 = vmatpush2.msra.mxu0 0.0
      %850 = vmatprep.subr.mxu0 0.0
      %851 = vmatpush2.msra.mxu0 0.0
      %852 = vmatprep.subr.mxu0 0.0
      %853 = vmatpush2.msra.mxu0 0.0
      %854 = vmatprep.mubr.f32.mxu0 0.0
      %855 = vmatmul.mubr.f32.gmra.mxu0 %v599
      %v856 = vpop.f32.mrf.mxu0
      %v857 = vadd.f32 0.0, %v856
      %v858 = vpop.f32.mrf.mxu0
      %859 = vmatprep.mubr.f32.mxu0 0.0
      %860 = vmatmul.mubr.f32.gmra.mxu0 %v602
      %v861 = vpop.f32.mrf.mxu0
      %v862 = vadd.f32 0.0, %v861
      %v863 = vpop.f32.mrf.mxu0
      %864 = vmatprep.mubr.f32.mxu0 0.0
      %865 = vmatmul.mubr.f32.gmra.mxu0 %v605
      %v866 = vpop.f32.mrf.mxu0
      %v867 = vadd.f32 0.0, %v866
      %v868 = vpop.f32.mrf.mxu0
      %869 = vmatprep.mubr.f32.mxu0 0.0
      %870 = vmatmul.mubr.f32.gmra.mxu0 %v608
      %v871 = vpop.f32.mrf.mxu0
      %v872 = vadd.f32 0.0, %v871
      %v873 = vpop.f32.mrf.mxu0
      %874 = vmatprep.mubr.f32.mxu0 0.0
      %875 = vmatmul.mubr.f32.gmra.mxu0 %v611
      %v876 = vpop.f32.mrf.mxu0
      %v877 = vadd.f32 0.0, %v876
      %v878 = vpop.f32.mrf.mxu0
      %879 = vmatprep.mubr.f32.mxu0 0.0
      %880 = vmatmul.mubr.f32.gmra.mxu0 %v614
      %v881 = vpop.f32.mrf.mxu0
      %v882 = vadd.f32 0.0, %v881
      %v883 = vpop.f32.mrf.mxu0
      %884 = vmatprep.mubr.f32.mxu0 0.0
      %885 = vmatmul.mubr.f32.gmra.mxu0 %v617
      %v886 = vpop.f32.mrf.mxu0
      %v887 = vadd.f32 0.0, %v886
      %v888 = vpop.f32.mrf.mxu0
      %889 = vmatprep.mubr.f32.mxu0 0.0
      %890 = vmatmul.mubr.f32.gmra.mxu0 %v620
      %v891 = vpop.f32.mrf.mxu0
      %v892 = vadd.f32 0.0, %v891
      %v893 = vpop.f32.mrf.mxu0
      %894 = vmatprep.mubr.f32.mxu0 0.0
      %895 = vmatmul.mubr.f32.gmra.mxu0 %v623
      %v896 = vpop.f32.mrf.mxu0
      %v897 = vadd.f32 0.0, %v896
      %v898 = vpop.f32.mrf.mxu0
      %899 = vmatprep.mubr.f32.mxu0 0.0
      %900 = vmatmul.mubr.f32.gmra.mxu0 %v626
      %v901 = vpop.f32.mrf.mxu0
      %v902 = vadd.f32 0.0, %v901
      %v903 = vpop.f32.mrf.mxu0
      %904 = vmatprep.mubr.f32.mxu0 0.0
      %905 = vmatmul.mubr.f32.gmra.mxu0 %v629
      %v906 = vpop.f32.mrf.mxu0
      %v907 = vadd.f32 0.0, %v906
      %v908 = vpop.f32.mrf.mxu0
      %909 = vmatprep.mubr.f32.mxu0 0.0
      %910 = vmatmul.mubr.f32.gmra.mxu0 %v632
      %v911 = vpop.f32.mrf.mxu0
      %v912 = vadd.f32 0.0, %v911
      %v913 = vpop.f32.mrf.mxu0
      %914 = vmatprep.mubr.f32.mxu0 0.0
      %915 = vmatmul.mubr.f32.gmra.mxu0 %v635
      %v916 = vpop.f32.mrf.mxu0
      %v917 = vadd.f32 0.0, %v916
      %v918 = vpop.f32.mrf.mxu0
      %919 = vmatprep.mubr.f32.mxu0 0.0
      %920 = vmatmul.mubr.f32.gmra.mxu0 %v638
      %v921 = vpop.f32.mrf.mxu0
      %v922 = vadd.f32 0.0, %v921
      %v923 = vpop.f32.mrf.mxu0
      %924 = vmatprep.mubr.f32.mxu0 0.0
      %925 = vmatmul.mubr.f32.gmra.mxu0 %v641
      %v926 = vpop.f32.mrf.mxu0
      %v927 = vadd.f32 0.0, %v926
      %v928 = vpop.f32.mrf.mxu0
      %929 = vmatprep.mubr.f32.mxu0 0.0
      %930 = vmatmul.mubr.f32.gmra.mxu0 %v644
      %v931 = vpop.f32.mrf.mxu0
      %v932 = vadd.f32 0.0, %v931
      %v933 = vpop.f32.mrf.mxu0
      %934 = vmatprep.mubr.f32.mxu0 0.0
      %935 = vmatmul.mubr.f32.gmra.mxu0 %v647
      %v936 = vpop.f32.mrf.mxu0
      %v937 = vadd.f32 0.0, %v936
      %v938 = vpop.f32.mrf.mxu0
      %939 = vmatprep.mubr.f32.mxu0 0.0
      %940 = vmatmul.mubr.f32.gmra.mxu0 %v650
      %v941 = vpop.f32.mrf.mxu0
      %v942 = vadd.f32 0.0, %v941
      %v943 = vpop.f32.mrf.mxu0
      %944 = vmatprep.mubr.f32.mxu0 0.0
      %945 = vmatmul.mubr.f32.gmra.mxu0 %v653
      %v946 = vpop.f32.mrf.mxu0
      %v947 = vadd.f32 0.0, %v946
      %v948 = vpop.f32.mrf.mxu0
      %949 = vmatprep.mubr.f32.mxu0 0.0
      %950 = vmatmul.mubr.f32.gmra.mxu0 %v656
      %v951 = vpop.f32.mrf.mxu0
      %v952 = vadd.f32 0.0, %v951
      %v953 = vpop.f32.mrf.mxu0
      %954 = vmatprep.mubr.f32.mxu0 0.0
      %955 = vmatmul.mubr.f32.gmra.mxu0 %v659
      %v956 = vpop.f32.mrf.mxu0
      %v957 = vadd.f32 0.0, %v956
      %v958 = vpop.f32.mrf.mxu0
      %959 = vmatprep.mubr.f32.mxu0 0.0
      %960 = vmatmul.mubr.f32.gmra.mxu0 %v662
      %v961 = vpop.f32.mrf.mxu0
      %v962 = vadd.f32 0.0, %v961
      %v963 = vpop.f32.mrf.mxu0
      %964 = vmatprep.mubr.f32.mxu0 0.0
      %965 = vmatmul.mubr.f32.gmra.mxu0 %v665
      %v966 = vpop.f32.mrf.mxu0
      %v967 = vadd.f32 0.0, %v966
      %v968 = vpop.f32.mrf.mxu0
      %969 = vmatprep.mubr.f32.mxu0 0.0
      %970 = vmatmul.mubr.f32.gmra.mxu0 %v668
      %v971 = vpop.f32.mrf.mxu0
      %v972 = vadd.f32 0.0, %v971
      %v973 = vpop.f32.mrf.mxu0
      %974 = vmatprep.mubr.f32.mxu0 0.0
      %975 = vmatmul.mubr.f32.gmra.mxu0 %v671
      %v976 = vpop.f32.mrf.mxu0
      %v977 = vadd.f32 0.0, %v976
      %v978 = vpop.f32.mrf.mxu0
      %979 = vmatprep.mubr.f32.mxu0 0.0
      %980 = vmatmul.mubr.f32.gmra.mxu0 %v674
      %v981 = vpop.f32.mrf.mxu0
      %v982 = vadd.f32 0.0, %v981
      %v983 = vpop.f32.mrf.mxu0
      %984 = vmatprep.mubr.f32.mxu0 0.0
      %985 = vmatmul.mubr.f32.gmra.mxu0 %v677
      %v986 = vpop.f32.mrf.mxu0
      %v987 = vadd.f32 0.0, %v986
      %v988 = vpop.f32.mrf.mxu0
      %989 = vmatprep.mubr.f32.mxu0 0.0
      %990 = vmatmul.mubr.f32.gmra.mxu0 %v680
      %v991 = vpop.f32.mrf.mxu0
      %v992 = vadd.f32 0.0, %v991
      %v993 = vpop.f32.mrf.mxu0
      %994 = vmatprep.mubr.f32.mxu0 0.0
      %995 = vmatmul.mubr.f32.gmra.mxu0 %v683
      %v996 = vpop.f32.mrf.mxu0
      %v997 = vadd.f32 0.0, %v996
      %v998 = vpop.f32.mrf.mxu0
      %999 = vmatprep.mubr.f32.mxu0 0.0
      %1000 = vmatmul.mubr.f32.gmra.mxu0 %v686
      %v1001 = vpop.f32.mrf.mxu0
      %v1002 = vadd.f32 0.0, %v1001
      %v1003 = vpop.f32.mrf.mxu0
      %1004 = vmatprep.mubr.f32.mxu0 0.0
      %1005 = vmatmul.mubr.f32.gmra.mxu0 %v689
      %v1006 = vpop.f32.mrf.mxu0
      %v1007 = vadd.f32 0.0, %v1006
      %v1008 = vpop.f32.mrf.mxu0
      %1009 = vmatprep.mubr.f32.mxu0 0.0
      %1010 = vmatmul.mubr.f32.gmra.mxu0 %v692
      %v1011 = vpop.f32.mrf.mxu0
      %v1012 = vadd.f32 0.0, %v1011
      %v1013 = vpop.f32.mrf.mxu0
      %1014 = vmatprep.mubr.f32.mxu0 0.0
      %1015 = vmatmul.mubr.f32.gmra.mxu0 %v695
      %v1016 = vpop.f32.mrf.mxu0
      %v1017 = vadd.f32 0.0, %v1016
      %v1018 = vpop.f32.mrf.mxu0
      %1019 = vmatprep.mubr.f32.mxu0 0.0
      %1020 = vmatmul.mubr.f32.gmra.mxu0 %v698
      %v1021 = vpop.f32.mrf.mxu0
      %v1022 = vadd.f32 0.0, %v1021
      %v1023 = vpop.f32.mrf.mxu0
      %1024 = vmatprep.mubr.f32.mxu0 0.0
      %1025 = vmatmul.mubr.f32.gmra.mxu0 %v701
      %v1026 = vpop.f32.mrf.mxu0
      %v1027 = vadd.f32 0.0, %v1026
      %v1028 = vpop.f32.mrf.mxu0
      %1029 = vmatprep.mubr.f32.mxu0 0.0
      %1030 = vmatmul.mubr.f32.gmra.mxu0 %v704
      %v1031 = vpop.f32.mrf.mxu0
      %v1032 = vadd.f32 0.0, %v1031
      %v1033 = vpop.f32.mrf.mxu0
      %1034 = vmatprep.mubr.f32.mxu0 0.0
      %1035 = vmatmul.mubr.f32.gmra.mxu0 %v707
      %v1036 = vpop.f32.mrf.mxu0
      %v1037 = vadd.f32 0.0, %v1036
      %v1038 = vpop.f32.mrf.mxu0
      %1039 = vmatprep.mubr.f32.mxu0 0.0
      %1040 = vmatmul.mubr.f32.gmra.mxu0 %v710
      %v1041 = vpop.f32.mrf.mxu0
      %v1042 = vadd.f32 0.0, %v1041
      %v1043 = vpop.f32.mrf.mxu0
      %1044 = vmatprep.mubr.f32.mxu0 0.0
      %1045 = vmatmul.mubr.f32.gmra.mxu0 %v713
      %v1046 = vpop.f32.mrf.mxu0
      %v1047 = vadd.f32 0.0, %v1046
      %v1048 = vpop.f32.mrf.mxu0
      %1049 = vmatprep.mubr.f32.mxu0 0.0
      %1050 = vmatmul.mubr.f32.gmra.mxu0 %v716
      %v1051 = vpop.f32.mrf.mxu0
      %v1052 = vadd.f32 0.0, %v1051
      %v1053 = vpop.f32.mrf.mxu0
      %1054 = vmatprep.mubr.f32.mxu0 0.0
      %1055 = vmatmul.mubr.f32.gmra.mxu0 %v719
      %v1056 = vpop.f32.mrf.mxu0
      %v1057 = vadd.f32 0.0, %v1056
      %v1058 = vpop.f32.mrf.mxu0
      %1059 = vmatprep.mubr.f32.mxu0 0.0
      %1060 = vmatmul.mubr.f32.gmra.mxu0 %v722
      %v1061 = vpop.f32.mrf.mxu0
      %v1062 = vadd.f32 0.0, %v1061
      %v1063 = vpop.f32.mrf.mxu0
      %1064 = vmatprep.mubr.f32.mxu0 0.0
      %1065 = vmatmul.mubr.f32.gmra.mxu0 %v725
      %v1066 = vpop.f32.mrf.mxu0
      %v1067 = vadd.f32 0.0, %v1066
      %v1068 = vpop.f32.mrf.mxu0
      %1069 = vmatprep.mubr.f32.mxu0 0.0
      %1070 = vmatmul.mubr.f32.gmra.mxu0 %v728
      %v1071 = vpop.f32.mrf.mxu0
      %v1072 = vadd.f32 0.0, %v1071
      %v1073 = vpop.f32.mrf.mxu0
      %1074 = vmatprep.mubr.f32.mxu0 0.0
      %1075 = vmatmul.mubr.f32.gmra.mxu0 %v731
      %v1076 = vpop.f32.mrf.mxu0
      %v1077 = vadd.f32 0.0, %v1076
      %v1078 = vpop.f32.mrf.mxu0
      %1079 = vmatprep.mubr.f32.mxu0 0.0
      %1080 = vmatmul.mubr.f32.gmra.mxu0 %v734
      %v1081 = vpop.f32.mrf.mxu0
      %v1082 = vadd.f32 0.0, %v1081
      %v1083 = vpop.f32.mrf.mxu0
      %1084 = vmatprep.mubr.f32.mxu0 0.0
      %1085 = vmatmul.mubr.f32.gmra.mxu0 %v737
      %v1086 = vpop.f32.mrf.mxu0
      %v1087 = vadd.f32 0.0, %v1086
      %v1088 = vpop.f32.mrf.mxu0
      %1089 = vmatprep.mubr.f32.mxu0 0.0
      %1090 = vmatmul.mubr.f32.gmra.mxu0 %v740
      %v1091 = vpop.f32.mrf.mxu0
      %v1092 = vadd.f32 0.0, %v1091
      %v1093 = vpop.f32.mrf.mxu0
      %1094 = vmatprep.mubr.f32.mxu0 0.0
      %1095 = vmatmul.mubr.f32.gmra.mxu0 %v743
      %v1096 = vpop.f32.mrf.mxu0
      %v1097 = vadd.f32 0.0, %v1096
      %v1098 = vpop.f32.mrf.mxu0
      %1099 = vmatprep.mubr.f32.mxu0 0.0
      %1100 = vmatmul.mubr.f32.gmra.mxu0 %v746
      %v1101 = vpop.f32.mrf.mxu0
      %v1102 = vadd.f32 0.0, %v1101
      %v1103 = vpop.f32.mrf.mxu0
      %1104 = vmatprep.mubr.f32.mxu0 0.0
      %1105 = vmatmul.mubr.f32.gmra.mxu0 %v749
      %v1106 = vpop.f32.mrf.mxu0
      %v1107 = vadd.f32 0.0, %v1106
      %v1108 = vpop.f32.mrf.mxu0
      %1109 = vmatprep.mubr.f32.mxu0 0.0
      %1110 = vmatmul.mubr.f32.gmra.mxu0 %v752
      %v1111 = vpop.f32.mrf.mxu0
      %v1112 = vadd.f32 0.0, %v1111
      %v1113 = vpop.f32.mrf.mxu0
      %1114 = vmatprep.mubr.f32.mxu0 0.0
      %1115 = vmatmul.mubr.f32.gmra.mxu0 %v755
      %v1116 = vpop.f32.mrf.mxu0
      %v1117 = vadd.f32 0.0, %v1116
      %v1118 = vpop.f32.mrf.mxu0
      %1119 = vmatprep.mubr.f32.mxu0 0.0
      %1120 = vmatmul.mubr.f32.gmra.mxu0 %v758
      %v1121 = vpop.f32.mrf.mxu0
      %v1122 = vadd.f32 0.0, %v1121
      %v1123 = vpop.f32.mrf.mxu0
      %1124 = vmatprep.mubr.f32.mxu0 0.0
      %1125 = vmatmul.mubr.f32.gmra.mxu0 %v761
      %v1126 = vpop.f32.mrf.mxu0
      %v1127 = vadd.f32 0.0, %v1126
      %v1128 = vpop.f32.mrf.mxu0
      %1129 = vmatprep.mubr.f32.mxu0 0.0
      %1130 = vmatmul.mubr.f32.gmra.mxu0 %v764
      %v1131 = vpop.f32.mrf.mxu0
      %v1132 = vadd.f32 0.0, %v1131
      %v1133 = vpop.f32.mrf.mxu0
      %1134 = vmatprep.mubr.f32.mxu0 0.0
      %1135 = vmatmul.mubr.f32.gmra.mxu0 %v767
      %v1136 = vpop.f32.mrf.mxu0
      %v1137 = vadd.f32 0.0, %v1136
      %v1138 = vpop.f32.mrf.mxu0
      %1139 = vmatprep.mubr.f32.mxu0 0.0
      %1140 = vmatmul.mubr.f32.gmra.mxu0 %v770
      %v1141 = vpop.f32.mrf.mxu0
      %v1142 = vadd.f32 0.0, %v1141
      %v1143 = vpop.f32.mrf.mxu0
      %1144 = vmatprep.mubr.f32.mxu0 0.0
      %1145 = vmatmul.mubr.f32.gmra.mxu0 %v773
      %v1146 = vpop.f32.mrf.mxu0
      %v1147 = vadd.f32 0.0, %v1146
      %v1148 = vpop.f32.mrf.mxu0
      %1149 = vmatprep.mubr.f32.mxu0 0.0
      %1150 = vmatmul.mubr.f32.gmra.mxu0 %v776
      %v1151 = vpop.f32.mrf.mxu0
      %v1152 = vadd.f32 0.0, %v1151
      %v1153 = vpop.f32.mrf.mxu0
      %1154 = vmatprep.mubr.f32.mxu0 0.0
      %1155 = vmatmul.mubr.f32.gmra.mxu0 %v779
      %v1156 = vpop.f32.mrf.mxu0
      %v1157 = vadd.f32 0.0, %v1156
      %v1158 = vpop.f32.mrf.mxu0
      %1159 = vmatprep.mubr.f32.mxu0 0.0
      %1160 = vmatmul.mubr.f32.gmra.mxu0 %v782
      %v1161 = vpop.f32.mrf.mxu0
      %v1162 = vadd.f32 0.0, %v1161
      %v1163 = vpop.f32.mrf.mxu0
      %1164 = vmatprep.mubr.f32.mxu0 0.0
      %1165 = vmatmul.mubr.f32.gmra.mxu0 %v785
      %v1166 = vpop.f32.mrf.mxu0
      %v1167 = vadd.f32 0.0, %v1166
      %v1168 = vpop.f32.mrf.mxu0
      %1169 = vmatprep.mubr.f32.mxu0 0.0
      %1170 = vmatmul.mubr.f32.gmra.mxu0 %v788
      %v1171 = vpop.f32.mrf.mxu0
      %v1172 = vadd.f32 0.0, %v1171
      %v1173 = vpop.f32.mrf.mxu0
      %1174 = vdwg.mxu0
      %vm1175 = vcmask 130048
      %v1177 = vsel %vm1175, %v466, 0
      %v1180 = vsel %vm1175, %v467, 0
      %v1183 = vsel %vm1175, %v468, 0
      %v1186 = vsel %vm1175, %v469, 0
      %v1189 = vsel %vm1175, %v470, 0
      %v1192 = vsel %vm1175, %v471, 0
      %v1195 = vsel %vm1175, %v472, 0
      %v1198 = vsel %vm1175, %v473, 0
      %v1201 = vsel %vm1175, %v474, 0
      %v1204 = vsel %vm1175, %v475, 0
      %v1207 = vsel %vm1175, %v476, 0
      %v1210 = vsel %vm1175, %v477, 0
      %v1213 = vsel %vm1175, %v478, 0
      %v1216 = vsel %vm1175, %v479, 0
      %v1219 = vsel %vm1175, %v480, 0
      %v1222 = vsel %vm1175, %v481, 0
      %v1225 = vsel %vm1175, %v482, 0
      %v1228 = vsel %vm1175, %v483, 0
      %v1231 = vsel %vm1175, %v484, 0
      %v1234 = vsel %vm1175, %v485, 0
      %v1237 = vsel %vm1175, %v486, 0
      %v1240 = vsel %vm1175, %v487, 0
      %v1243 = vsel %vm1175, %v488, 0
      %v1246 = vsel %vm1175, %v489, 0
      %v1249 = vsel %vm1175, %v490, 0
      %v1252 = vsel %vm1175, %v491, 0
      %v1255 = vsel %vm1175, %v492, 0
      %v1258 = vsel %vm1175, %v493, 0
      %v1261 = vsel %vm1175, %v494, 0
      %v1264 = vsel %vm1175, %v495, 0
      %v1267 = vsel %vm1175, %v496, 0
      %v1270 = vsel %vm1175, %v497, 0
      %v1273 = vsel %vm1175, %v498, 0
      %v1276 = vsel %vm1175, %v499, 0
      %v1279 = vsel %vm1175, %v500, 0
      %v1282 = vsel %vm1175, %v501, 0
      %v1285 = vsel %vm1175, %v502, 0
      %v1288 = vsel %vm1175, %v503, 0
      %v1291 = vsel %vm1175, %v504, 0
      %v1294 = vsel %vm1175, %v505, 0
      %v1297 = vsel %vm1175, %v506, 0
      %v1300 = vsel %vm1175, %v507, 0
      %v1303 = vsel %vm1175, %v508, 0
      %v1306 = vsel %vm1175, %v509, 0
      %v1309 = vsel %vm1175, %v510, 0
      %v1312 = vsel %vm1175, %v511, 0
      %v1315 = vsel %vm1175, %v512, 0
      %v1318 = vsel %vm1175, %v513, 0
      %v1321 = vsel %vm1175, %v514, 0
      %v1324 = vsel %vm1175, %v515, 0
      %v1327 = vsel %vm1175, %v516, 0
      %v1330 = vsel %vm1175, %v517, 0
      %v1333 = vsel %vm1175, %v518, 0
      %v1336 = vsel %vm1175, %v519, 0
      %v1339 = vsel %vm1175, %v520, 0
      %v1342 = vsel %vm1175, %v521, 0
      %v1345 = vsel %vm1175, %v522, 0
      %v1348 = vsel %vm1175, %v523, 0
      %v1351 = vsel %vm1175, %v524, 0
      %v1354 = vsel %vm1175, %v525, 0
      %v1357 = vsel %vm1175, %v526, 0
      %v1360 = vsel %vm1175, %v527, 0
      %v1363 = vsel %vm1175, %v528, 0
      %v1366 = vsel %vm1175, %v529, 0
      %1368 = vmatprep.subr.mxu0 0.0
      %1369 = vmatpush1.msra.mxu0 0.0
      %1370 = vmatprep.subr.mxu0 0.0
      %1371 = vmatpush1.msra.mxu0 0.0
      %1372 = vmatprep.subr.mxu0 0.0
      %1373 = vmatpush1.msra.mxu0 0.0
      %1374 = vmatprep.subr.mxu0 0.0
      %1375 = vmatpush1.msra.mxu0 0.0
      %1376 = vmatprep.subr.mxu0 0.0
      %1377 = vmatpush1.msra.mxu0 0.0
      %1378 = vmatprep.subr.mxu0 0.0
      %1379 = vmatpush1.msra.mxu0 0.0
      %1380 = vmatprep.subr.mxu0 0.0
      %1381 = vmatpush1.msra.mxu0 0.0
      %1382 = vmatprep.subr.mxu0 0.0
      %1383 = vmatpush1.msra.mxu0 0.0
      %1384 = vmatprep.subr.mxu0 0.0
      %1385 = vmatpush1.msra.mxu0 0.0
      %1386 = vmatprep.subr.mxu0 0.0
      %1387 = vmatpush1.msra.mxu0 0.0
      %1388 = vmatprep.subr.mxu0 0.0
      %1389 = vmatpush1.msra.mxu0 0.0
      %1390 = vmatprep.subr.mxu0 0.0
      %1391 = vmatpush1.msra.mxu0 0.0
      %1392 = vmatprep.subr.mxu0 0.0
      %1393 = vmatpush1.msra.mxu0 0.0
      %1394 = vmatprep.subr.mxu0 0.0
      %1395 = vmatpush1.msra.mxu0 0.0
      %1396 = vmatprep.subr.mxu0 0.0
      %1397 = vmatpush1.msra.mxu0 %v595
      %1398 = vmatprep.subr.mxu0 0.0
      %1399 = vmatpush1.msra.mxu0 %v594
      %1400 = vmatprep.subr.mxu0 0.0
      %1401 = vmatpush2.msra.mxu0 0.0
      %1402 = vmatprep.subr.mxu0 0.0
      %1403 = vmatpush2.msra.mxu0 0.0
      %1404 = vmatprep.subr.mxu0 0.0
      %1405 = vmatpush2.msra.mxu0 0.0
      %1406 = vmatprep.subr.mxu0 0.0
      %1407 = vmatpush2.msra.mxu0 0.0
      %1408 = vmatprep.subr.mxu0 0.0
      %1409 = vmatpush2.msra.mxu0 0.0
      %1410 = vmatprep.subr.mxu0 0.0
      %1411 = vmatpush2.msra.mxu0 0.0
      %1412 = vmatprep.subr.mxu0 0.0
      %1413 = vmatpush2.msra.mxu0 0.0
      %1414 = vmatprep.subr.mxu0 0.0
      %1415 = vmatpush2.msra.mxu0 0.0
      %1416 = vmatprep.subr.mxu0 0.0
      %1417 = vmatpush2.msra.mxu0 0.0
      %1418 = vmatprep.subr.mxu0 0.0
      %1419 = vmatpush2.msra.mxu0 0.0
      %1420 = vmatprep.subr.mxu0 0.0
      %1421 = vmatpush2.msra.mxu0 0.0
      %1422 = vmatprep.subr.mxu0 0.0
      %1423 = vmatpush2.msra.mxu0 0.0
      %1424 = vmatprep.subr.mxu0 0.0
      %1425 = vmatpush2.msra.mxu0 0.0
      %1426 = vmatprep.subr.mxu0 0.0
      %1427 = vmatpush2.msra.mxu0 0.0
      %1428 = vmatprep.subr.mxu0 0.0
      %1429 = vmatpush2.msra.mxu0 0.0
      %1430 = vmatprep.subr.mxu0 0.0
      %1431 = vmatpush2.msra.mxu0 0.0
      %1432 = vmatprep.mubr.f32.mxu0 0.0
      %1433 = vmatmul.mubr.f32.gmra.mxu0 %v1177
      %v1434 = vpop.f32.mrf.mxu0
      %v1435 = vadd.f32 %v857, %v1434
      %v1436 = vpop.f32.mrf.mxu0
      %1437 = vmatprep.mubr.f32.mxu0 0.0
      %1438 = vmatmul.mubr.f32.gmra.mxu0 %v1180
      %v1439 = vpop.f32.mrf.mxu0
      %v1440 = vadd.f32 %v862, %v1439
      %v1441 = vpop.f32.mrf.mxu0
      %1442 = vmatprep.mubr.f32.mxu0 0.0
      %1443 = vmatmul.mubr.f32.gmra.mxu0 %v1183
      %v1444 = vpop.f32.mrf.mxu0
      %v1445 = vadd.f32 %v867, %v1444
      %v1446 = vpop.f32.mrf.mxu0
      %1447 = vmatprep.mubr.f32.mxu0 0.0
      %1448 = vmatmul.mubr.f32.gmra.mxu0 %v1186
      %v1449 = vpop.f32.mrf.mxu0
      %v1450 = vadd.f32 %v872, %v1449
      %v1451 = vpop.f32.mrf.mxu0
      %1452 = vmatprep.mubr.f32.mxu0 0.0
      %1453 = vmatmul.mubr.f32.gmra.mxu0 %v1189
      %v1454 = vpop.f32.mrf.mxu0
      %v1455 = vadd.f32 %v877, %v1454
      %v1456 = vpop.f32.mrf.mxu0
      %1457 = vmatprep.mubr.f32.mxu0 0.0
      %1458 = vmatmul.mubr.f32.gmra.mxu0 %v1192
      %v1459 = vpop.f32.mrf.mxu0
      %v1460 = vadd.f32 %v882, %v1459
      %v1461 = vpop.f32.mrf.mxu0
      %1462 = vmatprep.mubr.f32.mxu0 0.0
      %1463 = vmatmul.mubr.f32.gmra.mxu0 %v1195
      %v1464 = vpop.f32.mrf.mxu0
      %v1465 = vadd.f32 %v887, %v1464
      %v1466 = vpop.f32.mrf.mxu0
      %1467 = vmatprep.mubr.f32.mxu0 0.0
      %1468 = vmatmul.mubr.f32.gmra.mxu0 %v1198
      %v1469 = vpop.f32.mrf.mxu0
      %v1470 = vadd.f32 %v892, %v1469
      %v1471 = vpop.f32.mrf.mxu0
      %1472 = vmatprep.mubr.f32.mxu0 0.0
      %1473 = vmatmul.mubr.f32.gmra.mxu0 %v1201
      %v1474 = vpop.f32.mrf.mxu0
      %v1475 = vadd.f32 %v897, %v1474
      %v1476 = vpop.f32.mrf.mxu0
      %1477 = vmatprep.mubr.f32.mxu0 0.0
      %1478 = vmatmul.mubr.f32.gmra.mxu0 %v1204
      %v1479 = vpop.f32.mrf.mxu0
      %v1480 = vadd.f32 %v902, %v1479
      %v1481 = vpop.f32.mrf.mxu0
      %1482 = vmatprep.mubr.f32.mxu0 0.0
      %1483 = vmatmul.mubr.f32.gmra.mxu0 %v1207
      %v1484 = vpop.f32.mrf.mxu0
      %v1485 = vadd.f32 %v907, %v1484
      %v1486 = vpop.f32.mrf.mxu0
      %1487 = vmatprep.mubr.f32.mxu0 0.0
      %1488 = vmatmul.mubr.f32.gmra.mxu0 %v1210
      %v1489 = vpop.f32.mrf.mxu0
      %v1490 = vadd.f32 %v912, %v1489
      %v1491 = vpop.f32.mrf.mxu0
      %1492 = vmatprep.mubr.f32.mxu0 0.0
      %1493 = vmatmul.mubr.f32.gmra.mxu0 %v1213
      %v1494 = vpop.f32.mrf.mxu0
      %v1495 = vadd.f32 %v917, %v1494
      %v1496 = vpop.f32.mrf.mxu0
      %1497 = vmatprep.mubr.f32.mxu0 0.0
      %1498 = vmatmul.mubr.f32.gmra.mxu0 %v1216
      %v1499 = vpop.f32.mrf.mxu0
      %v1500 = vadd.f32 %v922, %v1499
      %v1501 = vpop.f32.mrf.mxu0
      %1502 = vmatprep.mubr.f32.mxu0 0.0
      %1503 = vmatmul.mubr.f32.gmra.mxu0 %v1219
      %v1504 = vpop.f32.mrf.mxu0
      %v1505 = vadd.f32 %v927, %v1504
      %v1506 = vpop.f32.mrf.mxu0
      %1507 = vmatprep.mubr.f32.mxu0 0.0
      %1508 = vmatmul.mubr.f32.gmra.mxu0 %v1222
      %v1509 = vpop.f32.mrf.mxu0
      %v1510 = vadd.f32 %v932, %v1509
      %v1511 = vpop.f32.mrf.mxu0
      %1512 = vmatprep.mubr.f32.mxu0 0.0
      %1513 = vmatmul.mubr.f32.gmra.mxu0 %v1225
      %v1514 = vpop.f32.mrf.mxu0
      %v1515 = vadd.f32 %v937, %v1514
      %v1516 = vpop.f32.mrf.mxu0
      %1517 = vmatprep.mubr.f32.mxu0 0.0
      %1518 = vmatmul.mubr.f32.gmra.mxu0 %v1228
      %v1519 = vpop.f32.mrf.mxu0
      %v1520 = vadd.f32 %v942, %v1519
      %v1521 = vpop.f32.mrf.mxu0
      %1522 = vmatprep.mubr.f32.mxu0 0.0
      %1523 = vmatmul.mubr.f32.gmra.mxu0 %v1231
      %v1524 = vpop.f32.mrf.mxu0
      %v1525 = vadd.f32 %v947, %v1524
      %v1526 = vpop.f32.mrf.mxu0
      %1527 = vmatprep.mubr.f32.mxu0 0.0
      %1528 = vmatmul.mubr.f32.gmra.mxu0 %v1234
      %v1529 = vpop.f32.mrf.mxu0
      %v1530 = vadd.f32 %v952, %v1529
      %v1531 = vpop.f32.mrf.mxu0
      %1532 = vmatprep.mubr.f32.mxu0 0.0
      %1533 = vmatmul.mubr.f32.gmra.mxu0 %v1237
      %v1534 = vpop.f32.mrf.mxu0
      %v1535 = vadd.f32 %v957, %v1534
      %v1536 = vpop.f32.mrf.mxu0
      %1537 = vmatprep.mubr.f32.mxu0 0.0
      %1538 = vmatmul.mubr.f32.gmra.mxu0 %v1240
      %v1539 = vpop.f32.mrf.mxu0
      %v1540 = vadd.f32 %v962, %v1539
      %v1541 = vpop.f32.mrf.mxu0
      %1542 = vmatprep.mubr.f32.mxu0 0.0
      %1543 = vmatmul.mubr.f32.gmra.mxu0 %v1243
      %v1544 = vpop.f32.mrf.mxu0
      %v1545 = vadd.f32 %v967, %v1544
      %v1546 = vpop.f32.mrf.mxu0
      %1547 = vmatprep.mubr.f32.mxu0 0.0
      %1548 = vmatmul.mubr.f32.gmra.mxu0 %v1246
      %v1549 = vpop.f32.mrf.mxu0
      %v1550 = vadd.f32 %v972, %v1549
      %v1551 = vpop.f32.mrf.mxu0
      %1552 = vmatprep.mubr.f32.mxu0 0.0
      %1553 = vmatmul.mubr.f32.gmra.mxu0 %v1249
      %v1554 = vpop.f32.mrf.mxu0
      %v1555 = vadd.f32 %v977, %v1554
      %v1556 = vpop.f32.mrf.mxu0
      %1557 = vmatprep.mubr.f32.mxu0 0.0
      %1558 = vmatmul.mubr.f32.gmra.mxu0 %v1252
      %v1559 = vpop.f32.mrf.mxu0
      %v1560 = vadd.f32 %v982, %v1559
      %v1561 = vpop.f32.mrf.mxu0
      %1562 = vmatprep.mubr.f32.mxu0 0.0
      %1563 = vmatmul.mubr.f32.gmra.mxu0 %v1255
      %v1564 = vpop.f32.mrf.mxu0
      %v1565 = vadd.f32 %v987, %v1564
      %v1566 = vpop.f32.mrf.mxu0
      %1567 = vmatprep.mubr.f32.mxu0 0.0
      %1568 = vmatmul.mubr.f32.gmra.mxu0 %v1258
      %v1569 = vpop.f32.mrf.mxu0
      %v1570 = vadd.f32 %v992, %v1569
      %v1571 = vpop.f32.mrf.mxu0
      %1572 = vmatprep.mubr.f32.mxu0 0.0
      %1573 = vmatmul.mubr.f32.gmra.mxu0 %v1261
      %v1574 = vpop.f32.mrf.mxu0
      %v1575 = vadd.f32 %v997, %v1574
      %v1576 = vpop.f32.mrf.mxu0
      %1577 = vmatprep.mubr.f32.mxu0 0.0
      %1578 = vmatmul.mubr.f32.gmra.mxu0 %v1264
      %v1579 = vpop.f32.mrf.mxu0
      %v1580 = vadd.f32 %v1002, %v1579
      %v1581 = vpop.f32.mrf.mxu0
      %1582 = vmatprep.mubr.f32.mxu0 0.0
      %1583 = vmatmul.mubr.f32.gmra.mxu0 %v1267
      %v1584 = vpop.f32.mrf.mxu0
      %v1585 = vadd.f32 %v1007, %v1584
      %v1586 = vpop.f32.mrf.mxu0
      %1587 = vmatprep.mubr.f32.mxu0 0.0
      %1588 = vmatmul.mubr.f32.gmra.mxu0 %v1270
      %v1589 = vpop.f32.mrf.mxu0
      %v1590 = vadd.f32 %v1012, %v1589
      %v1591 = vpop.f32.mrf.mxu0
      %1592 = vmatprep.mubr.f32.mxu0 0.0
      %1593 = vmatmul.mubr.f32.gmra.mxu0 %v1273
      %v1594 = vpop.f32.mrf.mxu0
      %v1595 = vadd.f32 %v1017, %v1594
      %v1596 = vpop.f32.mrf.mxu0
      %1597 = vmatprep.mubr.f32.mxu0 0.0
      %1598 = vmatmul.mubr.f32.gmra.mxu0 %v1276
      %v1599 = vpop.f32.mrf.mxu0
      %v1600 = vadd.f32 %v1022, %v1599
      %v1601 = vpop.f32.mrf.mxu0
      %1602 = vmatprep.mubr.f32.mxu0 0.0
      %1603 = vmatmul.mubr.f32.gmra.mxu0 %v1279
      %v1604 = vpop.f32.mrf.mxu0
      %v1605 = vadd.f32 %v1027, %v1604
      %v1606 = vpop.f32.mrf.mxu0
      %1607 = vmatprep.mubr.f32.mxu0 0.0
      %1608 = vmatmul.mubr.f32.gmra.mxu0 %v1282
      %v1609 = vpop.f32.mrf.mxu0
      %v1610 = vadd.f32 %v1032, %v1609
      %v1611 = vpop.f32.mrf.mxu0
      %1612 = vmatprep.mubr.f32.mxu0 0.0
      %1613 = vmatmul.mubr.f32.gmra.mxu0 %v1285
      %v1614 = vpop.f32.mrf.mxu0
      %v1615 = vadd.f32 %v1037, %v1614
      %v1616 = vpop.f32.mrf.mxu0
      %1617 = vmatprep.mubr.f32.mxu0 0.0
      %1618 = vmatmul.mubr.f32.gmra.mxu0 %v1288
      %v1619 = vpop.f32.mrf.mxu0
      %v1620 = vadd.f32 %v1042, %v1619
      %v1621 = vpop.f32.mrf.mxu0
      %1622 = vmatprep.mubr.f32.mxu0 0.0
      %1623 = vmatmul.mubr.f32.gmra.mxu0 %v1291
      %v1624 = vpop.f32.mrf.mxu0
      %v1625 = vadd.f32 %v1047, %v1624
      %v1626 = vpop.f32.mrf.mxu0
      %1627 = vmatprep.mubr.f32.mxu0 0.0
      %1628 = vmatmul.mubr.f32.gmra.mxu0 %v1294
      %v1629 = vpop.f32.mrf.mxu0
      %v1630 = vadd.f32 %v1052, %v1629
      %v1631 = vpop.f32.mrf.mxu0
      %1632 = vmatprep.mubr.f32.mxu0 0.0
      %1633 = vmatmul.mubr.f32.gmra.mxu0 %v1297
      %v1634 = vpop.f32.mrf.mxu0
      %v1635 = vadd.f32 %v1057, %v1634
      %v1636 = vpop.f32.mrf.mxu0
      %1637 = vmatprep.mubr.f32.mxu0 0.0
      %1638 = vmatmul.mubr.f32.gmra.mxu0 %v1300
      %v1639 = vpop.f32.mrf.mxu0
      %v1640 = vadd.f32 %v1062, %v1639
      %v1641 = vpop.f32.mrf.mxu0
      %1642 = vmatprep.mubr.f32.mxu0 0.0
      %1643 = vmatmul.mubr.f32.gmra.mxu0 %v1303
      %v1644 = vpop.f32.mrf.mxu0
      %v1645 = vadd.f32 %v1067, %v1644
      %v1646 = vpop.f32.mrf.mxu0
      %1647 = vmatprep.mubr.f32.mxu0 0.0
      %1648 = vmatmul.mubr.f32.gmra.mxu0 %v1306
      %v1649 = vpop.f32.mrf.mxu0
      %v1650 = vadd.f32 %v1072, %v1649
      %v1651 = vpop.f32.mrf.mxu0
      %1652 = vmatprep.mubr.f32.mxu0 0.0
      %1653 = vmatmul.mubr.f32.gmra.mxu0 %v1309
      %v1654 = vpop.f32.mrf.mxu0
      %v1655 = vadd.f32 %v1077, %v1654
      %v1656 = vpop.f32.mrf.mxu0
      %1657 = vmatprep.mubr.f32.mxu0 0.0
      %1658 = vmatmul.mubr.f32.gmra.mxu0 %v1312
      %v1659 = vpop.f32.mrf.mxu0
      %v1660 = vadd.f32 %v1082, %v1659
      %v1661 = vpop.f32.mrf.mxu0
      %1662 = vmatprep.mubr.f32.mxu0 0.0
      %1663 = vmatmul.mubr.f32.gmra.mxu0 %v1315
      %v1664 = vpop.f32.mrf.mxu0
      %v1665 = vadd.f32 %v1087, %v1664
      %v1666 = vpop.f32.mrf.mxu0
      %1667 = vmatprep.mubr.f32.mxu0 0.0
      %1668 = vmatmul.mubr.f32.gmra.mxu0 %v1318
      %v1669 = vpop.f32.mrf.mxu0
      %v1670 = vadd.f32 %v1092, %v1669
      %v1671 = vpop.f32.mrf.mxu0
      %1672 = vmatprep.mubr.f32.mxu0 0.0
      %1673 = vmatmul.mubr.f32.gmra.mxu0 %v1321
      %v1674 = vpop.f32.mrf.mxu0
      %v1675 = vadd.f32 %v1097, %v1674
      %v1676 = vpop.f32.mrf.mxu0
      %1677 = vmatprep.mubr.f32.mxu0 0.0
      %1678 = vmatmul.mubr.f32.gmra.mxu0 %v1324
      %v1679 = vpop.f32.mrf.mxu0
      %v1680 = vadd.f32 %v1102, %v1679
      %v1681 = vpop.f32.mrf.mxu0
      %1682 = vmatprep.mubr.f32.mxu0 0.0
      %1683 = vmatmul.mubr.f32.gmra.mxu0 %v1327
      %v1684 = vpop.f32.mrf.mxu0
      %v1685 = vadd.f32 %v1107, %v1684
      %v1686 = vpop.f32.mrf.mxu0
      %1687 = vmatprep.mubr.f32.mxu0 0.0
      %1688 = vmatmul.mubr.f32.gmra.mxu0 %v1330
      %v1689 = vpop.f32.mrf.mxu0
      %v1690 = vadd.f32 %v1112, %v1689
      %v1691 = vpop.f32.mrf.mxu0
      %1692 = vmatprep.mubr.f32.mxu0 0.0
      %1693 = vmatmul.mubr.f32.gmra.mxu0 %v1333
      %v1694 = vpop.f32.mrf.mxu0
      %v1695 = vadd.f32 %v1117, %v1694
      %v1696 = vpop.f32.mrf.mxu0
      %1697 = vmatprep.mubr.f32.mxu0 0.0
      %1698 = vmatmul.mubr.f32.gmra.mxu0 %v1336
      %v1699 = vpop.f32.mrf.mxu0
      %v1700 = vadd.f32 %v1122, %v1699
      %v1701 = vpop.f32.mrf.mxu0
      %1702 = vmatprep.mubr.f32.mxu0 0.0
      %1703 = vmatmul.mubr.f32.gmra.mxu0 %v1339
      %v1704 = vpop.f32.mrf.mxu0
      %v1705 = vadd.f32 %v1127, %v1704
      %v1706 = vpop.f32.mrf.mxu0
      %1707 = vmatprep.mubr.f32.mxu0 0.0
      %1708 = vmatmul.mubr.f32.gmra.mxu0 %v1342
      %v1709 = vpop.f32.mrf.mxu0
      %v1710 = vadd.f32 %v1132, %v1709
      %v1711 = vpop.f32.mrf.mxu0
      %1712 = vmatprep.mubr.f32.mxu0 0.0
      %1713 = vmatmul.mubr.f32.gmra.mxu0 %v1345
      %v1714 = vpop.f32.mrf.mxu0
      %v1715 = vadd.f32 %v1137, %v1714
      %v1716 = vpop.f32.mrf.mxu0
      %1717 = vmatprep.mubr.f32.mxu0 0.0
      %1718 = vmatmul.mubr.f32.gmra.mxu0 %v1348
      %v1719 = vpop.f32.mrf.mxu0
      %v1720 = vadd.f32 %v1142, %v1719
      %v1721 = vpop.f32.mrf.mxu0
      %1722 = vmatprep.mubr.f32.mxu0 0.0
      %1723 = vmatmul.mubr.f32.gmra.mxu0 %v1351
      %v1724 = vpop.f32.mrf.mxu0
      %v1725 = vadd.f32 %v1147, %v1724
      %v1726 = vpop.f32.mrf.mxu0
      %1727 = vmatprep.mubr.f32.mxu0 0.0
      %1728 = vmatmul.mubr.f32.gmra.mxu0 %v1354
      %v1729 = vpop.f32.mrf.mxu0
      %v1730 = vadd.f32 %v1152, %v1729
      %v1731 = vpop.f32.mrf.mxu0
      %1732 = vmatprep.mubr.f32.mxu0 0.0
      %1733 = vmatmul.mubr.f32.gmra.mxu0 %v1357
      %v1734 = vpop.f32.mrf.mxu0
      %v1735 = vadd.f32 %v1157, %v1734
      %v1736 = vpop.f32.mrf.mxu0
      %1737 = vmatprep.mubr.f32.mxu0 0.0
      %1738 = vmatmul.mubr.f32.gmra.mxu0 %v1360
      %v1739 = vpop.f32.mrf.mxu0
      %v1740 = vadd.f32 %v1162, %v1739
      %v1741 = vpop.f32.mrf.mxu0
      %1742 = vmatprep.mubr.f32.mxu0 0.0
      %1743 = vmatmul.mubr.f32.gmra.mxu0 %v1363
      %v1744 = vpop.f32.mrf.mxu0
      %v1745 = vadd.f32 %v1167, %v1744
      %v1746 = vpop.f32.mrf.mxu0
      %1747 = vmatprep.mubr.f32.mxu0 0.0
      %1748 = vmatmul.mubr.f32.gmra.mxu0 %v1366
      %v1749 = vpop.f32.mrf.mxu0
      %v1750 = vadd.f32 %v1172, %v1749
      %v1751 = vpop.f32.mrf.mxu0
      %1752 = vdwg.mxu0
      %v1753 = vld [vmem:[%s4] sm:$0x1]
      %v1755 = vlaneseq
      %v1756 = vshrl.u32 %v1755, 7
      %v1757 = vsub.s32 0, %v1756
      %v1758 = vrot.slane %v1753, %v1757
      %v1760 = vadd.f32 %v1435, %v1758
      %v1761 = vadd.f32 %v1440, %v1758
      %v1762 = vadd.f32 %v1445, %v1758
      %v1763 = vadd.f32 %v1450, %v1758
      %v1764 = vadd.f32 %v1455, %v1758
      %v1765 = vadd.f32 %v1460, %v1758
      %v1766 = vadd.f32 %v1465, %v1758
      %v1767 = vadd.f32 %v1470, %v1758
      %v1768 = vadd.f32 %v1475, %v1758
      %v1769 = vadd.f32 %v1480, %v1758
      %v1770 = vadd.f32 %v1485, %v1758
      %v1771 = vadd.f32 %v1490, %v1758
      %v1772 = vadd.f32 %v1495, %v1758
      %v1773 = vadd.f32 %v1500, %v1758
      %v1774 = vadd.f32 %v1505, %v1758
      %v1775 = vadd.f32 %v1510, %v1758
      %v1776 = vadd.f32 %v1515, %v1758
      %v1777 = vadd.f32 %v1520, %v1758
      %v1778 = vadd.f32 %v1525, %v1758
      %v1779 = vadd.f32 %v1530, %v1758
      %v1780 = vadd.f32 %v1535, %v1758
      %v1781 = vadd.f32 %v1540, %v1758
      %v1782 = vadd.f32 %v1545, %v1758
      %v1783 = vadd.f32 %v1550, %v1758
      %v1784 = vadd.f32 %v1555, %v1758
      %v1785 = vadd.f32 %v1560, %v1758
      %v1786 = vadd.f32 %v1565, %v1758
      %v1787 = vadd.f32 %v1570, %v1758
      %v1788 = vadd.f32 %v1575, %v1758
      %v1789 = vadd.f32 %v1580, %v1758
      %v1790 = vadd.f32 %v1585, %v1758
      %v1791 = vadd.f32 %v1590, %v1758
      %v1792 = vadd.f32 %v1595, %v1758
      %v1793 = vadd.f32 %v1600, %v1758
      %v1794 = vadd.f32 %v1605, %v1758
      %v1795 = vadd.f32 %v1610, %v1758
      %v1796 = vadd.f32 %v1615, %v1758
      %v1797 = vadd.f32 %v1620, %v1758
      %v1798 = vadd.f32 %v1625, %v1758
      %v1799 = vadd.f32 %v1630, %v1758
      %v1800 = vadd.f32 %v1635, %v1758
      %v1801 = vadd.f32 %v1640, %v1758
      %v1802 = vadd.f32 %v1645, %v1758
      %v1803 = vadd.f32 %v1650, %v1758
      %v1804 = vadd.f32 %v1655, %v1758
      %v1805 = vadd.f32 %v1660, %v1758
      %v1806 = vadd.f32 %v1665, %v1758
      %v1807 = vadd.f32 %v1670, %v1758
      %v1808 = vadd.f32 %v1675, %v1758
      %v1809 = vadd.f32 %v1680, %v1758
      %v1810 = vadd.f32 %v1685, %v1758
      %v1811 = vadd.f32 %v1690, %v1758
      %v1812 = vadd.f32 %v1695, %v1758
      %v1813 = vadd.f32 %v1700, %v1758
      %v1814 = vadd.f32 %v1705, %v1758
      %v1815 = vadd.f32 %v1710, %v1758
      %v1816 = vadd.f32 %v1715, %v1758
      %v1817 = vadd.f32 %v1720, %v1758
      %v1818 = vadd.f32 %v1725, %v1758
      %v1819 = vadd.f32 %v1730, %v1758
      %v1820 = vadd.f32 %v1735, %v1758
      %v1821 = vadd.f32 %v1740, %v1758
      %v1822 = vadd.f32 %v1745, %v1758
      %v1823 = vadd.f32 %v1750, %v1758
      %v1824 = vtanh.pop %v1760
      %v1825 = vtanh.pop %v1761
      %v1826 = vtanh.pop %v1762
      %v1827 = vtanh.pop %v1763
      %v1828 = vtanh.pop %v1764
      %v1829 = vtanh.pop %v1765
      %v1830 = vtanh.pop %v1766
      %v1831 = vtanh.pop %v1767
      %v1832 = vtanh.pop %v1768
      %v1833 = vtanh.pop %v1769
      %v1834 = vtanh.pop %v1770
      %v1835 = vtanh.pop %v1771
      %v1836 = vtanh.pop %v1772
      %v1837 = vtanh.pop %v1773
      %v1838 = vtanh.pop %v1774
      %v1839 = vtanh.pop %v1775
      %v1840 = vtanh.pop %v1776
      %v1841 = vtanh.pop %v1777
      %v1842 = vtanh.pop %v1778
      %v1843 = vtanh.pop %v1779
      %v1844 = vtanh.pop %v1780
      %v1845 = vtanh.pop %v1781
      %v1846 = vtanh.pop %v1782
      %v1847 = vtanh.pop %v1783
      %v1848 = vtanh.pop %v1784
      %v1849 = vtanh.pop %v1785
      %v1850 = vtanh.pop %v1786
      %v1851 = vtanh.pop %v1787
      %v1852 = vtanh.pop %v1788
      %v1853 = vtanh.pop %v1789
      %v1854 = vtanh.pop %v1790
      %v1855 = vtanh.pop %v1791
      %v1856 = vtanh.pop %v1792
      %v1857 = vtanh.pop %v1793
      %v1858 = vtanh.pop %v1794
      %v1859 = vtanh.pop %v1795
      %v1860 = vtanh.pop %v1796
      %v1861 = vtanh.pop %v1797
      %v1862 = vtanh.pop %v1798
      %v1863 = vtanh.pop %v1799
      %v1864 = vtanh.pop %v1800
      %v1865 = vtanh.pop %v1801
      %v1866 = vtanh.pop %v1802
      %v1867 = vtanh.pop %v1803
      %v1868 = vtanh.pop %v1804
      %v1869 = vtanh.pop %v1805
      %v1870 = vtanh.pop %v1806
      %v1871 = vtanh.pop %v1807
      %v1872 = vtanh.pop %v1808
      %v1873 = vtanh.pop %v1809
      %v1874 = vtanh.pop %v1810
      %v1875 = vtanh.pop %v1811
      %v1876 = vtanh.pop %v1812
      %v1877 = vtanh.pop %v1813
      %v1878 = vtanh.pop %v1814
      %v1879 = vtanh.pop %v1815
      %v1880 = vtanh.pop %v1816
      %v1881 = vtanh.pop %v1817
      %v1882 = vtanh.pop %v1818
      %v1883 = vtanh.pop %v1819
      %v1884 = vtanh.pop %v1820
      %v1885 = vtanh.pop %v1821
      %v1886 = vtanh.pop %v1822
      %v1887 = vtanh.pop %v1823
      %v1888 = vld [vmem:[%s5] sm:$0xff]
      %v1889 = vld [vmem:[%s5 + $0x8] sm:$0xff]
      %v1890 = vld [vmem:[%s5 + $0x10] sm:$0xff]
      %v1891 = vld [vmem:[%s5 + $0x18] sm:$0xff]
      %v1892 = vld [vmem:[%s5 + $0x20] sm:$0xff]
      %v1893 = vld [vmem:[%s5 + $0x28] sm:$0xff]
      %v1894 = vld [vmem:[%s5 + $0x30] sm:$0xff]
      %v1895 = vld [vmem:[%s5 + $0x38] sm:$0xff]
      %v1896 = vld [vmem:[%s6] sm:$0x1]
      %v1898 = vlaneseq
      %v1899 = vshrl.u32 %v1898, 7
      %v1900 = vsub.s32 0, %v1899
      %v1901 = vrot.slane %v1896, %v1900
      %vm1903 = vcmask 523264
      %v1905 = vsel %vm1903, %v1824, 0
      %v1908 = vsel %vm1903, %v1825, 0
      %v1911 = vsel %vm1903, %v1826, 0
      %v1914 = vsel %vm1903, %v1827, 0
      %v1917 = vsel %vm1903, %v1828, 0
      %v1920 = vsel %vm1903, %v1829, 0
      %v1923 = vsel %vm1903, %v1830, 0
      %v1926 = vsel %vm1903, %v1831, 0
      %v1929 = vsel %vm1903, %v1832, 0
      %v1932 = vsel %vm1903, %v1833, 0
      %v1935 = vsel %vm1903, %v1834, 0
      %v1938 = vsel %vm1903, %v1835, 0
      %v1941 = vsel %vm1903, %v1836, 0
      %v1944 = vsel %vm1903, %v1837, 0
      %v1947 = vsel %vm1903, %v1838, 0
      %v1950 = vsel %vm1903, %v1839, 0
      %v1953 = vsel %vm1903, %v1840, 0
      %v1956 = vsel %vm1903, %v1841, 0
      %v1959 = vsel %vm1903, %v1842, 0
      %v1962 = vsel %vm1903, %v1843, 0
      %v1965 = vsel %vm1903, %v1844, 0
      %v1968 = vsel %vm1903, %v1845, 0
      %v1971 = vsel %vm1903, %v1846, 0
      %v1974 = vsel %vm1903, %v1847, 0
      %v1977 = vsel %vm1903, %v1848, 0
      %v1980 = vsel %vm1903, %v1849, 0
      %v1983 = vsel %vm1903, %v1850, 0
      %v1986 = vsel %vm1903, %v1851, 0
      %v1989 = vsel %vm1903, %v1852, 0
      %v1992 = vsel %vm1903, %v1853, 0
      %v1995 = vsel %vm1903, %v1854, 0
      %v1998 = vsel %vm1903, %v1855, 0
      %v2001 = vsel %vm1903, %v1856, 0
      %v2004 = vsel %vm1903, %v1857, 0
      %v2007 = vsel %vm1903, %v1858, 0
      %v2010 = vsel %vm1903, %v1859, 0
      %v2013 = vsel %vm1903, %v1860, 0
      %v2016 = vsel %vm1903, %v1861, 0
      %v2019 = vsel %vm1903, %v1862, 0
      %v2022 = vsel %vm1903, %v1863, 0
      %v2025 = vsel %vm1903, %v1864, 0
      %v2028 = vsel %vm1903, %v1865, 0
      %v2031 = vsel %vm1903, %v1866, 0
      %v2034 = vsel %vm1903, %v1867, 0
      %v2037 = vsel %vm1903, %v1868, 0
      %v2040 = vsel %vm1903, %v1869, 0
      %v2043 = vsel %vm1903, %v1870, 0
      %v2046 = vsel %vm1903, %v1871, 0
      %v2049 = vsel %vm1903, %v1872, 0
      %v2052 = vsel %vm1903, %v1873, 0
      %v2055 = vsel %vm1903, %v1874, 0
      %v2058 = vsel %vm1903, %v1875, 0
      %v2061 = vsel %vm1903, %v1876, 0
      %v2064 = vsel %vm1903, %v1877, 0
      %v2067 = vsel %vm1903, %v1878, 0
      %v2070 = vsel %vm1903, %v1879, 0
      %v2073 = vsel %vm1903, %v1880, 0
      %v2076 = vsel %vm1903, %v1881, 0
      %v2079 = vsel %vm1903, %v1882, 0
      %v2082 = vsel %vm1903, %v1883, 0
      %v2085 = vsel %vm1903, %v1884, 0
      %v2088 = vsel %vm1903, %v1885, 0
      %v2091 = vsel %vm1903, %v1886, 0
      %v2094 = vsel %vm1903, %v1887, 0
      %2096 = vmatprep.subr.mxu0 0.0
      %2097 = vmatpush1.msra.mxu0 0.0
      %2098 = vmatprep.subr.mxu0 0.0
      %2099 = vmatpush1.msra.mxu0 0.0
      %2100 = vmatprep.subr.mxu0 0.0
      %2101 = vmatpush1.msra.mxu0 0.0
      %2102 = vmatprep.subr.mxu0 0.0
      %2103 = vmatpush1.msra.mxu0 0.0
      %2104 = vmatprep.subr.mxu0 0.0
      %2105 = vmatpush1.msra.mxu0 0.0
      %2106 = vmatprep.subr.mxu0 0.0
      %2107 = vmatpush1.msra.mxu0 0.0
      %2108 = vmatprep.subr.mxu0 0.0
      %2109 = vmatpush1.msra.mxu0 0.0
      %2110 = vmatprep.subr.mxu0 0.0
      %2111 = vmatpush1.msra.mxu0 0.0
      %2112 = vmatprep.subr.mxu0 0.0
      %2113 = vmatpush1.msra.mxu0 %v1895
      %2114 = vmatprep.subr.mxu0 0.0
      %2115 = vmatpush1.msra.mxu0 %v1894
      %2116 = vmatprep.subr.mxu0 0.0
      %2117 = vmatpush1.msra.mxu0 %v1893
      %2118 = vmatprep.subr.mxu0 0.0
      %2119 = vmatpush1.msra.mxu0 %v1892
      %2120 = vmatprep.subr.mxu0 0.0
      %2121 = vmatpush1.msra.mxu0 %v1891
      %2122 = vmatprep.subr.mxu0 0.0
      %2123 = vmatpush1.msra.mxu0 %v1890
      %2124 = vmatprep.subr.mxu0 0.0
      %2125 = vmatpush1.msra.mxu0 %v1889
      %2126 = vmatprep.subr.mxu0 0.0
      %2127 = vmatpush1.msra.mxu0 %v1888
      %2128 = vmatprep.subr.mxu0 0.0
      %2129 = vmatpush2.msra.mxu0 0.0
      %2130 = vmatprep.subr.mxu0 0.0
      %2131 = vmatpush2.msra.mxu0 0.0
      %2132 = vmatprep.subr.mxu0 0.0
      %2133 = vmatpush2.msra.mxu0 0.0
      %2134 = vmatprep.subr.mxu0 0.0
      %2135 = vmatpush2.msra.mxu0 0.0
      %2136 = vmatprep.subr.mxu0 0.0
      %2137 = vmatpush2.msra.mxu0 0.0
      %2138 = vmatprep.subr.mxu0 0.0
      %2139 = vmatpush2.msra.mxu0 0.0
      %2140 = vmatprep.subr.mxu0 0.0
      %2141 = vmatpush2.msra.mxu0 0.0
      %2142 = vmatprep.subr.mxu0 0.0
      %2143 = vmatpush2.msra.mxu0 0.0
      %2144 = vmatprep.subr.mxu0 0.0
      %2145 = vmatpush2.msra.mxu0 0.0
      %2146 = vmatprep.subr.mxu0 0.0
      %2147 = vmatpush2.msra.mxu0 0.0
      %2148 = vmatprep.subr.mxu0 0.0
      %2149 = vmatpush2.msra.mxu0 0.0
      %2150 = vmatprep.subr.mxu0 0.0
      %2151 = vmatpush2.msra.mxu0 0.0
      %2152 = vmatprep.subr.mxu0 0.0
      %2153 = vmatpush2.msra.mxu0 0.0
      %2154 = vmatprep.subr.mxu0 0.0
      %2155 = vmatpush2.msra.mxu0 0.0
      %2156 = vmatprep.subr.mxu0 0.0
      %2157 = vmatpush2.msra.mxu0 0.0
      %2158 = vmatprep.subr.mxu0 0.0
      %2159 = vmatpush2.msra.mxu0 0.0
      %2160 = vmatprep.mubr.f32.mxu0 0.0
      %2161 = vmatmul.mubr.f32.gmra.mxu0 %v1905
      %v2162 = vpop.f32.mrf.mxu0
      %v2163 = vadd.f32 %v1901, %v2162
      %v2164 = vpop.f32.mrf.mxu0
      %2165 = vmatprep.mubr.f32.mxu0 0.0
      %2166 = vmatmul.mubr.f32.gmra.mxu0 %v1908
      %v2167 = vpop.f32.mrf.mxu0
      %v2168 = vadd.f32 %v1901, %v2167
      %v2169 = vpop.f32.mrf.mxu0
      %2170 = vmatprep.mubr.f32.mxu0 0.0
      %2171 = vmatmul.mubr.f32.gmra.mxu0 %v1911
      %v2172 = vpop.f32.mrf.mxu0
      %v2173 = vadd.f32 %v1901, %v2172
      %v2174 = vpop.f32.mrf.mxu0
      %2175 = vmatprep.mubr.f32.mxu0 0.0
      %2176 = vmatmul.mubr.f32.gmra.mxu0 %v1914
      %v2177 = vpop.f32.mrf.mxu0
      %v2178 = vadd.f32 %v1901, %v2177
      %v2179 = vpop.f32.mrf.mxu0
      %2180 = vmatprep.mubr.f32.mxu0 0.0
      %2181 = vmatmul.mubr.f32.gmra.mxu0 %v1917
      %v2182 = vpop.f32.mrf.mxu0
      %v2183 = vadd.f32 %v1901, %v2182
      %v2184 = vpop.f32.mrf.mxu0
      %2185 = vmatprep.mubr.f32.mxu0 0.0
      %2186 = vmatmul.mubr.f32.gmra.mxu0 %v1920
      %v2187 = vpop.f32.mrf.mxu0
      %v2188 = vadd.f32 %v1901, %v2187
      %v2189 = vpop.f32.mrf.mxu0
      %2190 = vmatprep.mubr.f32.mxu0 0.0
      %2191 = vmatmul.mubr.f32.gmra.mxu0 %v1923
      %v2192 = vpop.f32.mrf.mxu0
      %v2193 = vadd.f32 %v1901, %v2192
      %v2194 = vpop.f32.mrf.mxu0
      %2195 = vmatprep.mubr.f32.mxu0 0.0
      %2196 = vmatmul.mubr.f32.gmra.mxu0 %v1926
      %v2197 = vpop.f32.mrf.mxu0
      %v2198 = vadd.f32 %v1901, %v2197
      %v2199 = vpop.f32.mrf.mxu0
      %2200 = vmatprep.mubr.f32.mxu0 0.0
      %2201 = vmatmul.mubr.f32.gmra.mxu0 %v1929
      %v2202 = vpop.f32.mrf.mxu0
      %v2203 = vadd.f32 %v1901, %v2202
      %v2204 = vpop.f32.mrf.mxu0
      %2205 = vmatprep.mubr.f32.mxu0 0.0
      %2206 = vmatmul.mubr.f32.gmra.mxu0 %v1932
      %v2207 = vpop.f32.mrf.mxu0
      %v2208 = vadd.f32 %v1901, %v2207
      %v2209 = vpop.f32.mrf.mxu0
      %2210 = vmatprep.mubr.f32.mxu0 0.0
      %2211 = vmatmul.mubr.f32.gmra.mxu0 %v1935
      %v2212 = vpop.f32.mrf.mxu0
      %v2213 = vadd.f32 %v1901, %v2212
      %v2214 = vpop.f32.mrf.mxu0
      %2215 = vmatprep.mubr.f32.mxu0 0.0
      %2216 = vmatmul.mubr.f32.gmra.mxu0 %v1938
      %v2217 = vpop.f32.mrf.mxu0
      %v2218 = vadd.f32 %v1901, %v2217
      %v2219 = vpop.f32.mrf.mxu0
      %2220 = vmatprep.mubr.f32.mxu0 0.0
      %2221 = vmatmul.mubr.f32.gmra.mxu0 %v1941
      %v2222 = vpop.f32.mrf.mxu0
      %v2223 = vadd.f32 %v1901, %v2222
      %v2224 = vpop.f32.mrf.mxu0
      %2225 = vmatprep.mubr.f32.mxu0 0.0
      %2226 = vmatmul.mubr.f32.gmra.mxu0 %v1944
      %v2227 = vpop.f32.mrf.mxu0
      %v2228 = vadd.f32 %v1901, %v2227
      %v2229 = vpop.f32.mrf.mxu0
      %2230 = vmatprep.mubr.f32.mxu0 0.0
      %2231 = vmatmul.mubr.f32.gmra.mxu0 %v1947
      %v2232 = vpop.f32.mrf.mxu0
      %v2233 = vadd.f32 %v1901, %v2232
      %v2234 = vpop.f32.mrf.mxu0
      %2235 = vmatprep.mubr.f32.mxu0 0.0
      %2236 = vmatmul.mubr.f32.gmra.mxu0 %v1950
      %v2237 = vpop.f32.mrf.mxu0
      %v2238 = vadd.f32 %v1901, %v2237
      %v2239 = vpop.f32.mrf.mxu0
      %2240 = vmatprep.mubr.f32.mxu0 0.0
      %2241 = vmatmul.mubr.f32.gmra.mxu0 %v1953
      %v2242 = vpop.f32.mrf.mxu0
      %v2243 = vadd.f32 %v1901, %v2242
      %v2244 = vpop.f32.mrf.mxu0
      %2245 = vmatprep.mubr.f32.mxu0 0.0
      %2246 = vmatmul.mubr.f32.gmra.mxu0 %v1956
      %v2247 = vpop.f32.mrf.mxu0
      %v2248 = vadd.f32 %v1901, %v2247
      %v2249 = vpop.f32.mrf.mxu0
      %2250 = vmatprep.mubr.f32.mxu0 0.0
      %2251 = vmatmul.mubr.f32.gmra.mxu0 %v1959
      %v2252 = vpop.f32.mrf.mxu0
      %v2253 = vadd.f32 %v1901, %v2252
      %v2254 = vpop.f32.mrf.mxu0
      %2255 = vmatprep.mubr.f32.mxu0 0.0
      %2256 = vmatmul.mubr.f32.gmra.mxu0 %v1962
      %v2257 = vpop.f32.mrf.mxu0
      %v2258 = vadd.f32 %v1901, %v2257
      %v2259 = vpop.f32.mrf.mxu0
      %2260 = vmatprep.mubr.f32.mxu0 0.0
      %2261 = vmatmul.mubr.f32.gmra.mxu0 %v1965
      %v2262 = vpop.f32.mrf.mxu0
      %v2263 = vadd.f32 %v1901, %v2262
      %v2264 = vpop.f32.mrf.mxu0
      %2265 = vmatprep.mubr.f32.mxu0 0.0
      %2266 = vmatmul.mubr.f32.gmra.mxu0 %v1968
      %v2267 = vpop.f32.mrf.mxu0
      %v2268 = vadd.f32 %v1901, %v2267
      %v2269 = vpop.f32.mrf.mxu0
      %2270 = vmatprep.mubr.f32.mxu0 0.0
      %2271 = vmatmul.mubr.f32.gmra.mxu0 %v1971
      %v2272 = vpop.f32.mrf.mxu0
      %v2273 = vadd.f32 %v1901, %v2272
      %v2274 = vpop.f32.mrf.mxu0
      %2275 = vmatprep.mubr.f32.mxu0 0.0
      %2276 = vmatmul.mubr.f32.gmra.mxu0 %v1974
      %v2277 = vpop.f32.mrf.mxu0
      %v2278 = vadd.f32 %v1901, %v2277
      %v2279 = vpop.f32.mrf.mxu0
      %2280 = vmatprep.mubr.f32.mxu0 0.0
      %2281 = vmatmul.mubr.f32.gmra.mxu0 %v1977
      %v2282 = vpop.f32.mrf.mxu0
      %v2283 = vadd.f32 %v1901, %v2282
      %v2284 = vpop.f32.mrf.mxu0
      %2285 = vmatprep.mubr.f32.mxu0 0.0
      %2286 = vmatmul.mubr.f32.gmra.mxu0 %v1980
      %v2287 = vpop.f32.mrf.mxu0
      %v2288 = vadd.f32 %v1901, %v2287
      %v2289 = vpop.f32.mrf.mxu0
      %2290 = vmatprep.mubr.f32.mxu0 0.0
      %2291 = vmatmul.mubr.f32.gmra.mxu0 %v1983
      %v2292 = vpop.f32.mrf.mxu0
      %v2293 = vadd.f32 %v1901, %v2292
      %v2294 = vpop.f32.mrf.mxu0
      %2295 = vmatprep.mubr.f32.mxu0 0.0
      %2296 = vmatmul.mubr.f32.gmra.mxu0 %v1986
      %v2297 = vpop.f32.mrf.mxu0
      %v2298 = vadd.f32 %v1901, %v2297
      %v2299 = vpop.f32.mrf.mxu0
      %2300 = vmatprep.mubr.f32.mxu0 0.0
      %2301 = vmatmul.mubr.f32.gmra.mxu0 %v1989
      %v2302 = vpop.f32.mrf.mxu0
      %v2303 = vadd.f32 %v1901, %v2302
      %v2304 = vpop.f32.mrf.mxu0
      %2305 = vmatprep.mubr.f32.mxu0 0.0
      %2306 = vmatmul.mubr.f32.gmra.mxu0 %v1992
      %v2307 = vpop.f32.mrf.mxu0
      %v2308 = vadd.f32 %v1901, %v2307
      %v2309 = vpop.f32.mrf.mxu0
      %2310 = vmatprep.mubr.f32.mxu0 0.0
      %2311 = vmatmul.mubr.f32.gmra.mxu0 %v1995
      %v2312 = vpop.f32.mrf.mxu0
      %v2313 = vadd.f32 %v1901, %v2312
      %v2314 = vpop.f32.mrf.mxu0
      %2315 = vmatprep.mubr.f32.mxu0 0.0
      %2316 = vmatmul.mubr.f32.gmra.mxu0 %v1998
      %v2317 = vpop.f32.mrf.mxu0
      %v2318 = vadd.f32 %v1901, %v2317
      %v2319 = vpop.f32.mrf.mxu0
      %2320 = vmatprep.mubr.f32.mxu0 0.0
      %2321 = vmatmul.mubr.f32.gmra.mxu0 %v2001
      %v2322 = vpop.f32.mrf.mxu0
      %v2323 = vadd.f32 %v1901, %v2322
      %v2324 = vpop.f32.mrf.mxu0
      %2325 = vmatprep.mubr.f32.mxu0 0.0
      %2326 = vmatmul.mubr.f32.gmra.mxu0 %v2004
      %v2327 = vpop.f32.mrf.mxu0
      %v2328 = vadd.f32 %v1901, %v2327
      %v2329 = vpop.f32.mrf.mxu0
      %2330 = vmatprep.mubr.f32.mxu0 0.0
      %2331 = vmatmul.mubr.f32.gmra.mxu0 %v2007
      %v2332 = vpop.f32.mrf.mxu0
      %v2333 = vadd.f32 %v1901, %v2332
      %v2334 = vpop.f32.mrf.mxu0
      %2335 = vmatprep.mubr.f32.mxu0 0.0
      %2336 = vmatmul.mubr.f32.gmra.mxu0 %v2010
      %v2337 = vpop.f32.mrf.mxu0
      %v2338 = vadd.f32 %v1901, %v2337
      %v2339 = vpop.f32.mrf.mxu0
      %2340 = vmatprep.mubr.f32.mxu0 0.0
      %2341 = vmatmul.mubr.f32.gmra.mxu0 %v2013
      %v2342 = vpop.f32.mrf.mxu0
      %v2343 = vadd.f32 %v1901, %v2342
      %v2344 = vpop.f32.mrf.mxu0
      %2345 = vmatprep.mubr.f32.mxu0 0.0
      %2346 = vmatmul.mubr.f32.gmra.mxu0 %v2016
      %v2347 = vpop.f32.mrf.mxu0
      %v2348 = vadd.f32 %v1901, %v2347
      %v2349 = vpop.f32.mrf.mxu0
      %2350 = vmatprep.mubr.f32.mxu0 0.0
      %2351 = vmatmul.mubr.f32.gmra.mxu0 %v2019
      %v2352 = vpop.f32.mrf.mxu0
      %v2353 = vadd.f32 %v1901, %v2352
      %v2354 = vpop.f32.mrf.mxu0
      %2355 = vmatprep.mubr.f32.mxu0 0.0
      %2356 = vmatmul.mubr.f32.gmra.mxu0 %v2022
      %v2357 = vpop.f32.mrf.mxu0
      %v2358 = vadd.f32 %v1901, %v2357
      %v2359 = vpop.f32.mrf.mxu0
      %2360 = vmatprep.mubr.f32.mxu0 0.0
      %2361 = vmatmul.mubr.f32.gmra.mxu0 %v2025
      %v2362 = vpop.f32.mrf.mxu0
      %v2363 = vadd.f32 %v1901, %v2362
      %v2364 = vpop.f32.mrf.mxu0
      %2365 = vmatprep.mubr.f32.mxu0 0.0
      %2366 = vmatmul.mubr.f32.gmra.mxu0 %v2028
      %v2367 = vpop.f32.mrf.mxu0
      %v2368 = vadd.f32 %v1901, %v2367
      %v2369 = vpop.f32.mrf.mxu0
      %2370 = vmatprep.mubr.f32.mxu0 0.0
      %2371 = vmatmul.mubr.f32.gmra.mxu0 %v2031
      %v2372 = vpop.f32.mrf.mxu0
      %v2373 = vadd.f32 %v1901, %v2372
      %v2374 = vpop.f32.mrf.mxu0
      %2375 = vmatprep.mubr.f32.mxu0 0.0
      %2376 = vmatmul.mubr.f32.gmra.mxu0 %v2034
      %v2377 = vpop.f32.mrf.mxu0
      %v2378 = vadd.f32 %v1901, %v2377
      %v2379 = vpop.f32.mrf.mxu0
      %2380 = vmatprep.mubr.f32.mxu0 0.0
      %2381 = vmatmul.mubr.f32.gmra.mxu0 %v2037
      %v2382 = vpop.f32.mrf.mxu0
      %v2383 = vadd.f32 %v1901, %v2382
      %v2384 = vpop.f32.mrf.mxu0
      %2385 = vmatprep.mubr.f32.mxu0 0.0
      %2386 = vmatmul.mubr.f32.gmra.mxu0 %v2040
      %v2387 = vpop.f32.mrf.mxu0
      %v2388 = vadd.f32 %v1901, %v2387
      %v2389 = vpop.f32.mrf.mxu0
      %2390 = vmatprep.mubr.f32.mxu0 0.0
      %2391 = vmatmul.mubr.f32.gmra.mxu0 %v2043
      %v2392 = vpop.f32.mrf.mxu0
      %v2393 = vadd.f32 %v1901, %v2392
      %v2394 = vpop.f32.mrf.mxu0
      %2395 = vmatprep.mubr.f32.mxu0 0.0
      %2396 = vmatmul.mubr.f32.gmra.mxu0 %v2046
      %v2397 = vpop.f32.mrf.mxu0
      %v2398 = vadd.f32 %v1901, %v2397
      %v2399 = vpop.f32.mrf.mxu0
      %2400 = vmatprep.mubr.f32.mxu0 0.0
      %2401 = vmatmul.mubr.f32.gmra.mxu0 %v2049
      %v2402 = vpop.f32.mrf.mxu0
      %v2403 = vadd.f32 %v1901, %v2402
      %v2404 = vpop.f32.mrf.mxu0
      %2405 = vmatprep.mubr.f32.mxu0 0.0
      %2406 = vmatmul.mubr.f32.gmra.mxu0 %v2052
      %v2407 = vpop.f32.mrf.mxu0
      %v2408 = vadd.f32 %v1901, %v2407
      %v2409 = vpop.f32.mrf.mxu0
      %2410 = vmatprep.mubr.f32.mxu0 0.0
      %2411 = vmatmul.mubr.f32.gmra.mxu0 %v2055
      %v2412 = vpop.f32.mrf.mxu0
      %v2413 = vadd.f32 %v1901, %v2412
      %v2414 = vpop.f32.mrf.mxu0
      %2415 = vmatprep.mubr.f32.mxu0 0.0
      %2416 = vmatmul.mubr.f32.gmra.mxu0 %v2058
      %v2417 = vpop.f32.mrf.mxu0
      %v2418 = vadd.f32 %v1901, %v2417
      %v2419 = vpop.f32.mrf.mxu0
      %2420 = vmatprep.mubr.f32.mxu0 0.0
      %2421 = vmatmul.mubr.f32.gmra.mxu0 %v2061
      %v2422 = vpop.f32.mrf.mxu0
      %v2423 = vadd.f32 %v1901, %v2422
      %v2424 = vpop.f32.mrf.mxu0
      %2425 = vmatprep.mubr.f32.mxu0 0.0
      %2426 = vmatmul.mubr.f32.gmra.mxu0 %v2064
      %v2427 = vpop.f32.mrf.mxu0
      %v2428 = vadd.f32 %v1901, %v2427
      %v2429 = vpop.f32.mrf.mxu0
      %2430 = vmatprep.mubr.f32.mxu0 0.0
      %2431 = vmatmul.mubr.f32.gmra.mxu0 %v2067
      %v2432 = vpop.f32.mrf.mxu0
      %v2433 = vadd.f32 %v1901, %v2432
      %v2434 = vpop.f32.mrf.mxu0
      %2435 = vmatprep.mubr.f32.mxu0 0.0
      %2436 = vmatmul.mubr.f32.gmra.mxu0 %v2070
      %v2437 = vpop.f32.mrf.mxu0
      %v2438 = vadd.f32 %v1901, %v2437
      %v2439 = vpop.f32.mrf.mxu0
      %2440 = vmatprep.mubr.f32.mxu0 0.0
      %2441 = vmatmul.mubr.f32.gmra.mxu0 %v2073
      %v2442 = vpop.f32.mrf.mxu0
      %v2443 = vadd.f32 %v1901, %v2442
      %v2444 = vpop.f32.mrf.mxu0
      %2445 = vmatprep.mubr.f32.mxu0 0.0
      %2446 = vmatmul.mubr.f32.gmra.mxu0 %v2076
      %v2447 = vpop.f32.mrf.mxu0
      %v2448 = vadd.f32 %v1901, %v2447
      %v2449 = vpop.f32.mrf.mxu0
      %2450 = vmatprep.mubr.f32.mxu0 0.0
      %2451 = vmatmul.mubr.f32.gmra.mxu0 %v2079
      %v2452 = vpop.f32.mrf.mxu0
      %v2453 = vadd.f32 %v1901, %v2452
      %v2454 = vpop.f32.mrf.mxu0
      %2455 = vmatprep.mubr.f32.mxu0 0.0
      %2456 = vmatmul.mubr.f32.gmra.mxu0 %v2082
      %v2457 = vpop.f32.mrf.mxu0
      %v2458 = vadd.f32 %v1901, %v2457
      %v2459 = vpop.f32.mrf.mxu0
      %2460 = vmatprep.mubr.f32.mxu0 0.0
      %2461 = vmatmul.mubr.f32.gmra.mxu0 %v2085
      %v2462 = vpop.f32.mrf.mxu0
      %v2463 = vadd.f32 %v1901, %v2462
      %v2464 = vpop.f32.mrf.mxu0
      %2465 = vmatprep.mubr.f32.mxu0 0.0
      %2466 = vmatmul.mubr.f32.gmra.mxu0 %v2088
      %v2467 = vpop.f32.mrf.mxu0
      %v2468 = vadd.f32 %v1901, %v2467
      %v2469 = vpop.f32.mrf.mxu0
      %2470 = vmatprep.mubr.f32.mxu0 0.0
      %2471 = vmatmul.mubr.f32.gmra.mxu0 %v2091
      %v2472 = vpop.f32.mrf.mxu0
      %v2473 = vadd.f32 %v1901, %v2472
      %v2474 = vpop.f32.mrf.mxu0
      %2475 = vmatprep.mubr.f32.mxu0 0.0
      %2476 = vmatmul.mubr.f32.gmra.mxu0 %v2094
      %v2477 = vpop.f32.mrf.mxu0
      %v2478 = vadd.f32 %v1901, %v2477
      %v2479 = vpop.f32.mrf.mxu0
      %2480 = vdwg.mxu0
      %v2481 = vtanh.pop %v2163
      %v2482 = vtanh.pop %v2168
      %v2483 = vtanh.pop %v2173
      %v2484 = vtanh.pop %v2178
      %v2485 = vtanh.pop %v2183
      %v2486 = vtanh.pop %v2188
      %v2487 = vtanh.pop %v2193
      %v2488 = vtanh.pop %v2198
      %v2489 = vtanh.pop %v2203
      %v2490 = vtanh.pop %v2208
      %v2491 = vtanh.pop %v2213
      %v2492 = vtanh.pop %v2218
      %v2493 = vtanh.pop %v2223
      %v2494 = vtanh.pop %v2228
      %v2495 = vtanh.pop %v2233
      %v2496 = vtanh.pop %v2238
      %v2497 = vtanh.pop %v2243
      %v2498 = vtanh.pop %v2248
      %v2499 = vtanh.pop %v2253
      %v2500 = vtanh.pop %v2258
      %v2501 = vtanh.pop %v2263
      %v2502 = vtanh.pop %v2268
      %v2503 = vtanh.pop %v2273
      %v2504 = vtanh.pop %v2278
      %v2505 = vtanh.pop %v2283
      %v2506 = vtanh.pop %v2288
      %v2507 = vtanh.pop %v2293
      %v2508 = vtanh.pop %v2298
      %v2509 = vtanh.pop %v2303
      %v2510 = vtanh.pop %v2308
      %v2511 = vtanh.pop %v2313
      %v2512 = vtanh.pop %v2318
      %v2513 = vtanh.pop %v2323
      %v2514 = vtanh.pop %v2328
      %v2515 = vtanh.pop %v2333
      %v2516 = vtanh.pop %v2338
      %v2517 = vtanh.pop %v2343
      %v2518 = vtanh.pop %v2348
      %v2519 = vtanh.pop %v2353
      %v2520 = vtanh.pop %v2358
      %v2521 = vtanh.pop %v2363
      %v2522 = vtanh.pop %v2368
      %v2523 = vtanh.pop %v2373
      %v2524 = vtanh.pop %v2378
      %v2525 = vtanh.pop %v2383
      %v2526 = vtanh.pop %v2388
      %v2527 = vtanh.pop %v2393
      %v2528 = vtanh.pop %v2398
      %v2529 = vtanh.pop %v2403
      %v2530 = vtanh.pop %v2408
      %v2531 = vtanh.pop %v2413
      %v2532 = vtanh.pop %v2418
      %v2533 = vtanh.pop %v2423
      %v2534 = vtanh.pop %v2428
      %v2535 = vtanh.pop %v2433
      %v2536 = vtanh.pop %v2438
      %v2537 = vtanh.pop %v2443
      %v2538 = vtanh.pop %v2448
      %v2539 = vtanh.pop %v2453
      %v2540 = vtanh.pop %v2458
      %v2541 = vtanh.pop %v2463
      %v2542 = vtanh.pop %v2468
      %v2543 = vtanh.pop %v2473
      %v2544 = vtanh.pop %v2478
      %v2545 = vld [vmem:[%s7] sm:$0xff]
      %v2546 = vld [vmem:[%s7 + $0x8] sm:$0xff]
      %v2547 = vld [vmem:[%s7 + $0x10] sm:$0xff]
      %v2548 = vld [vmem:[%s7 + $0x18] sm:$0xff]
      %v2549 = vld [vmem:[%s7 + $0x20] sm:$0xff]
      %v2550 = vld [vmem:[%s7 + $0x28] sm:$0xff]
      %v2551 = vld [vmem:[%s7 + $0x30] sm:$0xff]
      %v2552 = vld [vmem:[%s7 + $0x38] sm:$0xff]
      %v2553 = vld [vmem:[%s8] sm:$0x1]
      %v2555 = vlaneseq
      %v2556 = vshrl.u32 %v2555, 7
      %v2557 = vsub.s32 0, %v2556
      %v2558 = vrot.slane %v2553, %v2557
      %v2561 = vsel %vm1903, %v2481, 0
      %v2564 = vsel %vm1903, %v2482, 0
      %v2567 = vsel %vm1903, %v2483, 0
      %v2570 = vsel %vm1903, %v2484, 0
      %v2573 = vsel %vm1903, %v2485, 0
      %v2576 = vsel %vm1903, %v2486, 0
      %v2579 = vsel %vm1903, %v2487, 0
      %v2582 = vsel %vm1903, %v2488, 0
      %v2585 = vsel %vm1903, %v2489, 0
      %v2588 = vsel %vm1903, %v2490, 0
      %v2591 = vsel %vm1903, %v2491, 0
      %v2594 = vsel %vm1903, %v2492, 0
      %v2597 = vsel %vm1903, %v2493, 0
      %v2600 = vsel %vm1903, %v2494, 0
      %v2603 = vsel %vm1903, %v2495, 0
      %v2606 = vsel %vm1903, %v2496, 0
      %v2609 = vsel %vm1903, %v2497, 0
      %v2612 = vsel %vm1903, %v2498, 0
      %v2615 = vsel %vm1903, %v2499, 0
      %v2618 = vsel %vm1903, %v2500, 0
      %v2621 = vsel %vm1903, %v2501, 0
      %v2624 = vsel %vm1903, %v2502, 0
      %v2627 = vsel %vm1903, %v2503, 0
      %v2630 = vsel %vm1903, %v2504, 0
      %v2633 = vsel %vm1903, %v2505, 0
      %v2636 = vsel %vm1903, %v2506, 0
      %v2639 = vsel %vm1903, %v2507, 0
      %v2642 = vsel %vm1903, %v2508, 0
      %v2645 = vsel %vm1903, %v2509, 0
      %v2648 = vsel %vm1903, %v2510, 0
      %v2651 = vsel %vm1903, %v2511, 0
      %v2654 = vsel %vm1903, %v2512, 0
      %v2657 = vsel %vm1903, %v2513, 0
      %v2660 = vsel %vm1903, %v2514, 0
      %v2663 = vsel %vm1903, %v2515, 0
      %v2666 = vsel %vm1903, %v2516, 0
      %v2669 = vsel %vm1903, %v2517, 0
      %v2672 = vsel %vm1903, %v2518, 0
      %v2675 = vsel %vm1903, %v2519, 0
      %v2678 = vsel %vm1903, %v2520, 0
      %v2681 = vsel %vm1903, %v2521, 0
      %v2684 = vsel %vm1903, %v2522, 0
      %v2687 = vsel %vm1903, %v2523, 0
      %v2690 = vsel %vm1903, %v2524, 0
      %v2693 = vsel %vm1903, %v2525, 0
      %v2696 = vsel %vm1903, %v2526, 0
      %v2699 = vsel %vm1903, %v2527, 0
      %v2702 = vsel %vm1903, %v2528, 0
      %v2705 = vsel %vm1903, %v2529, 0
      %v2708 = vsel %vm1903, %v2530, 0
      %v2711 = vsel %vm1903, %v2531, 0
      %v2714 = vsel %vm1903, %v2532, 0
      %v2717 = vsel %vm1903, %v2533, 0
      %v2720 = vsel %vm1903, %v2534, 0
      %v2723 = vsel %vm1903, %v2535, 0
      %v2726 = vsel %vm1903, %v2536, 0
      %v2729 = vsel %vm1903, %v2537, 0
      %v2732 = vsel %vm1903, %v2538, 0
      %v2735 = vsel %vm1903, %v2539, 0
      %v2738 = vsel %vm1903, %v2540, 0
      %v2741 = vsel %vm1903, %v2541, 0
      %v2744 = vsel %vm1903, %v2542, 0
      %v2747 = vsel %vm1903, %v2543, 0
      %v2750 = vsel %vm1903, %v2544, 0
      %2752 = vmatprep.subr.mxu0 0.0
      %2753 = vmatpush1.msra.mxu0 0.0
      %2754 = vmatprep.subr.mxu0 0.0
      %2755 = vmatpush1.msra.mxu0 0.0
      %2756 = vmatprep.subr.mxu0 0.0
      %2757 = vmatpush1.msra.mxu0 0.0
      %2758 = vmatprep.subr.mxu0 0.0
      %2759 = vmatpush1.msra.mxu0 0.0
      %2760 = vmatprep.subr.mxu0 0.0
      %2761 = vmatpush1.msra.mxu0 0.0
      %2762 = vmatprep.subr.mxu0 0.0
      %2763 = vmatpush1.msra.mxu0 0.0
      %2764 = vmatprep.subr.mxu0 0.0
      %2765 = vmatpush1.msra.mxu0 0.0
      %2766 = vmatprep.subr.mxu0 0.0
      %2767 = vmatpush1.msra.mxu0 0.0
      %2768 = vmatprep.subr.mxu0 0.0
      %2769 = vmatpush1.msra.mxu0 %v2552
      %2770 = vmatprep.subr.mxu0 0.0
      %2771 = vmatpush1.msra.mxu0 %v2551
      %2772 = vmatprep.subr.mxu0 0.0
      %2773 = vmatpush1.msra.mxu0 %v2550
      %2774 = vmatprep.subr.mxu0 0.0
      %2775 = vmatpush1.msra.mxu0 %v2549
      %2776 = vmatprep.subr.mxu0 0.0
      %2777 = vmatpush1.msra.mxu0 %v2548
      %2778 = vmatprep.subr.mxu0 0.0
      %2779 = vmatpush1.msra.mxu0 %v2547
      %2780 = vmatprep.subr.mxu0 0.0
      %2781 = vmatpush1.msra.mxu0 %v2546
      %2782 = vmatprep.subr.mxu0 0.0
      %2783 = vmatpush1.msra.mxu0 %v2545
      %2784 = vmatprep.subr.mxu0 0.0
      %2785 = vmatpush2.msra.mxu0 0.0
      %2786 = vmatprep.subr.mxu0 0.0
      %2787 = vmatpush2.msra.mxu0 0.0
      %2788 = vmatprep.subr.mxu0 0.0
      %2789 = vmatpush2.msra.mxu0 0.0
      %2790 = vmatprep.subr.mxu0 0.0
      %2791 = vmatpush2.msra.mxu0 0.0
      %2792 = vmatprep.subr.mxu0 0.0
      %2793 = vmatpush2.msra.mxu0 0.0
      %2794 = vmatprep.subr.mxu0 0.0
      %2795 = vmatpush2.msra.mxu0 0.0
      %2796 = vmatprep.subr.mxu0 0.0
      %2797 = vmatpush2.msra.mxu0 0.0
      %2798 = vmatprep.subr.mxu0 0.0
      %2799 = vmatpush2.msra.mxu0 0.0
      %2800 = vmatprep.subr.mxu0 0.0
      %2801 = vmatpush2.msra.mxu0 0.0
      %2802 = vmatprep.subr.mxu0 0.0
      %2803 = vmatpush2.msra.mxu0 0.0
      %2804 = vmatprep.subr.mxu0 0.0
      %2805 = vmatpush2.msra.mxu0 0.0
      %2806 = vmatprep.subr.mxu0 0.0
      %2807 = vmatpush2.msra.mxu0 0.0
      %2808 = vmatprep.subr.mxu0 0.0
      %2809 = vmatpush2.msra.mxu0 0.0
      %2810 = vmatprep.subr.mxu0 0.0
      %2811 = vmatpush2.msra.mxu0 0.0
      %2812 = vmatprep.subr.mxu0 0.0
      %2813 = vmatpush2.msra.mxu0 0.0
      %2814 = vmatprep.subr.mxu0 0.0
      %2815 = vmatpush2.msra.mxu0 0.0
      %2816 = vmatprep.mubr.f32.mxu0 0.0
      %2817 = vmatmul.mubr.f32.gmra.mxu0 %v2561
      %v2818 = vpop.f32.mrf.mxu0
      %v2819 = vadd.f32 %v2558, %v2818
      %v2820 = vpop.f32.mrf.mxu0
      %2821 = vmatprep.mubr.f32.mxu0 0.0
      %2822 = vmatmul.mubr.f32.gmra.mxu0 %v2564
      %v2823 = vpop.f32.mrf.mxu0
      %v2824 = vadd.f32 %v2558, %v2823
      %v2825 = vpop.f32.mrf.mxu0
      %2826 = vmatprep.mubr.f32.mxu0 0.0
      %2827 = vmatmul.mubr.f32.gmra.mxu0 %v2567
      %v2828 = vpop.f32.mrf.mxu0
      %v2829 = vadd.f32 %v2558, %v2828
      %v2830 = vpop.f32.mrf.mxu0
      %2831 = vmatprep.mubr.f32.mxu0 0.0
      %2832 = vmatmul.mubr.f32.gmra.mxu0 %v2570
      %v2833 = vpop.f32.mrf.mxu0
      %v2834 = vadd.f32 %v2558, %v2833
      %v2835 = vpop.f32.mrf.mxu0
      %2836 = vmatprep.mubr.f32.mxu0 0.0
      %2837 = vmatmul.mubr.f32.gmra.mxu0 %v2573
      %v2838 = vpop.f32.mrf.mxu0
      %v2839 = vadd.f32 %v2558, %v2838
      %v2840 = vpop.f32.mrf.mxu0
      %2841 = vmatprep.mubr.f32.mxu0 0.0
      %2842 = vmatmul.mubr.f32.gmra.mxu0 %v2576
      %v2843 = vpop.f32.mrf.mxu0
      %v2844 = vadd.f32 %v2558, %v2843
      %v2845 = vpop.f32.mrf.mxu0
      %2846 = vmatprep.mubr.f32.mxu0 0.0
      %2847 = vmatmul.mubr.f32.gmra.mxu0 %v2579
      %v2848 = vpop.f32.mrf.mxu0
      %v2849 = vadd.f32 %v2558, %v2848
      %v2850 = vpop.f32.mrf.mxu0
      %2851 = vmatprep.mubr.f32.mxu0 0.0
      %2852 = vmatmul.mubr.f32.gmra.mxu0 %v2582
      %v2853 = vpop.f32.mrf.mxu0
      %v2854 = vadd.f32 %v2558, %v2853
      %v2855 = vpop.f32.mrf.mxu0
      %2856 = vmatprep.mubr.f32.mxu0 0.0
      %2857 = vmatmul.mubr.f32.gmra.mxu0 %v2585
      %v2858 = vpop.f32.mrf.mxu0
      %v2859 = vadd.f32 %v2558, %v2858
      %v2860 = vpop.f32.mrf.mxu0
      %2861 = vmatprep.mubr.f32.mxu0 0.0
      %2862 = vmatmul.mubr.f32.gmra.mxu0 %v2588
      %v2863 = vpop.f32.mrf.mxu0
      %v2864 = vadd.f32 %v2558, %v2863
      %v2865 = vpop.f32.mrf.mxu0
      %2866 = vmatprep.mubr.f32.mxu0 0.0
      %2867 = vmatmul.mubr.f32.gmra.mxu0 %v2591
      %v2868 = vpop.f32.mrf.mxu0
      %v2869 = vadd.f32 %v2558, %v2868
      %v2870 = vpop.f32.mrf.mxu0
      %2871 = vmatprep.mubr.f32.mxu0 0.0
      %2872 = vmatmul.mubr.f32.gmra.mxu0 %v2594
      %v2873 = vpop.f32.mrf.mxu0
      %v2874 = vadd.f32 %v2558, %v2873
      %v2875 = vpop.f32.mrf.mxu0
      %2876 = vmatprep.mubr.f32.mxu0 0.0
      %2877 = vmatmul.mubr.f32.gmra.mxu0 %v2597
      %v2878 = vpop.f32.mrf.mxu0
      %v2879 = vadd.f32 %v2558, %v2878
      %v2880 = vpop.f32.mrf.mxu0
      %2881 = vmatprep.mubr.f32.mxu0 0.0
      %2882 = vmatmul.mubr.f32.gmra.mxu0 %v2600
      %v2883 = vpop.f32.mrf.mxu0
      %v2884 = vadd.f32 %v2558, %v2883
      %v2885 = vpop.f32.mrf.mxu0
      %2886 = vmatprep.mubr.f32.mxu0 0.0
      %2887 = vmatmul.mubr.f32.gmra.mxu0 %v2603
      %v2888 = vpop.f32.mrf.mxu0
      %v2889 = vadd.f32 %v2558, %v2888
      %v2890 = vpop.f32.mrf.mxu0
      %2891 = vmatprep.mubr.f32.mxu0 0.0
      %2892 = vmatmul.mubr.f32.gmra.mxu0 %v2606
      %v2893 = vpop.f32.mrf.mxu0
      %v2894 = vadd.f32 %v2558, %v2893
      %v2895 = vpop.f32.mrf.mxu0
      %2896 = vmatprep.mubr.f32.mxu0 0.0
      %2897 = vmatmul.mubr.f32.gmra.mxu0 %v2609
      %v2898 = vpop.f32.mrf.mxu0
      %v2899 = vadd.f32 %v2558, %v2898
      %v2900 = vpop.f32.mrf.mxu0
      %2901 = vmatprep.mubr.f32.mxu0 0.0
      %2902 = vmatmul.mubr.f32.gmra.mxu0 %v2612
      %v2903 = vpop.f32.mrf.mxu0
      %v2904 = vadd.f32 %v2558, %v2903
      %v2905 = vpop.f32.mrf.mxu0
      %2906 = vmatprep.mubr.f32.mxu0 0.0
      %2907 = vmatmul.mubr.f32.gmra.mxu0 %v2615
      %v2908 = vpop.f32.mrf.mxu0
      %v2909 = vadd.f32 %v2558, %v2908
      %v2910 = vpop.f32.mrf.mxu0
      %2911 = vmatprep.mubr.f32.mxu0 0.0
      %2912 = vmatmul.mubr.f32.gmra.mxu0 %v2618
      %v2913 = vpop.f32.mrf.mxu0
      %v2914 = vadd.f32 %v2558, %v2913
      %v2915 = vpop.f32.mrf.mxu0
      %2916 = vmatprep.mubr.f32.mxu0 0.0
      %2917 = vmatmul.mubr.f32.gmra.mxu0 %v2621
      %v2918 = vpop.f32.mrf.mxu0
      %v2919 = vadd.f32 %v2558, %v2918
      %v2920 = vpop.f32.mrf.mxu0
      %2921 = vmatprep.mubr.f32.mxu0 0.0
      %2922 = vmatmul.mubr.f32.gmra.mxu0 %v2624
      %v2923 = vpop.f32.mrf.mxu0
      %v2924 = vadd.f32 %v2558, %v2923
      %v2925 = vpop.f32.mrf.mxu0
      %2926 = vmatprep.mubr.f32.mxu0 0.0
      %2927 = vmatmul.mubr.f32.gmra.mxu0 %v2627
      %v2928 = vpop.f32.mrf.mxu0
      %v2929 = vadd.f32 %v2558, %v2928
      %v2930 = vpop.f32.mrf.mxu0
      %2931 = vmatprep.mubr.f32.mxu0 0.0
      %2932 = vmatmul.mubr.f32.gmra.mxu0 %v2630
      %v2933 = vpop.f32.mrf.mxu0
      %v2934 = vadd.f32 %v2558, %v2933
      %v2935 = vpop.f32.mrf.mxu0
      %2936 = vmatprep.mubr.f32.mxu0 0.0
      %2937 = vmatmul.mubr.f32.gmra.mxu0 %v2633
      %v2938 = vpop.f32.mrf.mxu0
      %v2939 = vadd.f32 %v2558, %v2938
      %v2940 = vpop.f32.mrf.mxu0
      %2941 = vmatprep.mubr.f32.mxu0 0.0
      %2942 = vmatmul.mubr.f32.gmra.mxu0 %v2636
      %v2943 = vpop.f32.mrf.mxu0
      %v2944 = vadd.f32 %v2558, %v2943
      %v2945 = vpop.f32.mrf.mxu0
      %2946 = vmatprep.mubr.f32.mxu0 0.0
      %2947 = vmatmul.mubr.f32.gmra.mxu0 %v2639
      %v2948 = vpop.f32.mrf.mxu0
      %v2949 = vadd.f32 %v2558, %v2948
      %v2950 = vpop.f32.mrf.mxu0
      %2951 = vmatprep.mubr.f32.mxu0 0.0
      %2952 = vmatmul.mubr.f32.gmra.mxu0 %v2642
      %v2953 = vpop.f32.mrf.mxu0
      %v2954 = vadd.f32 %v2558, %v2953
      %v2955 = vpop.f32.mrf.mxu0
      %2956 = vmatprep.mubr.f32.mxu0 0.0
      %2957 = vmatmul.mubr.f32.gmra.mxu0 %v2645
      %v2958 = vpop.f32.mrf.mxu0
      %v2959 = vadd.f32 %v2558, %v2958
      %v2960 = vpop.f32.mrf.mxu0
      %2961 = vmatprep.mubr.f32.mxu0 0.0
      %2962 = vmatmul.mubr.f32.gmra.mxu0 %v2648
      %v2963 = vpop.f32.mrf.mxu0
      %v2964 = vadd.f32 %v2558, %v2963
      %v2965 = vpop.f32.mrf.mxu0
      %2966 = vmatprep.mubr.f32.mxu0 0.0
      %2967 = vmatmul.mubr.f32.gmra.mxu0 %v2651
      %v2968 = vpop.f32.mrf.mxu0
      %v2969 = vadd.f32 %v2558, %v2968
      %v2970 = vpop.f32.mrf.mxu0
      %2971 = vmatprep.mubr.f32.mxu0 0.0
      %2972 = vmatmul.mubr.f32.gmra.mxu0 %v2654
      %v2973 = vpop.f32.mrf.mxu0
      %v2974 = vadd.f32 %v2558, %v2973
      %v2975 = vpop.f32.mrf.mxu0
      %2976 = vmatprep.mubr.f32.mxu0 0.0
      %2977 = vmatmul.mubr.f32.gmra.mxu0 %v2657
      %v2978 = vpop.f32.mrf.mxu0
      %v2979 = vadd.f32 %v2558, %v2978
      %v2980 = vpop.f32.mrf.mxu0
      %2981 = vmatprep.mubr.f32.mxu0 0.0
      %2982 = vmatmul.mubr.f32.gmra.mxu0 %v2660
      %v2983 = vpop.f32.mrf.mxu0
      %v2984 = vadd.f32 %v2558, %v2983
      %v2985 = vpop.f32.mrf.mxu0
      %2986 = vmatprep.mubr.f32.mxu0 0.0
      %2987 = vmatmul.mubr.f32.gmra.mxu0 %v2663
      %v2988 = vpop.f32.mrf.mxu0
      %v2989 = vadd.f32 %v2558, %v2988
      %v2990 = vpop.f32.mrf.mxu0
      %2991 = vmatprep.mubr.f32.mxu0 0.0
      %2992 = vmatmul.mubr.f32.gmra.mxu0 %v2666
      %v2993 = vpop.f32.mrf.mxu0
      %v2994 = vadd.f32 %v2558, %v2993
      %v2995 = vpop.f32.mrf.mxu0
      %2996 = vmatprep.mubr.f32.mxu0 0.0
      %2997 = vmatmul.mubr.f32.gmra.mxu0 %v2669
      %v2998 = vpop.f32.mrf.mxu0
      %v2999 = vadd.f32 %v2558, %v2998
      %v3000 = vpop.f32.mrf.mxu0
      %3001 = vmatprep.mubr.f32.mxu0 0.0
      %3002 = vmatmul.mubr.f32.gmra.mxu0 %v2672
      %v3003 = vpop.f32.mrf.mxu0
      %v3004 = vadd.f32 %v2558, %v3003
      %v3005 = vpop.f32.mrf.mxu0
      %3006 = vmatprep.mubr.f32.mxu0 0.0
      %3007 = vmatmul.mubr.f32.gmra.mxu0 %v2675
      %v3008 = vpop.f32.mrf.mxu0
      %v3009 = vadd.f32 %v2558, %v3008
      %v3010 = vpop.f32.mrf.mxu0
      %3011 = vmatprep.mubr.f32.mxu0 0.0
      %3012 = vmatmul.mubr.f32.gmra.mxu0 %v2678
      %v3013 = vpop.f32.mrf.mxu0
      %v3014 = vadd.f32 %v2558, %v3013
      %v3015 = vpop.f32.mrf.mxu0
      %3016 = vmatprep.mubr.f32.mxu0 0.0
      %3017 = vmatmul.mubr.f32.gmra.mxu0 %v2681
      %v3018 = vpop.f32.mrf.mxu0
      %v3019 = vadd.f32 %v2558, %v3018
      %v3020 = vpop.f32.mrf.mxu0
      %3021 = vmatprep.mubr.f32.mxu0 0.0
      %3022 = vmatmul.mubr.f32.gmra.mxu0 %v2684
      %v3023 = vpop.f32.mrf.mxu0
      %v3024 = vadd.f32 %v2558, %v3023
      %v3025 = vpop.f32.mrf.mxu0
      %3026 = vmatprep.mubr.f32.mxu0 0.0
      %3027 = vmatmul.mubr.f32.gmra.mxu0 %v2687
      %v3028 = vpop.f32.mrf.mxu0
      %v3029 = vadd.f32 %v2558, %v3028
      %v3030 = vpop.f32.mrf.mxu0
      %3031 = vmatprep.mubr.f32.mxu0 0.0
      %3032 = vmatmul.mubr.f32.gmra.mxu0 %v2690
      %v3033 = vpop.f32.mrf.mxu0
      %v3034 = vadd.f32 %v2558, %v3033
      %v3035 = vpop.f32.mrf.mxu0
      %3036 = vmatprep.mubr.f32.mxu0 0.0
      %3037 = vmatmul.mubr.f32.gmra.mxu0 %v2693
      %v3038 = vpop.f32.mrf.mxu0
      %v3039 = vadd.f32 %v2558, %v3038
      %v3040 = vpop.f32.mrf.mxu0
      %3041 = vmatprep.mubr.f32.mxu0 0.0
      %3042 = vmatmul.mubr.f32.gmra.mxu0 %v2696
      %v3043 = vpop.f32.mrf.mxu0
      %v3044 = vadd.f32 %v2558, %v3043
      %v3045 = vpop.f32.mrf.mxu0
      %3046 = vmatprep.mubr.f32.mxu0 0.0
      %3047 = vmatmul.mubr.f32.gmra.mxu0 %v2699
      %v3048 = vpop.f32.mrf.mxu0
      %v3049 = vadd.f32 %v2558, %v3048
      %v3050 = vpop.f32.mrf.mxu0
      %3051 = vmatprep.mubr.f32.mxu0 0.0
      %3052 = vmatmul.mubr.f32.gmra.mxu0 %v2702
      %v3053 = vpop.f32.mrf.mxu0
      %v3054 = vadd.f32 %v2558, %v3053
      %v3055 = vpop.f32.mrf.mxu0
      %3056 = vmatprep.mubr.f32.mxu0 0.0
      %3057 = vmatmul.mubr.f32.gmra.mxu0 %v2705
      %v3058 = vpop.f32.mrf.mxu0
      %v3059 = vadd.f32 %v2558, %v3058
      %v3060 = vpop.f32.mrf.mxu0
      %3061 = vmatprep.mubr.f32.mxu0 0.0
      %3062 = vmatmul.mubr.f32.gmra.mxu0 %v2708
      %v3063 = vpop.f32.mrf.mxu0
      %v3064 = vadd.f32 %v2558, %v3063
      %v3065 = vpop.f32.mrf.mxu0
      %3066 = vmatprep.mubr.f32.mxu0 0.0
      %3067 = vmatmul.mubr.f32.gmra.mxu0 %v2711
      %v3068 = vpop.f32.mrf.mxu0
      %v3069 = vadd.f32 %v2558, %v3068
      %v3070 = vpop.f32.mrf.mxu0
      %3071 = vmatprep.mubr.f32.mxu0 0.0
      %3072 = vmatmul.mubr.f32.gmra.mxu0 %v2714
      %v3073 = vpop.f32.mrf.mxu0
      %v3074 = vadd.f32 %v2558, %v3073
      %v3075 = vpop.f32.mrf.mxu0
      %3076 = vmatprep.mubr.f32.mxu0 0.0
      %3077 = vmatmul.mubr.f32.gmra.mxu0 %v2717
      %v3078 = vpop.f32.mrf.mxu0
      %v3079 = vadd.f32 %v2558, %v3078
      %v3080 = vpop.f32.mrf.mxu0
      %3081 = vmatprep.mubr.f32.mxu0 0.0
      %3082 = vmatmul.mubr.f32.gmra.mxu0 %v2720
      %v3083 = vpop.f32.mrf.mxu0
      %v3084 = vadd.f32 %v2558, %v3083
      %v3085 = vpop.f32.mrf.mxu0
      %3086 = vmatprep.mubr.f32.mxu0 0.0
      %3087 = vmatmul.mubr.f32.gmra.mxu0 %v2723
      %v3088 = vpop.f32.mrf.mxu0
      %v3089 = vadd.f32 %v2558, %v3088
      %v3090 = vpop.f32.mrf.mxu0
      %3091 = vmatprep.mubr.f32.mxu0 0.0
      %3092 = vmatmul.mubr.f32.gmra.mxu0 %v2726
      %v3093 = vpop.f32.mrf.mxu0
      %v3094 = vadd.f32 %v2558, %v3093
      %v3095 = vpop.f32.mrf.mxu0
      %3096 = vmatprep.mubr.f32.mxu0 0.0
      %3097 = vmatmul.mubr.f32.gmra.mxu0 %v2729
      %v3098 = vpop.f32.mrf.mxu0
      %v3099 = vadd.f32 %v2558, %v3098
      %v3100 = vpop.f32.mrf.mxu0
      %3101 = vmatprep.mubr.f32.mxu0 0.0
      %3102 = vmatmul.mubr.f32.gmra.mxu0 %v2732
      %v3103 = vpop.f32.mrf.mxu0
      %v3104 = vadd.f32 %v2558, %v3103
      %v3105 = vpop.f32.mrf.mxu0
      %3106 = vmatprep.mubr.f32.mxu0 0.0
      %3107 = vmatmul.mubr.f32.gmra.mxu0 %v2735
      %v3108 = vpop.f32.mrf.mxu0
      %v3109 = vadd.f32 %v2558, %v3108
      %v3110 = vpop.f32.mrf.mxu0
      %3111 = vmatprep.mubr.f32.mxu0 0.0
      %3112 = vmatmul.mubr.f32.gmra.mxu0 %v2738
      %v3113 = vpop.f32.mrf.mxu0
      %v3114 = vadd.f32 %v2558, %v3113
      %v3115 = vpop.f32.mrf.mxu0
      %3116 = vmatprep.mubr.f32.mxu0 0.0
      %3117 = vmatmul.mubr.f32.gmra.mxu0 %v2741
      %v3118 = vpop.f32.mrf.mxu0
      %v3119 = vadd.f32 %v2558, %v3118
      %v3120 = vpop.f32.mrf.mxu0
      %3121 = vmatprep.mubr.f32.mxu0 0.0
      %3122 = vmatmul.mubr.f32.gmra.mxu0 %v2744
      %v3123 = vpop.f32.mrf.mxu0
      %v3124 = vadd.f32 %v2558, %v3123
      %v3125 = vpop.f32.mrf.mxu0
      %3126 = vmatprep.mubr.f32.mxu0 0.0
      %3127 = vmatmul.mubr.f32.gmra.mxu0 %v2747
      %v3128 = vpop.f32.mrf.mxu0
      %v3129 = vadd.f32 %v2558, %v3128
      %v3130 = vpop.f32.mrf.mxu0
      %3131 = vmatprep.mubr.f32.mxu0 0.0
      %3132 = vmatmul.mubr.f32.gmra.mxu0 %v2750
      %v3133 = vpop.f32.mrf.mxu0
      %v3134 = vadd.f32 %v2558, %v3133
      %v3135 = vpop.f32.mrf.mxu0
      %3136 = vdwg.mxu0
      %v3137 = vtanh.pop %v2819
      %v3138 = vtanh.pop %v2824
      %v3139 = vtanh.pop %v2829
      %v3140 = vtanh.pop %v2834
      %v3141 = vtanh.pop %v2839
      %v3142 = vtanh.pop %v2844
      %v3143 = vtanh.pop %v2849
      %v3144 = vtanh.pop %v2854
      %v3145 = vtanh.pop %v2859
      %v3146 = vtanh.pop %v2864
      %v3147 = vtanh.pop %v2869
      %v3148 = vtanh.pop %v2874
      %v3149 = vtanh.pop %v2879
      %v3150 = vtanh.pop %v2884
      %v3151 = vtanh.pop %v2889
      %v3152 = vtanh.pop %v2894
      %v3153 = vtanh.pop %v2899
      %v3154 = vtanh.pop %v2904
      %v3155 = vtanh.pop %v2909
      %v3156 = vtanh.pop %v2914
      %v3157 = vtanh.pop %v2919
      %v3158 = vtanh.pop %v2924
      %v3159 = vtanh.pop %v2929
      %v3160 = vtanh.pop %v2934
      %v3161 = vtanh.pop %v2939
      %v3162 = vtanh.pop %v2944
      %v3163 = vtanh.pop %v2949
      %v3164 = vtanh.pop %v2954
      %v3165 = vtanh.pop %v2959
      %v3166 = vtanh.pop %v2964
      %v3167 = vtanh.pop %v2969
      %v3168 = vtanh.pop %v2974
      %v3169 = vtanh.pop %v2979
      %v3170 = vtanh.pop %v2984
      %v3171 = vtanh.pop %v2989
      %v3172 = vtanh.pop %v2994
      %v3173 = vtanh.pop %v2999
      %v3174 = vtanh.pop %v3004
      %v3175 = vtanh.pop %v3009
      %v3176 = vtanh.pop %v3014
      %v3177 = vtanh.pop %v3019
      %v3178 = vtanh.pop %v3024
      %v3179 = vtanh.pop %v3029
      %v3180 = vtanh.pop %v3034
      %v3181 = vtanh.pop %v3039
      %v3182 = vtanh.pop %v3044
      %v3183 = vtanh.pop %v3049
      %v3184 = vtanh.pop %v3054
      %v3185 = vtanh.pop %v3059
      %v3186 = vtanh.pop %v3064
      %v3187 = vtanh.pop %v3069
      %v3188 = vtanh.pop %v3074
      %v3189 = vtanh.pop %v3079
      %v3190 = vtanh.pop %v3084
      %v3191 = vtanh.pop %v3089
      %v3192 = vtanh.pop %v3094
      %v3193 = vtanh.pop %v3099
      %v3194 = vtanh.pop %v3104
      %v3195 = vtanh.pop %v3109
      %v3196 = vtanh.pop %v3114
      %v3197 = vtanh.pop %v3119
      %v3198 = vtanh.pop %v3124
      %v3199 = vtanh.pop %v3129
      %v3200 = vtanh.pop %v3134
      %v3201 = vld [vmem:[%s9] sm:$0xff]
      %v3202 = vld [vmem:[%s9 + $0x8] sm:$0xff]
      %v3203 = vld [vmem:[%s9 + $0x10] sm:$0xff]
      %v3204 = vld [vmem:[%s9 + $0x18] sm:$0xff]
      %v3205 = vld [vmem:[%s9 + $0x20] sm:$0xff]
      %v3206 = vld [vmem:[%s9 + $0x28] sm:$0xff]
      %v3207 = vld [vmem:[%s9 + $0x30] sm:$0xff]
      %v3208 = vld [vmem:[%s9 + $0x38] sm:$0xff]
      %v3209 = vld [vmem:[%s9 + $0x40] sm:$0xff]
      %v3210 = vld [vmem:[%s9 + $0x48] sm:$0xff]
      %v3211 = vld [vmem:[%s9 + $0x50] sm:$0xff]
      %v3212 = vld [vmem:[%s9 + $0x58] sm:$0xff]
      %v3213 = vld [vmem:[%s9 + $0x60] sm:$0xff]
      %v3214 = vld [vmem:[%s9 + $0x68] sm:$0xff]
      %v3215 = vld [vmem:[%s9 + $0x70] sm:$0xff]
      %v3216 = vld [vmem:[%s9 + $0x78] sm:$0xff]
      %v3217 = vld [vmem:[%s10] sm:$0x1]
      %v3219 = vlaneseq
      %v3220 = vshrl.u32 %v3219, 7
      %v3221 = vsub.s32 0, %v3220
      %v3222 = vrot.slane %v3217, %v3221
      %3224 = vmatprep.subr.mxu0 0.0
      %3225 = vmatpush1.msra.mxu0 %v3216
      %3226 = vmatprep.subr.mxu0 0.0
      %3227 = vmatpush1.msra.mxu0 %v3215
      %3228 = vmatprep.subr.mxu0 0.0
      %3229 = vmatpush1.msra.mxu0 %v3214
      %3230 = vmatprep.subr.mxu0 0.0
      %3231 = vmatpush1.msra.mxu0 %v3213
      %3232 = vmatprep.subr.mxu0 0.0
      %3233 = vmatpush1.msra.mxu0 %v3212
      %3234 = vmatprep.subr.mxu0 0.0
      %3235 = vmatpush1.msra.mxu0 %v3211
      %3236 = vmatprep.subr.mxu0 0.0
      %3237 = vmatpush1.msra.mxu0 %v3210
      %3238 = vmatprep.subr.mxu0 0.0
      %3239 = vmatpush1.msra.mxu0 %v3209
      %3240 = vmatprep.subr.mxu0 0.0
      %3241 = vmatpush1.msra.mxu0 %v3208
      %3242 = vmatprep.subr.mxu0 0.0
      %3243 = vmatpush1.msra.mxu0 %v3207
      %3244 = vmatprep.subr.mxu0 0.0
      %3245 = vmatpush1.msra.mxu0 %v3206
      %3246 = vmatprep.subr.mxu0 0.0
      %3247 = vmatpush1.msra.mxu0 %v3205
      %3248 = vmatprep.subr.mxu0 0.0
      %3249 = vmatpush1.msra.mxu0 %v3204
      %3250 = vmatprep.subr.mxu0 0.0
      %3251 = vmatpush1.msra.mxu0 %v3203
      %3252 = vmatprep.subr.mxu0 0.0
      %3253 = vmatpush1.msra.mxu0 %v3202
      %3254 = vmatprep.subr.mxu0 0.0
      %3255 = vmatpush1.msra.mxu0 %v3201
      %3256 = vmatprep.subr.mxu0 0.0
      %3257 = vmatpush2.msra.mxu0 0.0
      %3258 = vmatprep.subr.mxu0 0.0
      %3259 = vmatpush2.msra.mxu0 0.0
      %3260 = vmatprep.subr.mxu0 0.0
      %3261 = vmatpush2.msra.mxu0 0.0
      %3262 = vmatprep.subr.mxu0 0.0
      %3263 = vmatpush2.msra.mxu0 0.0
      %3264 = vmatprep.subr.mxu0 0.0
      %3265 = vmatpush2.msra.mxu0 0.0
      %3266 = vmatprep.subr.mxu0 0.0
      %3267 = vmatpush2.msra.mxu0 0.0
      %3268 = vmatprep.subr.mxu0 0.0
      %3269 = vmatpush2.msra.mxu0 0.0
      %3270 = vmatprep.subr.mxu0 0.0
      %3271 = vmatpush2.msra.mxu0 0.0
      %3272 = vmatprep.subr.mxu0 0.0
      %3273 = vmatpush2.msra.mxu0 0.0
      %3274 = vmatprep.subr.mxu0 0.0
      %3275 = vmatpush2.msra.mxu0 0.0
      %3276 = vmatprep.subr.mxu0 0.0
      %3277 = vmatpush2.msra.mxu0 0.0
      %3278 = vmatprep.subr.mxu0 0.0
      %3279 = vmatpush2.msra.mxu0 0.0
      %3280 = vmatprep.subr.mxu0 0.0
      %3281 = vmatpush2.msra.mxu0 0.0
      %3282 = vmatprep.subr.mxu0 0.0
      %3283 = vmatpush2.msra.mxu0 0.0
      %3284 = vmatprep.subr.mxu0 0.0
      %3285 = vmatpush2.msra.mxu0 0.0
      %3286 = vmatprep.subr.mxu0 0.0
      %3287 = vmatpush2.msra.mxu0 0.0
      %3288 = vmatprep.mubr.f32.mxu0 0.0
      %3289 = vmatmul.mubr.f32.gmra.mxu0 %v3137
      %v3290 = vpop.f32.mrf.mxu0
      %v3291 = vadd.f32 %v3222, %v3290
      %v3292 = vpop.f32.mrf.mxu0
      %3293 = vmatprep.mubr.f32.mxu0 0.0
      %3294 = vmatmul.mubr.f32.gmra.mxu0 %v3138
      %v3295 = vpop.f32.mrf.mxu0
      %v3296 = vadd.f32 %v3222, %v3295
      %v3297 = vpop.f32.mrf.mxu0
      %3298 = vmatprep.mubr.f32.mxu0 0.0
      %3299 = vmatmul.mubr.f32.gmra.mxu0 %v3139
      %v3300 = vpop.f32.mrf.mxu0
      %v3301 = vadd.f32 %v3222, %v3300
      %v3302 = vpop.f32.mrf.mxu0
      %3303 = vmatprep.mubr.f32.mxu0 0.0
      %3304 = vmatmul.mubr.f32.gmra.mxu0 %v3140
      %v3305 = vpop.f32.mrf.mxu0
      %v3306 = vadd.f32 %v3222, %v3305
      %v3307 = vpop.f32.mrf.mxu0
      %3308 = vmatprep.mubr.f32.mxu0 0.0
      %3309 = vmatmul.mubr.f32.gmra.mxu0 %v3141
      %v3310 = vpop.f32.mrf.mxu0
      %v3311 = vadd.f32 %v3222, %v3310
      %v3312 = vpop.f32.mrf.mxu0
      %3313 = vmatprep.mubr.f32.mxu0 0.0
      %3314 = vmatmul.mubr.f32.gmra.mxu0 %v3142
      %v3315 = vpop.f32.mrf.mxu0
      %v3316 = vadd.f32 %v3222, %v3315
      %v3317 = vpop.f32.mrf.mxu0
      %3318 = vmatprep.mubr.f32.mxu0 0.0
      %3319 = vmatmul.mubr.f32.gmra.mxu0 %v3143
      %v3320 = vpop.f32.mrf.mxu0
      %v3321 = vadd.f32 %v3222, %v3320
      %v3322 = vpop.f32.mrf.mxu0
      %3323 = vmatprep.mubr.f32.mxu0 0.0
      %3324 = vmatmul.mubr.f32.gmra.mxu0 %v3144
      %v3325 = vpop.f32.mrf.mxu0
      %v3326 = vadd.f32 %v3222, %v3325
      %v3327 = vpop.f32.mrf.mxu0
      %3328 = vmatprep.mubr.f32.mxu0 0.0
      %3329 = vmatmul.mubr.f32.gmra.mxu0 %v3145
      %v3330 = vpop.f32.mrf.mxu0
      %v3331 = vadd.f32 %v3222, %v3330
      %v3332 = vpop.f32.mrf.mxu0
      %3333 = vmatprep.mubr.f32.mxu0 0.0
      %3334 = vmatmul.mubr.f32.gmra.mxu0 %v3146
      %v3335 = vpop.f32.mrf.mxu0
      %v3336 = vadd.f32 %v3222, %v3335
      %v3337 = vpop.f32.mrf.mxu0
      %3338 = vmatprep.mubr.f32.mxu0 0.0
      %3339 = vmatmul.mubr.f32.gmra.mxu0 %v3147
      %v3340 = vpop.f32.mrf.mxu0
      %v3341 = vadd.f32 %v3222, %v3340
      %v3342 = vpop.f32.mrf.mxu0
      %3343 = vmatprep.mubr.f32.mxu0 0.0
      %3344 = vmatmul.mubr.f32.gmra.mxu0 %v3148
      %v3345 = vpop.f32.mrf.mxu0
      %v3346 = vadd.f32 %v3222, %v3345
      %v3347 = vpop.f32.mrf.mxu0
      %3348 = vmatprep.mubr.f32.mxu0 0.0
      %3349 = vmatmul.mubr.f32.gmra.mxu0 %v3149
      %v3350 = vpop.f32.mrf.mxu0
      %v3351 = vadd.f32 %v3222, %v3350
      %v3352 = vpop.f32.mrf.mxu0
      %3353 = vmatprep.mubr.f32.mxu0 0.0
      %3354 = vmatmul.mubr.f32.gmra.mxu0 %v3150
      %v3355 = vpop.f32.mrf.mxu0
      %v3356 = vadd.f32 %v3222, %v3355
      %v3357 = vpop.f32.mrf.mxu0
      %3358 = vmatprep.mubr.f32.mxu0 0.0
      %3359 = vmatmul.mubr.f32.gmra.mxu0 %v3151
      %v3360 = vpop.f32.mrf.mxu0
      %v3361 = vadd.f32 %v3222, %v3360
      %v3362 = vpop.f32.mrf.mxu0
      %3363 = vmatprep.mubr.f32.mxu0 0.0
      %3364 = vmatmul.mubr.f32.gmra.mxu0 %v3152
      %v3365 = vpop.f32.mrf.mxu0
      %v3366 = vadd.f32 %v3222, %v3365
      %v3367 = vpop.f32.mrf.mxu0
      %3368 = vmatprep.mubr.f32.mxu0 0.0
      %3369 = vmatmul.mubr.f32.gmra.mxu0 %v3153
      %v3370 = vpop.f32.mrf.mxu0
      %v3371 = vadd.f32 %v3222, %v3370
      %v3372 = vpop.f32.mrf.mxu0
      %3373 = vmatprep.mubr.f32.mxu0 0.0
      %3374 = vmatmul.mubr.f32.gmra.mxu0 %v3154
      %v3375 = vpop.f32.mrf.mxu0
      %v3376 = vadd.f32 %v3222, %v3375
      %v3377 = vpop.f32.mrf.mxu0
      %3378 = vmatprep.mubr.f32.mxu0 0.0
      %3379 = vmatmul.mubr.f32.gmra.mxu0 %v3155
      %v3380 = vpop.f32.mrf.mxu0
      %v3381 = vadd.f32 %v3222, %v3380
      %v3382 = vpop.f32.mrf.mxu0
      %3383 = vmatprep.mubr.f32.mxu0 0.0
      %3384 = vmatmul.mubr.f32.gmra.mxu0 %v3156
      %v3385 = vpop.f32.mrf.mxu0
      %v3386 = vadd.f32 %v3222, %v3385
      %v3387 = vpop.f32.mrf.mxu0
      %3388 = vmatprep.mubr.f32.mxu0 0.0
      %3389 = vmatmul.mubr.f32.gmra.mxu0 %v3157
      %v3390 = vpop.f32.mrf.mxu0
      %v3391 = vadd.f32 %v3222, %v3390
      %v3392 = vpop.f32.mrf.mxu0
      %3393 = vmatprep.mubr.f32.mxu0 0.0
      %3394 = vmatmul.mubr.f32.gmra.mxu0 %v3158
      %v3395 = vpop.f32.mrf.mxu0
      %v3396 = vadd.f32 %v3222, %v3395
      %v3397 = vpop.f32.mrf.mxu0
      %3398 = vmatprep.mubr.f32.mxu0 0.0
      %3399 = vmatmul.mubr.f32.gmra.mxu0 %v3159
      %v3400 = vpop.f32.mrf.mxu0
      %v3401 = vadd.f32 %v3222, %v3400
      %v3402 = vpop.f32.mrf.mxu0
      %3403 = vmatprep.mubr.f32.mxu0 0.0
      %3404 = vmatmul.mubr.f32.gmra.mxu0 %v3160
      %v3405 = vpop.f32.mrf.mxu0
      %v3406 = vadd.f32 %v3222, %v3405
      %v3407 = vpop.f32.mrf.mxu0
      %3408 = vmatprep.mubr.f32.mxu0 0.0
      %3409 = vmatmul.mubr.f32.gmra.mxu0 %v3161
      %v3410 = vpop.f32.mrf.mxu0
      %v3411 = vadd.f32 %v3222, %v3410
      %v3412 = vpop.f32.mrf.mxu0
      %3413 = vmatprep.mubr.f32.mxu0 0.0
      %3414 = vmatmul.mubr.f32.gmra.mxu0 %v3162
      %v3415 = vpop.f32.mrf.mxu0
      %v3416 = vadd.f32 %v3222, %v3415
      %v3417 = vpop.f32.mrf.mxu0
      %3418 = vmatprep.mubr.f32.mxu0 0.0
      %3419 = vmatmul.mubr.f32.gmra.mxu0 %v3163
      %v3420 = vpop.f32.mrf.mxu0
      %v3421 = vadd.f32 %v3222, %v3420
      %v3422 = vpop.f32.mrf.mxu0
      %3423 = vmatprep.mubr.f32.mxu0 0.0
      %3424 = vmatmul.mubr.f32.gmra.mxu0 %v3164
      %v3425 = vpop.f32.mrf.mxu0
      %v3426 = vadd.f32 %v3222, %v3425
      %v3427 = vpop.f32.mrf.mxu0
      %3428 = vmatprep.mubr.f32.mxu0 0.0
      %3429 = vmatmul.mubr.f32.gmra.mxu0 %v3165
      %v3430 = vpop.f32.mrf.mxu0
      %v3431 = vadd.f32 %v3222, %v3430
      %v3432 = vpop.f32.mrf.mxu0
      %3433 = vmatprep.mubr.f32.mxu0 0.0
      %3434 = vmatmul.mubr.f32.gmra.mxu0 %v3166
      %v3435 = vpop.f32.mrf.mxu0
      %v3436 = vadd.f32 %v3222, %v3435
      %v3437 = vpop.f32.mrf.mxu0
      %3438 = vmatprep.mubr.f32.mxu0 0.0
      %3439 = vmatmul.mubr.f32.gmra.mxu0 %v3167
      %v3440 = vpop.f32.mrf.mxu0
      %v3441 = vadd.f32 %v3222, %v3440
      %v3442 = vpop.f32.mrf.mxu0
      %3443 = vmatprep.mubr.f32.mxu0 0.0
      %3444 = vmatmul.mubr.f32.gmra.mxu0 %v3168
      %v3445 = vpop.f32.mrf.mxu0
      %v3446 = vadd.f32 %v3222, %v3445
      %v3447 = vpop.f32.mrf.mxu0
      %3448 = vmatprep.mubr.f32.mxu0 0.0
      %3449 = vmatmul.mubr.f32.gmra.mxu0 %v3169
      %v3450 = vpop.f32.mrf.mxu0
      %v3451 = vadd.f32 %v3222, %v3450
      %v3452 = vpop.f32.mrf.mxu0
      %3453 = vmatprep.mubr.f32.mxu0 0.0
      %3454 = vmatmul.mubr.f32.gmra.mxu0 %v3170
      %v3455 = vpop.f32.mrf.mxu0
      %v3456 = vadd.f32 %v3222, %v3455
      %v3457 = vpop.f32.mrf.mxu0
      %3458 = vmatprep.mubr.f32.mxu0 0.0
      %3459 = vmatmul.mubr.f32.gmra.mxu0 %v3171
      %v3460 = vpop.f32.mrf.mxu0
      %v3461 = vadd.f32 %v3222, %v3460
      %v3462 = vpop.f32.mrf.mxu0
      %3463 = vmatprep.mubr.f32.mxu0 0.0
      %3464 = vmatmul.mubr.f32.gmra.mxu0 %v3172
      %v3465 = vpop.f32.mrf.mxu0
      %v3466 = vadd.f32 %v3222, %v3465
      %v3467 = vpop.f32.mrf.mxu0
      %3468 = vmatprep.mubr.f32.mxu0 0.0
      %3469 = vmatmul.mubr.f32.gmra.mxu0 %v3173
      %v3470 = vpop.f32.mrf.mxu0
      %v3471 = vadd.f32 %v3222, %v3470
      %v3472 = vpop.f32.mrf.mxu0
      %3473 = vmatprep.mubr.f32.mxu0 0.0
      %3474 = vmatmul.mubr.f32.gmra.mxu0 %v3174
      %v3475 = vpop.f32.mrf.mxu0
      %v3476 = vadd.f32 %v3222, %v3475
      %v3477 = vpop.f32.mrf.mxu0
      %3478 = vmatprep.mubr.f32.mxu0 0.0
      %3479 = vmatmul.mubr.f32.gmra.mxu0 %v3175
      %v3480 = vpop.f32.mrf.mxu0
      %v3481 = vadd.f32 %v3222, %v3480
      %v3482 = vpop.f32.mrf.mxu0
      %3483 = vmatprep.mubr.f32.mxu0 0.0
      %3484 = vmatmul.mubr.f32.gmra.mxu0 %v3176
      %v3485 = vpop.f32.mrf.mxu0
      %v3486 = vadd.f32 %v3222, %v3485
      %v3487 = vpop.f32.mrf.mxu0
      %3488 = vmatprep.mubr.f32.mxu0 0.0
      %3489 = vmatmul.mubr.f32.gmra.mxu0 %v3177
      %v3490 = vpop.f32.mrf.mxu0
      %v3491 = vadd.f32 %v3222, %v3490
      %v3492 = vpop.f32.mrf.mxu0
      %3493 = vmatprep.mubr.f32.mxu0 0.0
      %3494 = vmatmul.mubr.f32.gmra.mxu0 %v3178
      %v3495 = vpop.f32.mrf.mxu0
      %v3496 = vadd.f32 %v3222, %v3495
      %v3497 = vpop.f32.mrf.mxu0
      %3498 = vmatprep.mubr.f32.mxu0 0.0
      %3499 = vmatmul.mubr.f32.gmra.mxu0 %v3179
      %v3500 = vpop.f32.mrf.mxu0
      %v3501 = vadd.f32 %v3222, %v3500
      %v3502 = vpop.f32.mrf.mxu0
      %3503 = vmatprep.mubr.f32.mxu0 0.0
      %3504 = vmatmul.mubr.f32.gmra.mxu0 %v3180
      %v3505 = vpop.f32.mrf.mxu0
      %v3506 = vadd.f32 %v3222, %v3505
      %v3507 = vpop.f32.mrf.mxu0
      %3508 = vmatprep.mubr.f32.mxu0 0.0
      %3509 = vmatmul.mubr.f32.gmra.mxu0 %v3181
      %v3510 = vpop.f32.mrf.mxu0
      %v3511 = vadd.f32 %v3222, %v3510
      %v3512 = vpop.f32.mrf.mxu0
      %3513 = vmatprep.mubr.f32.mxu0 0.0
      %3514 = vmatmul.mubr.f32.gmra.mxu0 %v3182
      %v3515 = vpop.f32.mrf.mxu0
      %v3516 = vadd.f32 %v3222, %v3515
      %v3517 = vpop.f32.mrf.mxu0
      %3518 = vmatprep.mubr.f32.mxu0 0.0
      %3519 = vmatmul.mubr.f32.gmra.mxu0 %v3183
      %v3520 = vpop.f32.mrf.mxu0
      %v3521 = vadd.f32 %v3222, %v3520
      %v3522 = vpop.f32.mrf.mxu0
      %3523 = vmatprep.mubr.f32.mxu0 0.0
      %3524 = vmatmul.mubr.f32.gmra.mxu0 %v3184
      %v3525 = vpop.f32.mrf.mxu0
      %v3526 = vadd.f32 %v3222, %v3525
      %v3527 = vpop.f32.mrf.mxu0
      %3528 = vmatprep.mubr.f32.mxu0 0.0
      %3529 = vmatmul.mubr.f32.gmra.mxu0 %v3185
      %v3530 = vpop.f32.mrf.mxu0
      %v3531 = vadd.f32 %v3222, %v3530
      %v3532 = vpop.f32.mrf.mxu0
      %3533 = vmatprep.mubr.f32.mxu0 0.0
      %3534 = vmatmul.mubr.f32.gmra.mxu0 %v3186
      %v3535 = vpop.f32.mrf.mxu0
      %v3536 = vadd.f32 %v3222, %v3535
      %v3537 = vpop.f32.mrf.mxu0
      %3538 = vmatprep.mubr.f32.mxu0 0.0
      %3539 = vmatmul.mubr.f32.gmra.mxu0 %v3187
      %v3540 = vpop.f32.mrf.mxu0
      %v3541 = vadd.f32 %v3222, %v3540
      %v3542 = vpop.f32.mrf.mxu0
      %3543 = vmatprep.mubr.f32.mxu0 0.0
      %3544 = vmatmul.mubr.f32.gmra.mxu0 %v3188
      %v3545 = vpop.f32.mrf.mxu0
      %v3546 = vadd.f32 %v3222, %v3545
      %v3547 = vpop.f32.mrf.mxu0
      %3548 = vmatprep.mubr.f32.mxu0 0.0
      %3549 = vmatmul.mubr.f32.gmra.mxu0 %v3189
      %v3550 = vpop.f32.mrf.mxu0
      %v3551 = vadd.f32 %v3222, %v3550
      %v3552 = vpop.f32.mrf.mxu0
      %3553 = vmatprep.mubr.f32.mxu0 0.0
      %3554 = vmatmul.mubr.f32.gmra.mxu0 %v3190
      %v3555 = vpop.f32.mrf.mxu0
      %v3556 = vadd.f32 %v3222, %v3555
      %v3557 = vpop.f32.mrf.mxu0
      %3558 = vmatprep.mubr.f32.mxu0 0.0
      %3559 = vmatmul.mubr.f32.gmra.mxu0 %v3191
      %v3560 = vpop.f32.mrf.mxu0
      %v3561 = vadd.f32 %v3222, %v3560
      %v3562 = vpop.f32.mrf.mxu0
      %3563 = vmatprep.mubr.f32.mxu0 0.0
      %3564 = vmatmul.mubr.f32.gmra.mxu0 %v3192
      %v3565 = vpop.f32.mrf.mxu0
      %v3566 = vadd.f32 %v3222, %v3565
      %v3567 = vpop.f32.mrf.mxu0
      %3568 = vmatprep.mubr.f32.mxu0 0.0
      %3569 = vmatmul.mubr.f32.gmra.mxu0 %v3193
      %v3570 = vpop.f32.mrf.mxu0
      %v3571 = vadd.f32 %v3222, %v3570
      %v3572 = vpop.f32.mrf.mxu0
      %3573 = vmatprep.mubr.f32.mxu0 0.0
      %3574 = vmatmul.mubr.f32.gmra.mxu0 %v3194
      %v3575 = vpop.f32.mrf.mxu0
      %v3576 = vadd.f32 %v3222, %v3575
      %v3577 = vpop.f32.mrf.mxu0
      %3578 = vmatprep.mubr.f32.mxu0 0.0
      %3579 = vmatmul.mubr.f32.gmra.mxu0 %v3195
      %v3580 = vpop.f32.mrf.mxu0
      %v3581 = vadd.f32 %v3222, %v3580
      %v3582 = vpop.f32.mrf.mxu0
      %3583 = vmatprep.mubr.f32.mxu0 0.0
      %3584 = vmatmul.mubr.f32.gmra.mxu0 %v3196
      %v3585 = vpop.f32.mrf.mxu0
      %v3586 = vadd.f32 %v3222, %v3585
      %v3587 = vpop.f32.mrf.mxu0
      %3588 = vmatprep.mubr.f32.mxu0 0.0
      %3589 = vmatmul.mubr.f32.gmra.mxu0 %v3197
      %v3590 = vpop.f32.mrf.mxu0
      %v3591 = vadd.f32 %v3222, %v3590
      %v3592 = vpop.f32.mrf.mxu0
      %3593 = vmatprep.mubr.f32.mxu0 0.0
      %3594 = vmatmul.mubr.f32.gmra.mxu0 %v3198
      %v3595 = vpop.f32.mrf.mxu0
      %v3596 = vadd.f32 %v3222, %v3595
      %v3597 = vpop.f32.mrf.mxu0
      %3598 = vmatprep.mubr.f32.mxu0 0.0
      %3599 = vmatmul.mubr.f32.gmra.mxu0 %v3199
      %v3600 = vpop.f32.mrf.mxu0
      %v3601 = vadd.f32 %v3222, %v3600
      %v3602 = vpop.f32.mrf.mxu0
      %3603 = vmatprep.mubr.f32.mxu0 0.0
      %3604 = vmatmul.mubr.f32.gmra.mxu0 %v3200
      %v3605 = vpop.f32.mrf.mxu0
      %v3606 = vadd.f32 %v3222, %v3605
      %v3607 = vpop.f32.mrf.mxu0
      %3608 = vdwg.mxu0
      %3673 = vrot.lane.b32.xlu0 %v3291, 64
      %v3674 = vpop.permute.xlu0 %3673
      %3675 = vrot.lane.b32.xlu0 %v3296, 64
      %v3676 = vpop.permute.xlu0 %3675
      %3677 = vrot.lane.b32.xlu0 %v3301, 64
      %v3678 = vpop.permute.xlu0 %3677
      %3679 = vrot.lane.b32.xlu0 %v3306, 64
      %v3680 = vpop.permute.xlu0 %3679
      %3681 = vrot.lane.b32.xlu0 %v3311, 64
      %v3682 = vpop.permute.xlu0 %3681
      %3683 = vrot.lane.b32.xlu0 %v3316, 64
      %v3684 = vpop.permute.xlu0 %3683
      %3685 = vrot.lane.b32.xlu0 %v3321, 64
      %v3686 = vpop.permute.xlu0 %3685
      %3687 = vrot.lane.b32.xlu0 %v3326, 64
      %v3688 = vpop.permute.xlu0 %3687
      %3689 = vrot.lane.b32.xlu0 %v3331, 64
      %v3690 = vpop.permute.xlu0 %3689
      %3691 = vrot.lane.b32.xlu0 %v3336, 64
      %v3692 = vpop.permute.xlu0 %3691
      %3693 = vrot.lane.b32.xlu0 %v3341, 64
      %v3694 = vpop.permute.xlu0 %3693
      %3695 = vrot.lane.b32.xlu0 %v3346, 64
      %v3696 = vpop.permute.xlu0 %3695
      %3697 = vrot.lane.b32.xlu0 %v3351, 64
      %v3698 = vpop.permute.xlu0 %3697
      %3699 = vrot.lane.b32.xlu0 %v3356, 64
      %v3700 = vpop.permute.xlu0 %3699
      %3701 = vrot.lane.b32.xlu0 %v3361, 64
      %v3702 = vpop.permute.xlu0 %3701
      %3703 = vrot.lane.b32.xlu0 %v3366, 64
      %v3704 = vpop.permute.xlu0 %3703
      %3705 = vrot.lane.b32.xlu0 %v3371, 64
      %v3706 = vpop.permute.xlu0 %3705
      %3707 = vrot.lane.b32.xlu0 %v3376, 64
      %v3708 = vpop.permute.xlu0 %3707
      %3709 = vrot.lane.b32.xlu0 %v3381, 64
      %v3710 = vpop.permute.xlu0 %3709
      %3711 = vrot.lane.b32.xlu0 %v3386, 64
      %v3712 = vpop.permute.xlu0 %3711
      %3713 = vrot.lane.b32.xlu0 %v3391, 64
      %v3714 = vpop.permute.xlu0 %3713
      %3715 = vrot.lane.b32.xlu0 %v3396, 64
      %v3716 = vpop.permute.xlu0 %3715
      %3717 = vrot.lane.b32.xlu0 %v3401, 64
      %v3718 = vpop.permute.xlu0 %3717
      %3719 = vrot.lane.b32.xlu0 %v3406, 64
      %v3720 = vpop.permute.xlu0 %3719
      %3721 = vrot.lane.b32.xlu0 %v3411, 64
      %v3722 = vpop.permute.xlu0 %3721
      %3723 = vrot.lane.b32.xlu0 %v3416, 64
      %v3724 = vpop.permute.xlu0 %3723
      %3725 = vrot.lane.b32.xlu0 %v3421, 64
      %v3726 = vpop.permute.xlu0 %3725
      %3727 = vrot.lane.b32.xlu0 %v3426, 64
      %v3728 = vpop.permute.xlu0 %3727
      %3729 = vrot.lane.b32.xlu0 %v3431, 64
      %v3730 = vpop.permute.xlu0 %3729
      %3731 = vrot.lane.b32.xlu0 %v3436, 64
      %v3732 = vpop.permute.xlu0 %3731
      %3733 = vrot.lane.b32.xlu0 %v3441, 64
      %v3734 = vpop.permute.xlu0 %3733
      %3735 = vrot.lane.b32.xlu0 %v3446, 64
      %v3736 = vpop.permute.xlu0 %3735
      %3737 = vrot.lane.b32.xlu0 %v3451, 64
      %v3738 = vpop.permute.xlu0 %3737
      %3739 = vrot.lane.b32.xlu0 %v3456, 64
      %v3740 = vpop.permute.xlu0 %3739
      %3741 = vrot.lane.b32.xlu0 %v3461, 64
      %v3742 = vpop.permute.xlu0 %3741
      %3743 = vrot.lane.b32.xlu0 %v3466, 64
      %v3744 = vpop.permute.xlu0 %3743
      %3745 = vrot.lane.b32.xlu0 %v3471, 64
      %v3746 = vpop.permute.xlu0 %3745
      %3747 = vrot.lane.b32.xlu0 %v3476, 64
      %v3748 = vpop.permute.xlu0 %3747
      %3749 = vrot.lane.b32.xlu0 %v3481, 64
      %v3750 = vpop.permute.xlu0 %3749
      %3751 = vrot.lane.b32.xlu0 %v3486, 64
      %v3752 = vpop.permute.xlu0 %3751
      %3753 = vrot.lane.b32.xlu0 %v3491, 64
      %v3754 = vpop.permute.xlu0 %3753
      %3755 = vrot.lane.b32.xlu0 %v3496, 64
      %v3756 = vpop.permute.xlu0 %3755
      %3757 = vrot.lane.b32.xlu0 %v3501, 64
      %v3758 = vpop.permute.xlu0 %3757
      %3759 = vrot.lane.b32.xlu0 %v3506, 64
      %v3760 = vpop.permute.xlu0 %3759
      %3761 = vrot.lane.b32.xlu0 %v3511, 64
      %v3762 = vpop.permute.xlu0 %3761
      %3763 = vrot.lane.b32.xlu0 %v3516, 64
      %v3764 = vpop.permute.xlu0 %3763
      %3765 = vrot.lane.b32.xlu0 %v3521, 64
      %v3766 = vpop.permute.xlu0 %3765
      %3767 = vrot.lane.b32.xlu0 %v3526, 64
      %v3768 = vpop.permute.xlu0 %3767
      %3769 = vrot.lane.b32.xlu0 %v3531, 64
      %v3770 = vpop.permute.xlu0 %3769
      %3771 = vrot.lane.b32.xlu0 %v3536, 64
      %v3772 = vpop.permute.xlu0 %3771
      %3773 = vrot.lane.b32.xlu0 %v3541, 64
      %v3774 = vpop.permute.xlu0 %3773
      %3775 = vrot.lane.b32.xlu0 %v3546, 64
      %v3776 = vpop.permute.xlu0 %3775
      %3777 = vrot.lane.b32.xlu0 %v3551, 64
      %v3778 = vpop.permute.xlu0 %3777
      %3779 = vrot.lane.b32.xlu0 %v3556, 64
      %v3780 = vpop.permute.xlu0 %3779
      %3781 = vrot.lane.b32.xlu0 %v3561, 64
      %v3782 = vpop.permute.xlu0 %3781
      %3783 = vrot.lane.b32.xlu0 %v3566, 64
      %v3784 = vpop.permute.xlu0 %3783
      %3785 = vrot.lane.b32.xlu0 %v3571, 64
      %v3786 = vpop.permute.xlu0 %3785
      %3787 = vrot.lane.b32.xlu0 %v3576, 64
      %v3788 = vpop.permute.xlu0 %3787
      %3789 = vrot.lane.b32.xlu0 %v3581, 64
      %v3790 = vpop.permute.xlu0 %3789
      %3791 = vrot.lane.b32.xlu0 %v3586, 64
      %v3792 = vpop.permute.xlu0 %3791
      %3793 = vrot.lane.b32.xlu0 %v3591, 64
      %v3794 = vpop.permute.xlu0 %3793
      %3795 = vrot.lane.b32.xlu0 %v3596, 64
      %v3796 = vpop.permute.xlu0 %3795
      %3797 = vrot.lane.b32.xlu0 %v3601, 64
      %v3798 = vpop.permute.xlu0 %3797
      %3799 = vrot.lane.b32.xlu0 %v3606, 64
      %v3800 = vpop.permute.xlu0 %3799
      %v3865 = vmul.f32 %v3291, %v3674
      %v3866 = vmul.f32 %v3296, %v3676
      %v3867 = vmul.f32 %v3301, %v3678
      %v3868 = vmul.f32 %v3306, %v3680
      %v3869 = vmul.f32 %v3311, %v3682
      %v3870 = vmul.f32 %v3316, %v3684
      %v3871 = vmul.f32 %v3321, %v3686
      %v3872 = vmul.f32 %v3326, %v3688
      %v3873 = vmul.f32 %v3331, %v3690
      %v3874 = vmul.f32 %v3336, %v3692
      %v3875 = vmul.f32 %v3341, %v3694
      %v3876 = vmul.f32 %v3346, %v3696
      %v3877 = vmul.f32 %v3351, %v3698
      %v3878 = vmul.f32 %v3356, %v3700
      %v3879 = vmul.f32 %v3361, %v3702
      %v3880 = vmul.f32 %v3366, %v3704
      %v3881 = vmul.f32 %v3371, %v3706
      %v3882 = vmul.f32 %v3376, %v3708
      %v3883 = vmul.f32 %v3381, %v3710
      %v3884 = vmul.f32 %v3386, %v3712
      %v3885 = vmul.f32 %v3391, %v3714
      %v3886 = vmul.f32 %v3396, %v3716
      %v3887 = vmul.f32 %v3401, %v3718
      %v3888 = vmul.f32 %v3406, %v3720
      %v3889 = vmul.f32 %v3411, %v3722
      %v3890 = vmul.f32 %v3416, %v3724
      %v3891 = vmul.f32 %v3421, %v3726
      %v3892 = vmul.f32 %v3426, %v3728
      %v3893 = vmul.f32 %v3431, %v3730
      %v3894 = vmul.f32 %v3436, %v3732
      %v3895 = vmul.f32 %v3441, %v3734
      %v3896 = vmul.f32 %v3446, %v3736
      %v3897 = vmul.f32 %v3451, %v3738
      %v3898 = vmul.f32 %v3456, %v3740
      %v3899 = vmul.f32 %v3461, %v3742
      %v3900 = vmul.f32 %v3466, %v3744
      %v3901 = vmul.f32 %v3471, %v3746
      %v3902 = vmul.f32 %v3476, %v3748
      %v3903 = vmul.f32 %v3481, %v3750
      %v3904 = vmul.f32 %v3486, %v3752
      %v3905 = vmul.f32 %v3491, %v3754
      %v3906 = vmul.f32 %v3496, %v3756
      %v3907 = vmul.f32 %v3501, %v3758
      %v3908 = vmul.f32 %v3506, %v3760
      %v3909 = vmul.f32 %v3511, %v3762
      %v3910 = vmul.f32 %v3516, %v3764
      %v3911 = vmul.f32 %v3521, %v3766
      %v3912 = vmul.f32 %v3526, %v3768
      %v3913 = vmul.f32 %v3531, %v3770
      %v3914 = vmul.f32 %v3536, %v3772
      %v3915 = vmul.f32 %v3541, %v3774
      %v3916 = vmul.f32 %v3546, %v3776
      %v3917 = vmul.f32 %v3551, %v3778
      %v3918 = vmul.f32 %v3556, %v3780
      %v3919 = vmul.f32 %v3561, %v3782
      %v3920 = vmul.f32 %v3566, %v3784
      %v3921 = vmul.f32 %v3571, %v3786
      %v3922 = vmul.f32 %v3576, %v3788
      %v3923 = vmul.f32 %v3581, %v3790
      %v3924 = vmul.f32 %v3586, %v3792
      %v3925 = vmul.f32 %v3591, %v3794
      %v3926 = vmul.f32 %v3596, %v3796
      %v3927 = vmul.f32 %v3601, %v3798
      %v3928 = vmul.f32 %v3606, %v3800
      %v3929 = vld [vmem:[%s11] sm:$0x3]
      %v3930 = vld [vmem:[%s12] sm:$0x3]
      %3932 = vset.pattern.permute.xlu0 0
      %3933 = vperm.xlu0 %3932, %v3930
      %v3934 = vpop.permute.xlu0 %3933
      %v3937 = vsel %vm1903, %v3929, 0
      %v3940 = vsel %vm1903, %v3865, 0
      %v3943 = vsel %vm1903, %v3866, 0
      %v3946 = vsel %vm1903, %v3867, 0
      %v3949 = vsel %vm1903, %v3868, 0
      %v3952 = vsel %vm1903, %v3869, 0
      %v3955 = vsel %vm1903, %v3870, 0
      %v3958 = vsel %vm1903, %v3871, 0
      %v3961 = vsel %vm1903, %v3872, 0
      %v3964 = vsel %vm1903, %v3873, 0
      %v3967 = vsel %vm1903, %v3874, 0
      %v3970 = vsel %vm1903, %v3875, 0
      %v3973 = vsel %vm1903, %v3876, 0
      %v3976 = vsel %vm1903, %v3877, 0
      %v3979 = vsel %vm1903, %v3878, 0
      %v3982 = vsel %vm1903, %v3879, 0
      %v3985 = vsel %vm1903, %v3880, 0
      %v3988 = vsel %vm1903, %v3881, 0
      %v3991 = vsel %vm1903, %v3882, 0
      %v3994 = vsel %vm1903, %v3883, 0
      %v3997 = vsel %vm1903, %v3884, 0
      %v4000 = vsel %vm1903, %v3885, 0
      %v4003 = vsel %vm1903, %v3886, 0
      %v4006 = vsel %vm1903, %v3887, 0
      %v4009 = vsel %vm1903, %v3888, 0
      %v4012 = vsel %vm1903, %v3889, 0
      %v4015 = vsel %vm1903, %v3890, 0
      %v4018 = vsel %vm1903, %v3891, 0
      %v4021 = vsel %vm1903, %v3892, 0
      %v4024 = vsel %vm1903, %v3893, 0
      %v4027 = vsel %vm1903, %v3894, 0
      %v4030 = vsel %vm1903, %v3895, 0
      %v4033 = vsel %vm1903, %v3896, 0
      %v4036 = vsel %vm1903, %v3897, 0
      %v4039 = vsel %vm1903, %v3898, 0
      %v4042 = vsel %vm1903, %v3899, 0
      %v4045 = vsel %vm1903, %v3900, 0
      %v4048 = vsel %vm1903, %v3901, 0
      %v4051 = vsel %vm1903, %v3902, 0
      %v4054 = vsel %vm1903, %v3903, 0
      %v4057 = vsel %vm1903, %v3904, 0
      %v4060 = vsel %vm1903, %v3905, 0
      %v4063 = vsel %vm1903, %v3906, 0
      %v4066 = vsel %vm1903, %v3907, 0
      %v4069 = vsel %vm1903, %v3908, 0
      %v4072 = vsel %vm1903, %v3909, 0
      %v4075 = vsel %vm1903, %v3910, 0
      %v4078 = vsel %vm1903, %v3911, 0
      %v4081 = vsel %vm1903, %v3912, 0
      %v4084 = vsel %vm1903, %v3913, 0
      %v4087 = vsel %vm1903, %v3914, 0
      %v4090 = vsel %vm1903, %v3915, 0
      %v4093 = vsel %vm1903, %v3916, 0
      %v4096 = vsel %vm1903, %v3917, 0
      %v4099 = vsel %vm1903, %v3918, 0
      %v4102 = vsel %vm1903, %v3919, 0
      %v4105 = vsel %vm1903, %v3920, 0
      %v4108 = vsel %vm1903, %v3921, 0
      %v4111 = vsel %vm1903, %v3922, 0
      %v4114 = vsel %vm1903, %v3923, 0
      %v4117 = vsel %vm1903, %v3924, 0
      %v4120 = vsel %vm1903, %v3925, 0
      %v4123 = vsel %vm1903, %v3926, 0
      %v4126 = vsel %vm1903, %v3927, 0
      %v4129 = vsel %vm1903, %v3928, 0
      %4131 = vmatprep.subr.mxu0 0.0
      %4132 = vmatpush1.xpose.msra.mxu0 %v3985
      %4133 = vmatprep.subr.mxu0 0.0
      %4134 = vmatpush1.xpose.msra.mxu0 %v3982
      %4135 = vmatprep.subr.mxu0 0.0
      %4136 = vmatpush1.xpose.msra.mxu0 %v3979
      %4137 = vmatprep.subr.mxu0 0.0
      %4138 = vmatpush1.xpose.msra.mxu0 %v3976
      %4139 = vmatprep.subr.mxu0 0.0
      %4140 = vmatpush1.xpose.msra.mxu0 %v3973
      %4141 = vmatprep.subr.mxu0 0.0
      %4142 = vmatpush1.xpose.msra.mxu0 %v3970
      %4143 = vmatprep.subr.mxu0 0.0
      %4144 = vmatpush1.xpose.msra.mxu0 %v3967
      %4145 = vmatprep.subr.mxu0 0.0
      %4146 = vmatpush1.xpose.msra.mxu0 %v3964
      %4147 = vmatprep.subr.mxu0 0.0
      %4148 = vmatpush1.xpose.msra.mxu0 %v3961
      %4149 = vmatprep.subr.mxu0 0.0
      %4150 = vmatpush1.xpose.msra.mxu0 %v3958
      %4151 = vmatprep.subr.mxu0 0.0
      %4152 = vmatpush1.xpose.msra.mxu0 %v3955
      %4153 = vmatprep.subr.mxu0 0.0
      %4154 = vmatpush1.xpose.msra.mxu0 %v3952
      %4155 = vmatprep.subr.mxu0 0.0
      %4156 = vmatpush1.xpose.msra.mxu0 %v3949
      %4157 = vmatprep.subr.mxu0 0.0
      %4158 = vmatpush1.xpose.msra.mxu0 %v3946
      %4159 = vmatprep.subr.mxu0 0.0
      %4160 = vmatpush1.xpose.msra.mxu0 %v3943
      %4161 = vmatprep.subr.mxu0 0.0
      %4162 = vmatpush1.xpose.msra.mxu0 %v3940
      %4163 = vmatprep.subr.mxu0 0.0
      %4164 = vmatpush2.xpose.msra.mxu0 %v4033
      %4165 = vmatprep.subr.mxu0 0.0
      %4166 = vmatpush2.xpose.msra.mxu0 %v4030
      %4167 = vmatprep.subr.mxu0 0.0
      %4168 = vmatpush2.xpose.msra.mxu0 %v4027
      %4169 = vmatprep.subr.mxu0 0.0
      %4170 = vmatpush2.xpose.msra.mxu0 %v4024
      %4171 = vmatprep.subr.mxu0 0.0
      %4172 = vmatpush2.xpose.msra.mxu0 %v4021
      %4173 = vmatprep.subr.mxu0 0.0
      %4174 = vmatpush2.xpose.msra.mxu0 %v4018
      %4175 = vmatprep.subr.mxu0 0.0
      %4176 = vmatpush2.xpose.msra.mxu0 %v4015
      %4177 = vmatprep.subr.mxu0 0.0
      %4178 = vmatpush2.xpose.msra.mxu0 %v4012
      %4179 = vmatprep.subr.mxu0 0.0
      %4180 = vmatpush2.xpose.msra.mxu0 %v4009
      %4181 = vmatprep.subr.mxu0 0.0
      %4182 = vmatpush2.xpose.msra.mxu0 %v4006
      %4183 = vmatprep.subr.mxu0 0.0
      %4184 = vmatpush2.xpose.msra.mxu0 %v4003
      %4185 = vmatprep.subr.mxu0 0.0
      %4186 = vmatpush2.xpose.msra.mxu0 %v4000
      %4187 = vmatprep.subr.mxu0 0.0
      %4188 = vmatpush2.xpose.msra.mxu0 %v3997
      %4189 = vmatprep.subr.mxu0 0.0
      %4190 = vmatpush2.xpose.msra.mxu0 %v3994
      %4191 = vmatprep.subr.mxu0 0.0
      %4192 = vmatpush2.xpose.msra.mxu0 %v3991
      %4193 = vmatprep.subr.mxu0 0.0
      %4194 = vmatpush2.xpose.msra.mxu0 %v3988
      %4195 = vmatprep.mubr.f32.mxu0 0.0
      %4196 = vmatmul.mubr.f32.gmra.mxu0 %v3937
      %v4197 = vpop.f32.mrf.mxu0
      %v4198 = vadd.f32 %v3934, %v4197
      %v4199 = vpop.f32.mrf.mxu0
      %v4200 = vadd.f32 %v3934, %v4199
      %4201 = vdwg.mxu0
      %4202 = vmatprep.subr.mxu0 0.0
      %4203 = vmatpush1.xpose.msra.mxu0 %v4081
      %4204 = vmatprep.subr.mxu0 0.0
      %4205 = vmatpush1.xpose.msra.mxu0 %v4078
      %4206 = vmatprep.subr.mxu0 0.0
      %4207 = vmatpush1.xpose.msra.mxu0 %v4075
      %4208 = vmatprep.subr.mxu0 0.0
      %4209 = vmatpush1.xpose.msra.mxu0 %v4072
      %4210 = vmatprep.subr.mxu0 0.0
      %4211 = vmatpush1.xpose.msra.mxu0 %v4069
      %4212 = vmatprep.subr.mxu0 0.0
      %4213 = vmatpush1.xpose.msra.mxu0 %v4066
      %4214 = vmatprep.subr.mxu0 0.0
      %4215 = vmatpush1.xpose.msra.mxu0 %v4063
      %4216 = vmatprep.subr.mxu0 0.0
      %4217 = vmatpush1.xpose.msra.mxu0 %v4060
      %4218 = vmatprep.subr.mxu0 0.0
      %4219 = vmatpush1.xpose.msra.mxu0 %v4057
      %4220 = vmatprep.subr.mxu0 0.0
      %4221 = vmatpush1.xpose.msra.mxu0 %v4054
      %4222 = vmatprep.subr.mxu0 0.0
      %4223 = vmatpush1.xpose.msra.mxu0 %v4051
      %4224 = vmatprep.subr.mxu0 0.0
      %4225 = vmatpush1.xpose.msra.mxu0 %v4048
      %4226 = vmatprep.subr.mxu0 0.0
      %4227 = vmatpush1.xpose.msra.mxu0 %v4045
      %4228 = vmatprep.subr.mxu0 0.0
      %4229 = vmatpush1.xpose.msra.mxu0 %v4042
      %4230 = vmatprep.subr.mxu0 0.0
      %4231 = vmatpush1.xpose.msra.mxu0 %v4039
      %4232 = vmatprep.subr.mxu0 0.0
      %4233 = vmatpush1.xpose.msra.mxu0 %v4036
      %4234 = vmatprep.subr.mxu0 0.0
      %4235 = vmatpush2.xpose.msra.mxu0 %v4129
      %4236 = vmatprep.subr.mxu0 0.0
      %4237 = vmatpush2.xpose.msra.mxu0 %v4126
      %4238 = vmatprep.subr.mxu0 0.0
      %4239 = vmatpush2.xpose.msra.mxu0 %v4123
      %4240 = vmatprep.subr.mxu0 0.0
      %4241 = vmatpush2.xpose.msra.mxu0 %v4120
      %4242 = vmatprep.subr.mxu0 0.0
      %4243 = vmatpush2.xpose.msra.mxu0 %v4117
      %4244 = vmatprep.subr.mxu0 0.0
      %4245 = vmatpush2.xpose.msra.mxu0 %v4114
      %4246 = vmatprep.subr.mxu0 0.0
      %4247 = vmatpush2.xpose.msra.mxu0 %v4111
      %4248 = vmatprep.subr.mxu0 0.0
      %4249 = vmatpush2.xpose.msra.mxu0 %v4108
      %4250 = vmatprep.subr.mxu0 0.0
      %4251 = vmatpush2.xpose.msra.mxu0 %v4105
      %4252 = vmatprep.subr.mxu0 0.0
      %4253 = vmatpush2.xpose.msra.mxu0 %v4102
      %4254 = vmatprep.subr.mxu0 0.0
      %4255 = vmatpush2.xpose.msra.mxu0 %v4099
      %4256 = vmatprep.subr.mxu0 0.0
      %4257 = vmatpush2.xpose.msra.mxu0 %v4096
      %4258 = vmatprep.subr.mxu0 0.0
      %4259 = vmatpush2.xpose.msra.mxu0 %v4093
      %4260 = vmatprep.subr.mxu0 0.0
      %4261 = vmatpush2.xpose.msra.mxu0 %v4090
      %4262 = vmatprep.subr.mxu0 0.0
      %4263 = vmatpush2.xpose.msra.mxu0 %v4087
      %4264 = vmatprep.subr.mxu0 0.0
      %4265 = vmatpush2.xpose.msra.mxu0 %v4084
      %4266 = vmatprep.mubr.f32.mxu0 0.0
      %4267 = vmatmul.mubr.f32.gmra.mxu0 %v3937
      %v4268 = vpop.f32.mrf.mxu0
      %v4269 = vadd.f32 %v3934, %v4268
      %v4270 = vpop.f32.mrf.mxu0
      %v4271 = vadd.f32 %v3934, %v4270
      %4272 = vdwg.mxu0
      %v4277 = vcombine.low %v4198, %v4200
      %v4278 = vcombine.low %v4269, %v4271
      %v4280 = vunpack.c.l.s4 1983009808
      %v4281 = vunpack.c.0.s8 %v4280
      %v4282 = vlaneseq
      %v4283 = vshrl.u32 %v4282, 7
      %v4284 = vsub.s32 %v4281, %v4283
      %v4285 = vrot.slane %v4277, %v4284
      %v4287 = vunpack.c.l.s4 1983009808
      %v4288 = vunpack.c.0.s8 %v4287
      %v4289 = vlaneseq
      %v4290 = vshrl.u32 %v4289, 7
      %v4291 = vsub.s32 %v4288, %v4290
      %v4292 = vrot.slane %v4278, %v4291
      %v4293 = vcombine.low %v4285, %v4292
      %4295 = vst [vmem:[%s464] sm:$0xff] %v4293
      %s4296 = smul.u32 4, %s24
      %p4297 = scmp.lt.s32.totalorder %s4296, 7
      %s4298 = scalar_select %p4297, %s4296, 7
      %s4299 = smul.addr %s4298, 2
      %s4300 = scalar_lea.vmem %s13, %s4299
      // Predicated region
      $region73: #{prob_deeponet_forward.1} parent=71 // pred_check
        %p4301 = pneg %p325
      $region74: #{prob_deeponet_forward.1} parent=71 // pred_check_branch
        %4303 = sbr.rel (%p4301) target = $region76
      $region75: #{prob_deeponet_forward.1} parent=71 // pred_region
        %s4304 = smul.u32 4, %s24
      $region76: #{prob_deeponet_forward.1} parent=71 // pred_fallthru
        _
    $region72: #{prob_deeponet_forward.1} parent=5 // pred_fallthru
      _
    %p4305 = scmp.le.s32.totalorder 2, %s19
    // Predicated region
    $region77: #{prob_deeponet_forward.1} parent=5 // pred_check
      %p4306 = pneg %p4305
    $region78: #{prob_deeponet_forward.1} parent=5 // pred_check_branch
      %4308 = sbr.rel (%p4306) target = $region80
    $region79: #{prob_deeponet_forward.1} parent=5 // pred_region
      %s4309 = ssub.s32 %s19, 2
      // Predicated region
      $region81: #{prob_deeponet_forward.1} parent=79 // pred_check
        %p4310 = pneg %p331
      $region82: #{prob_deeponet_forward.1} parent=79 // pred_check_branch
        %4312 = sbr.rel (%p4310) target = $region84
      $region83: #{prob_deeponet_forward.1} parent=79 // pred_region
        %s4313 = smul.u32 4, %s25
        %p4314 = scmp.lt.s32.totalorder %s4313, 7
        %s4315 = scalar_select %p4314, %s4313, 7
        %s4316 = smul.addr %s4315, 2
        %s4317 = scalar_lea.vmem %s13, %s4316
      $region84: #{prob_deeponet_forward.1} parent=79 // pred_fallthru
        _
    $region80: #{prob_deeponet_forward.1} parent=5 // pred_fallthru
      _
  $region6: #{prob_deeponet_forward.1} parent=0 // loop_footer
    %s23 = sadd.s32 1, %s19
  $region7: #{prob_deeponet_forward.1} parent=0 // loop_footer_branch
    %18 = sbr.rel target = $region3
  $region8: #{prob_deeponet_forward.1} parent=0 // loop_exit
    _

</llo_original>
